<compile_context>
chip_gen: v5e
topology: v5e:2x2
jax: 0.10.0
libtpu: 0.0.40
codegen_flags: <defaults>
</compile_context>

<pallas_src>
import math
import functools

import jax
import jax.numpy as jnp
from jax.experimental import pallas as pl
from jax.experimental.pallas import tpu as pltpu

EPS = 1e-8
LRELU_SLOPE = 0.01          # nn.LeakyReLU() default negative_slope


# ---------------------------------------------------------------------------
# Pallas kernels
# ---------------------------------------------------------------------------
def _modconv_kernel(x_ref, w_ref, sk_ref, d_ref, nz_ref, o_ref, *, slope):
    """out = LeakyReLU( demod * ((patches * (style+1)) @ W) + noise )."""
    # x_ref: (TM, K) bf16 im2col patches; sk_ref: (1, K) f32 (style+1 tiled to K)
    xm = (x_ref[...].astype(jnp.float32) * sk_ref[...]).astype(jnp.bfloat16)
    # Single full-K MXU matmul, f32 accumulation.
    acc = jnp.dot(xm, w_ref[...], preferred_element_type=jnp.float32)   # (TM, TN)
    # Fused epilogue in f32: demodulation scale + noise bias + LeakyReLU.
    out = acc * d_ref[...] + nz_ref[...]
    out = jnp.where(out >= 0.0, out, slope * out)
    o_ref[...] = out.astype(o_ref.dtype)


def _linear_kernel(x_ref, w_ref, b_ref, o_ref):
    acc = jnp.dot(x_ref[...], w_ref[...], preferred_element_type=jnp.float32)
    o_ref[...] = (acc + b_ref[...]).astype(o_ref.dtype)


def pallas_linear(x, w_t, b):
    """y = x @ w_t + b.  Tiny shapes -> whole problem in a single kernel invocation."""
    M, _ = x.shape
    N = w_t.shape[1]
    return pl.pallas_call(
        _linear_kernel,
        out_shape=jax.ShapeDtypeStruct((M, N), jnp.float32),
    )(x.astype(jnp.float32), w_t.astype(jnp.float32),
      b.reshape(1, N).astype(jnp.float32))


# ---------------------------------------------------------------------------
# Conv2DMod = im2col (plain-JAX glue) + fully fused Pallas matmul
# ---------------------------------------------------------------------------
def _im2col_3x3(x):
    """(B,H,W,C) -> (B, H*W, 9*C); padding=1, stride=1 ('same').  Column order:
    (kh, kw) major, cin minor — must match the weight reshape in _init_conv2dmod."""
    B, H, W, C = x.shape
    xp = jnp.pad(x, ((0, 0), (1, 1), (1, 1), (0, 0)))
    cols = [xp[:, i:i + H, j:j + W, :] for i in range(3) for j in range(3)]
    return jnp.concatenate(cols, axis=-1).reshape(B, H * W, 9 * C)


def _pick_tile(dim, limit, candidates):
    if dim <= limit:
        return dim                      # full-dim block: no padding needed
    for t in candidates:
        if dim % t == 0:
            return t
    return dim


def modulated_conv3x3(x_nhwc, conv_p, style, noise_chan, out_dtype):
    """Conv2DMod(kernel=3, demod=True) + per-channel noise add + LeakyReLU, fused."""
    B, H, W, Cin = x_nhwc.shape
    w2 = conv_p["w2"]                                   # (K, Cout) bf16, built at init
    K, Cout = w2.shape
    M = H * W

    # Per-(batch, cout) demodulation — tiny f32 math in glue:
    # d[b,o] = rsqrt( sum_i (s[b,i]+1)^2 * sum_{kh,kw} W[o,i,kh,kw]^2 + EPS )
    s_p1 = style.astype(jnp.float32) + 1.0                               # (B, Cin)
    demod = jax.lax.rsqrt((s_p1 * s_p1) @ conv_p["wsq"] + EPS)           # (B, Cout)
    style_k = jnp.tile(s_p1, (1, 9)).reshape(B, 1, K)                    # matches col order

    # TODO(synk): im2col is plain-JAX glue; it could be fused into the kernel via a
    # window-shifting index_map, but at these sizes the matmul core dominates.
    patches = _im2col_3x3(x_nhwc.astype(jnp.bfloat16))                   # (B, M, K) bf16

    TM = _pick_tile(M, 512, (512, 256, 128, 64, 32, 16, 8))
    TN = _pick_tile(Cout, 256, (256, 128))
    grid = (B, M // TM, Cout // TN)

    out = pl.pallas_call(
        functools.partial(_modconv_kernel, slope=LRELU_SLOPE),
        out_shape=jax.ShapeDtypeStruct((B, M, Cout), out_dtype),
        grid_spec=pltpu.PrefetchScalarGridSpec(
            num_scalar_prefetch=0,
            grid=grid,
            in_specs=[
                pl.BlockSpec((None, TM, K), lambda b, m, n: (b, m, 0)),   # patches
                pl.BlockSpec((K, TN), lambda b, m, n: (0, n)),            # weight (full K, resident)
                pl.BlockSpec((None, 1, K), lambda b, m, n: (b, 0, 0)),    # style+1, tiled to K
                pl.BlockSpec((None, 1, TN), lambda b, m, n: (b, 0, n)),   # demod scale
                pl.BlockSpec((None, 1, TN), lambda b, m, n: (b, 0, n)),   # per-channel noise
            ],
            out_specs=pl.BlockSpec((None, TM, TN), lambda b, m, n: (b, m, n)),
        ),
        compiler_params=pltpu.CompilerParams(
            dimension_semantics=("parallel", "parallel", "parallel")),
    )(patches, w2, style_k,
      demod.reshape(B, 1, Cout),
      noise_chan.astype(jnp.float32).reshape(B, 1, Cout))
    return out.reshape(B, H, W, Cout)


# ---------------------------------------------------------------------------
# Parameter initialization (deterministic, synthetic)
# ---------------------------------------------------------------------------
def _spectral_norm(w, n_iter=10):
    # TODO(synk): PyTorch spectral_norm keeps a persistent random (u, v) with one power
    # iteration per forward; here we use a deterministic power iteration to the same
    # sigma (largest singular value of W reshaped to (out, -1)).
    w2 = w.reshape(w.shape[0], -1).astype(jnp.float32)
    u = jnp.ones((w2.shape[0],), jnp.float32)
    u = u / (jnp.linalg.norm(u) + 1e-12)
    v = None
    for _ in range(n_iter):
        v = w2.T @ u
        v = v / (jnp.linalg.norm(v) + 1e-12)
        u = w2 @ v
        u = u / (jnp.linalg.norm(u) + 1e-12)
    sigma = u @ (w2 @ v)
    return w / sigma


def _init_sn_linear(key, fan_in, fan_out):
    kw, kb = jax.random.split(key)
    bound = 1.0 / math.sqrt(fan_in)
    w = jax.random.uniform(kw, (fan_out, fan_in), jnp.float32, -bound, bound)
    b = jax.random.uniform(kb, (fan_out,), jnp.float32, -bound, bound)
    w = _spectral_norm(w)
    return {"w_t": jnp.transpose(w), "b": b}        # stored transposed: y = x @ w_t + b


def _init_conv2dmod(key, cin, cout, k=3):
    fan_in = cin * k * k
    std = math.sqrt(2.0 / fan_in)                   # kaiming_normal_, a=0, leaky_relu
    w = jax.random.normal(key, (cout, cin, k, k), jnp.float32) * std
    # Pre-transpose/reshape once at init (perf review): (K = kh*kw*cin, Cout),
    # column order matching _im2col_3x3, stored in bf16 for the MXU.
    w2 = jnp.transpose(w, (2, 3, 1, 0)).reshape(k * k * cin, cout)
    wsq = jnp.transpose(jnp.sum(w * w, axis=(2, 3)))          # (Cin, Cout) for demod
    return {"w2": w2.astype(jnp.bfloat16), "wsq": wsq}


def init_downblock_params(key, latent_dim, input_channels, filters):
    ks = jax.random.split(key, 6)
    return {
        "to_style1": _init_sn_linear(ks[0], latent_dim, input_channels),
        "to_noise1": _init_sn_linear(ks[1], 1, filters),
        "conv1": _init_conv2dmod(ks[2], input_channels, filters),
        "to_style2": _init_sn_linear(ks[3], latent_dim, filters),
        "to_noise2": _init_sn_linear(ks[4], 1, filters),
        "conv2": _init_conv2dmod(ks[5], filters, filters),
    }


# ---------------------------------------------------------------------------
# DownBlock forward
# ---------------------------------------------------------------------------
def downblock_forward(params, x_nchw, style, noise):
    x = jnp.transpose(x_nchw, (0, 2, 3, 1))                      # NHWC for the conv kernels
    B = x.shape[0]

    # Style projections (spectral-normed Linear) via the Pallas fused linear kernel.
    style1 = pallas_linear(style, params["to_style1"]["w_t"], params["to_style1"]["b"])
    style2 = pallas_linear(style, params["to_style2"]["w_t"], params["to_style2"]["b"])

    # to_noise{1,2} are Linear(1, filters): degenerate matmul = scalar * row + bias
    # (plain-JAX glue; the resulting per-channel add is fused into the conv epilogue).
    nz = noise.reshape(B, 1).astype(jnp.float32)
    noise1 = nz * params["to_noise1"]["w_t"].reshape(1, -1) + params["to_noise1"]["b"]
    noise2 = nz * params["to_noise2"]["w_t"].reshape(1, -1) + params["to_noise2"]["b"]

    # conv1 -> (+noise1, LeakyReLU) fused; bf16 activations handed to conv2.
    x = modulated_conv3x3(x, params["conv1"], style1, noise1, out_dtype=jnp.bfloat16)
    # conv2 -> (+noise2, LeakyReLU) fused; f32 for the block output.
    x = modulated_conv3x3(x, params["conv2"], style2, noise2, out_dtype=jnp.float32)

    # MaxPool2d(2).  TODO(synk): plain-JAX glue; could be fused into conv2's epilogue.
    B, H, W, C = x.shape
    x = jnp.max(x.reshape(B, H // 2, 2, W // 2, 2, C), axis=(2, 4))
    return jnp.transpose(x, (0, 3, 1, 2))                         # back to NCHW


if __name__ == "__main__":
    key = jax.random.PRNGKey(0)
    kp, kx, ks, kn = jax.random.split(key, 4)

    # Small shapes consistent with DownBlock(latent_dim, input_channels, filters):
    B, latent_dim, input_channels, filters, H, W = 2, 64, 64, 128, 16, 16
    params = init_downblock_params(kp, latent_dim, input_channels, filters)

    x = jax.random.normal(kx, (B, input_channels, H, W), jnp.float32)   # NCHW like PyTorch
    style = jax.random.normal(ks, (B, latent_dim), jnp.float32)
    noise = jax.random.normal(kn, (B,), jnp.float32)

    fwd = jax.jit(downblock_forward)
    out = jax.block_until_ready(fwd(params, x, style, noise))

    assert out.shape == (B, filters, H // 2, W // 2), out.shape
    assert bool(jnp.all(jnp.isfinite(out)))
    print("KERNEL_OK")
</pallas_src>

<mosaic_0001>
module attributes {stable_mosaic.version = 11 : i64} {
  func.func @_linear_kernel(%arg0: memref<2x64xf32, #tpu.memory_space<vmem>>, %arg1: memref<64x64xf32, #tpu.memory_space<vmem>>, %arg2: memref<1x64xf32, #tpu.memory_space<vmem>>, %arg3: memref<2x64xf32, #tpu.memory_space<vmem>>) attributes {dimension_semantics = [], scalar_prefetch = 0 : i64, scratch_operands = 0 : i64, tpu.core_type = #tpu.core_type<tc>} {
    %c0 = arith.constant 0 : index
    %c0_0 = arith.constant 0 : index
    %0 = vector.load %arg0[%c0, %c0_0] : memref<2x64xf32, #tpu.memory_space<vmem>>, vector<2x64xf32>
    %c0_1 = arith.constant 0 : index
    %c0_2 = arith.constant 0 : index
    %1 = vector.load %arg1[%c0_1, %c0_2] : memref<64x64xf32, #tpu.memory_space<vmem>>, vector<64x64xf32>
    %cst = arith.constant dense<0.000000e+00> : vector<2x64xf32>
    %2 = tpu.matmul %0, %1, %cst {dimension_numbers = #tpu.dot_dimension_numbers<[1], [0], [0], [1], [0, 0, 1, 1], [], []>} : vector<2x64xf32>, vector<64x64xf32>, vector<2x64xf32> -> vector<2x64xf32>
    %c0_3 = arith.constant 0 : index
    %c0_4 = arith.constant 0 : index
    %3 = vector.load %arg2[%c0_3, %c0_4] : memref<1x64xf32, #tpu.memory_space<vmem>>, vector<1x64xf32>
    %4 = vector.broadcast %3 : vector<1x64xf32> to vector<2x64xf32>
    %5 = arith.addf %2, %4 : vector<2x64xf32>
    %c0_5 = arith.constant 0 : index
    %c0_6 = arith.constant 0 : index
    %6 = vector.load %arg3[%c0_5, %c0_6] : memref<2x64xf32, #tpu.memory_space<vmem>>, vector<2x64xf32>
    tpu.vector_store %arg3[%c0_5, %c0_6], %5 {strides = array<i32>} : memref<2x64xf32, #tpu.memory_space<vmem>>, vector<2x64xf32>,
    return
  }
}

module attributes {stable_mosaic.version = 11 : i64} {
  func.func @_modconv_kernel(%arg0: i32, %arg1: i32, %arg2: i32, %arg3: memref<1x256x576xbf16, #tpu.memory_space<vmem>>, %arg4: memref<576x128xbf16, #tpu.memory_space<vmem>>, %arg5: memref<1x1x576xf32, #tpu.memory_space<vmem>>, %arg6: memref<1x1x128xf32, #tpu.memory_space<vmem>>, %arg7: memref<1x1x128xf32, #tpu.memory_space<vmem>>, %arg8: memref<1x256x128xbf16, #tpu.memory_space<vmem>>) attributes {dimension_semantics = [#tpu.dimension_semantics<parallel>, #tpu.dimension_semantics<parallel>, #tpu.dimension_semantics<parallel>], iteration_bounds = array<i64: 2, 1, 1>, scalar_prefetch = 0 : i64, scratch_operands = 0 : i64, tpu.core_type = #tpu.core_type<tc>, window_params = [{transform_indices = @transform_0, window_bounds = array<i64: 1, 256, 576>}, {transform_indices = @transform_1, window_bounds = array<i64: 576, 128>}, {transform_indices = @transform_2, window_bounds = array<i64: 1, 1, 576>}, {transform_indices = @transform_3, window_bounds = array<i64: 1, 1, 128>}, {transform_indices = @transform_4, window_bounds = array<i64: 1, 1, 128>}, {transform_indices = @transform_5, window_bounds = array<i64: 1, 256, 128>}]} {
    %c0 = arith.constant 0 : index
    %c0_0 = arith.constant 0 : index
    %c0_1 = arith.constant 0 : index
    %0 = vector.load %arg3[%c0, %c0_0, %c0_1] : memref<1x256x576xbf16, #tpu.memory_space<vmem>>, vector<1x256x576xbf16>
    %1 = vector.shape_cast %0 : vector<1x256x576xbf16> to vector<256x576xbf16>
    %2 = arith.extf %1 : vector<256x576xbf16> to vector<256x576xf32>
    %c0_2 = arith.constant 0 : index
    %c0_3 = arith.constant 0 : index
    %c0_4 = arith.constant 0 : index
    %3 = vector.load %arg5[%c0_2, %c0_3, %c0_4] : memref<1x1x576xf32, #tpu.memory_space<vmem>>, vector<1x1x576xf32>
    %4 = vector.shape_cast %3 : vector<1x1x576xf32> to vector<1x576xf32>
    %5 = vector.broadcast %4 : vector<1x576xf32> to vector<256x576xf32>
    %6 = arith.mulf %2, %5 : vector<256x576xf32>
    %7 = arith.truncf %6 : vector<256x576xf32> to vector<256x576xbf16>
    %c0_5 = arith.constant 0 : index
    %c0_6 = arith.constant 0 : index
    %8 = vector.load %arg4[%c0_5, %c0_6] : memref<576x128xbf16, #tpu.memory_space<vmem>>, vector<576x128xbf16>
    %cst = arith.constant dense<0.000000e+00> : vector<256x128xf32>
    %9 = tpu.matmul %7, %8, %cst {dimension_numbers = #tpu.dot_dimension_numbers<[1], [0], [0], [1], [0, 0, 1, 1], [], []>} : vector<256x576xbf16>, vector<576x128xbf16>, vector<256x128xf32> -> vector<256x128xf32>
    %c0_7 = arith.constant 0 : index
    %c0_8 = arith.constant 0 : index
    %c0_9 = arith.constant 0 : index
    %10 = vector.load %arg6[%c0_7, %c0_8, %c0_9] : memref<1x1x128xf32, #tpu.memory_space<vmem>>, vector<1x1x128xf32>
    %11 = vector.shape_cast %10 : vector<1x1x128xf32> to vector<1x128xf32>
    %12 = vector.broadcast %11 : vector<1x128xf32> to vector<256x128xf32>
    %13 = arith.mulf %9, %12 : vector<256x128xf32>
    %c0_10 = arith.constant 0 : index
    %c0_11 = arith.constant 0 : index
    %c0_12 = arith.constant 0 : index
    %14 = vector.load %arg7[%c0_10, %c0_11, %c0_12] : memref<1x1x128xf32, #tpu.memory_space<vmem>>, vector<1x1x128xf32>
    %15 = vector.shape_cast %14 : vector<1x1x128xf32> to vector<1x128xf32>
    %16 = vector.broadcast %15 : vector<1x128xf32> to vector<256x128xf32>
    %17 = arith.addf %13, %16 : vector<256x128xf32>
    %cst_13 = arith.constant 0.000000e+00 : f32
    %18 = vector.broadcast %cst_13 : f32 to vector<256x128xf32>
    %19 = arith.cmpf oge, %17, %18 : vector<256x128xf32>
    %cst_14 = arith.constant 0.00999999977 : f32
    %20 = vector.broadcast %cst_14 : f32 to vector<256x128xf32>
    %21 = arith.mulf %20, %17 : vector<256x128xf32>
    %22 = arith.select %19, %17, %21 : vector<256x128xi1>, vector<256x128xf32>
    %23 = arith.truncf %22 : vector<256x128xf32> to vector<256x128xbf16>
    %c0_15 = arith.constant 0 : index
    %c0_16 = arith.constant 0 : index
    %c0_17 = arith.constant 0 : index
    %24 = vector.load %arg8[%c0_15, %c0_16, %c0_17] : memref<1x256x128xbf16, #tpu.memory_space<vmem>>, vector<1x256x128xbf16>
    %25 = vector.shape_cast %24 : vector<1x256x128xbf16> to vector<256x128xbf16>
    %26 = vector.shape_cast %23 : vector<256x128xbf16> to vector<1x256x128xbf16>
    tpu.vector_store %arg8[%c0_15, %c0_16, %c0_17], %26 {strides = array<i32>} : memref<1x256x128xbf16, #tpu.memory_space<vmem>>, vector<1x256x128xbf16>,
    return
  }
  func.func @transform_0(%arg0: i32, %arg1: i32, %arg2: i32) -> (i32, i32, i32) {
    %c0_i32 = arith.constant 0 : i32
    %c0_i32_0 = arith.constant 0 : i32
    return %arg0, %arg1, %c0_i32 : i32, i32, i32
  }
  func.func @transform_1(%arg0: i32, %arg1: i32, %arg2: i32) -> (i32, i32) {
    %c0_i32 = arith.constant 0 : i32
    %c0_i32_0 = arith.constant 0 : i32
    return %c0_i32, %arg2 : i32, i32
  }
  func.func @transform_2(%arg0: i32, %arg1: i32, %arg2: i32) -> (i32, i32, i32) {
    %c0_i32 = arith.constant 0 : i32
    %c0_i32_0 = arith.constant 0 : i32
    %c0_i32_1 = arith.constant 0 : i32
    return %arg0, %c0_i32, %c0_i32_0 : i32, i32, i32
  }
  func.func @transform_3(%arg0: i32, %arg1: i32, %arg2: i32) -> (i32, i32, i32) {
    %c0_i32 = arith.constant 0 : i32
    %c0_i32_0 = arith.constant 0 : i32
    return %arg0, %c0_i32, %arg2 : i32, i32, i32
  }
  func.func @transform_4(%arg0: i32, %arg1: i32, %arg2: i32) -> (i32, i32, i32) {
    %c0_i32 = arith.constant 0 : i32
    %c0_i32_0 = arith.constant 0 : i32
    return %arg0, %c0_i32, %arg2 : i32, i32, i32
  }
  func.func @transform_5(%arg0: i32, %arg1: i32, %arg2: i32) -> (i32, i32, i32) {
    %c0_i32 = arith.constant 0 : i32
    return %arg0, %arg1, %arg2 : i32, i32, i32
  }
}

module attributes {stable_mosaic.version = 11 : i64} {
  func.func @_linear_kernel(%arg0: memref<2x64xf32, #tpu.memory_space<vmem>>, %arg1: memref<64x128xf32, #tpu.memory_space<vmem>>, %arg2: memref<1x128xf32, #tpu.memory_space<vmem>>, %arg3: memref<2x128xf32, #tpu.memory_space<vmem>>) attributes {dimension_semantics = [], scalar_prefetch = 0 : i64, scratch_operands = 0 : i64, tpu.core_type = #tpu.core_type<tc>} {
    %c0 = arith.constant 0 : index
    %c0_0 = arith.constant 0 : index
    %0 = vector.load %arg0[%c0, %c0_0] : memref<2x64xf32, #tpu.memory_space<vmem>>, vector<2x64xf32>
    %c0_1 = arith.constant 0 : index
    %c0_2 = arith.constant 0 : index
    %1 = vector.load %arg1[%c0_1, %c0_2] : memref<64x128xf32, #tpu.memory_space<vmem>>, vector<64x128xf32>
    %cst = arith.constant dense<0.000000e+00> : vector<2x128xf32>
    %2 = tpu.matmul %0, %1, %cst {dimension_numbers = #tpu.dot_dimension_numbers<[1], [0], [0], [1], [0, 0, 1, 1], [], []>} : vector<2x64xf32>, vector<64x128xf32>, vector<2x128xf32> -> vector<2x128xf32>
    %c0_3 = arith.constant 0 : index
    %c0_4 = arith.constant 0 : index
    %3 = vector.load %arg2[%c0_3, %c0_4] : memref<1x128xf32, #tpu.memory_space<vmem>>, vector<1x128xf32>
    %4 = vector.broadcast %3 : vector<1x128xf32> to vector<2x128xf32>
    %5 = arith.addf %2, %4 : vector<2x128xf32>
    %c0_5 = arith.constant 0 : index
    %c0_6 = arith.constant 0 : index
    %6 = vector.load %arg3[%c0_5, %c0_6] : memref<2x128xf32, #tpu.memory_space<vmem>>, vector<2x128xf32>
    tpu.vector_store %arg3[%c0_5, %c0_6], %5 {strides = array<i32>} : memref<2x128xf32, #tpu.memory_space<vmem>>, vector<2x128xf32>,
    return
  }
}

module attributes {stable_mosaic.version = 11 : i64} {
  func.func @_modconv_kernel(%arg0: i32, %arg1: i32, %arg2: i32, %arg3: memref<1x256x1152xbf16, #tpu.memory_space<vmem>>, %arg4: memref<1152x128xbf16, #tpu.memory_space<vmem>>, %arg5: memref<1x1x1152xf32, #tpu.memory_space<vmem>>, %arg6: memref<1x1x128xf32, #tpu.memory_space<vmem>>, %arg7: memref<1x1x128xf32, #tpu.memory_space<vmem>>, %arg8: memref<1x256x128xf32, #tpu.memory_space<vmem>>) attributes {dimension_semantics = [#tpu.dimension_semantics<parallel>, #tpu.dimension_semantics<parallel>, #tpu.dimension_semantics<parallel>], iteration_bounds = array<i64: 2, 1, 1>, scalar_prefetch = 0 : i64, scratch_operands = 0 : i64, tpu.core_type = #tpu.core_type<tc>, window_params = [{transform_indices = @transform_0, window_bounds = array<i64: 1, 256, 1152>}, {transform_indices = @transform_1, window_bounds = array<i64: 1152, 128>}, {transform_indices = @transform_2, window_bounds = array<i64: 1, 1, 1152>}, {transform_indices = @transform_3, window_bounds = array<i64: 1, 1, 128>}, {transform_indices = @transform_4, window_bounds = array<i64: 1, 1, 128>}, {transform_indices = @transform_5, window_bounds = array<i64: 1, 256, 128>}]} {
    %c0 = arith.constant 0 : index
    %c0_0 = arith.constant 0 : index
    %c0_1 = arith.constant 0 : index
    %0 = vector.load %arg3[%c0, %c0_0, %c0_1] : memref<1x256x1152xbf16, #tpu.memory_space<vmem>>, vector<1x256x1152xbf16>
    %1 = vector.shape_cast %0 : vector<1x256x1152xbf16> to vector<256x1152xbf16>
    %2 = arith.extf %1 : vector<256x1152xbf16> to vector<256x1152xf32>
    %c0_2 = arith.constant 0 : index
    %c0_3 = arith.constant 0 : index
    %c0_4 = arith.constant 0 : index
    %3 = vector.load %arg5[%c0_2, %c0_3, %c0_4] : memref<1x1x1152xf32, #tpu.memory_space<vmem>>, vector<1x1x1152xf32>
    %4 = vector.shape_cast %3 : vector<1x1x1152xf32> to vector<1x1152xf32>
    %5 = vector.broadcast %4 : vector<1x1152xf32> to vector<256x1152xf32>
    %6 = arith.mulf %2, %5 : vector<256x1152xf32>
    %7 = arith.truncf %6 : vector<256x1152xf32> to vector<256x1152xbf16>
    %c0_5 = arith.constant 0 : index
    %c0_6 = arith.constant 0 : index
    %8 = vector.load %arg4[%c0_5, %c0_6] : memref<1152x128xbf16, #tpu.memory_space<vmem>>, vector<1152x128xbf16>
    %cst = arith.constant dense<0.000000e+00> : vector<256x128xf32>
    %9 = tpu.matmul %7, %8, %cst {dimension_numbers = #tpu.dot_dimension_numbers<[1], [0], [0], [1], [0, 0, 1, 1], [], []>} : vector<256x1152xbf16>, vector<1152x128xbf16>, vector<256x128xf32> -> vector<256x128xf32>
    %c0_7 = arith.constant 0 : index
    %c0_8 = arith.constant 0 : index
    %c0_9 = arith.constant 0 : index
    %10 = vector.load %arg6[%c0_7, %c0_8, %c0_9] : memref<1x1x128xf32, #tpu.memory_space<vmem>>, vector<1x1x128xf32>
    %11 = vector.shape_cast %10 : vector<1x1x128xf32> to vector<1x128xf32>
    %12 = vector.broadcast %11 : vector<1x128xf32> to vector<256x128xf32>
    %13 = arith.mulf %9, %12 : vector<256x128xf32>
    %c0_10 = arith.constant 0 : index
    %c0_11 = arith.constant 0 : index
    %c0_12 = arith.constant 0 : index
    %14 = vector.load %arg7[%c0_10, %c0_11, %c0_12] : memref<1x1x128xf32, #tpu.memory_space<vmem>>, vector<1x1x128xf32>
    %15 = vector.shape_cast %14 : vector<1x1x128xf32> to vector<1x128xf32>
    %16 = vector.broadcast %15 : vector<1x128xf32> to vector<256x128xf32>
    %17 = arith.addf %13, %16 : vector<256x128xf32>
    %cst_13 = arith.constant 0.000000e+00 : f32
    %18 = vector.broadcast %cst_13 : f32 to vector<256x128xf32>
    %19 = arith.cmpf oge, %17, %18 : vector<256x128xf32>
    %cst_14 = arith.constant 0.00999999977 : f32
    %20 = vector.broadcast %cst_14 : f32 to vector<256x128xf32>
    %21 = arith.mulf %20, %17 : vector<256x128xf32>
    %22 = arith.select %19, %17, %21 : vector<256x128xi1>, vector<256x128xf32>
    %c0_15 = arith.constant 0 : index
    %c0_16 = arith.constant 0 : index
    %c0_17 = arith.constant 0 : index
    %23 = vector.load %arg8[%c0_15, %c0_16, %c0_17] : memref<1x256x128xf32, #tpu.memory_space<vmem>>, vector<1x256x128xf32>
    %24 = vector.shape_cast %23 : vector<1x256x128xf32> to vector<256x128xf32>
    %25 = vector.shape_cast %22 : vector<256x128xf32> to vector<1x256x128xf32>
    tpu.vector_store %arg8[%c0_15, %c0_16, %c0_17], %25 {strides = array<i32>} : memref<1x256x128xf32, #tpu.memory_space<vmem>>, vector<1x256x128xf32>,
    return
  }
  func.func @transform_0(%arg0: i32, %arg1: i32, %arg2: i32) -> (i32, i32, i32) {
    %c0_i32 = arith.constant 0 : i32
    %c0_i32_0 = arith.constant 0 : i32
    return %arg0, %arg1, %c0_i32 : i32, i32, i32
  }
  func.func @transform_1(%arg0: i32, %arg1: i32, %arg2: i32) -> (i32, i32) {
    %c0_i32 = arith.constant 0 : i32
    %c0_i32_0 = arith.constant 0 : i32
    return %c0_i32, %arg2 : i32, i32
  }
  func.func @transform_2(%arg0: i32, %arg1: i32, %arg2: i32) -> (i32, i32, i32) {
    %c0_i32 = arith.constant 0 : i32
    %c0_i32_0 = arith.constant 0 : i32
    %c0_i32_1 = arith.constant 0 : i32
    return %arg0, %c0_i32, %c0_i32_0 : i32, i32, i32
  }
  func.func @transform_3(%arg0: i32, %arg1: i32, %arg2: i32) -> (i32, i32, i32) {
    %c0_i32 = arith.constant 0 : i32
    %c0_i32_0 = arith.constant 0 : i32
    return %arg0, %c0_i32, %arg2 : i32, i32, i32
  }
  func.func @transform_4(%arg0: i32, %arg1: i32, %arg2: i32) -> (i32, i32, i32) {
    %c0_i32 = arith.constant 0 : i32
    %c0_i32_0 = arith.constant 0 : i32
    return %arg0, %c0_i32, %arg2 : i32, i32, i32
  }
  func.func @transform_5(%arg0: i32, %arg1: i32, %arg2: i32) -> (i32, i32, i32) {
    %c0_i32 = arith.constant 0 : i32
    return %arg0, %arg1, %arg2 : i32, i32, i32
  }
}

</mosaic_0001>

<llo_original>
// kernel: downblock_forward.4
$region0: #{downblock_forward.4}
  #allocation0 [shape = 'u32[]', space=smem, size = 0x4, offset = 0x4, fixed_abs, tag = 'smem constant byte address 0x4 - core index']
  #allocation1 [shape = 'u32[72,128]{1,0:T(1,128)}', space=vmem, size = 0x9000, scoped, tag = 'internal scratch']
  %s0 = inlined_call_operand.vmem [shape: f32[2,64], index: 0, kind: input, shape index: {}]
  %s1 = inlined_call_operand.vmem [shape: f32[64,64], index: 1, kind: input, shape index: {}]
  %s2 = inlined_call_operand.vmem [shape: f32[1,64], index: 2, kind: input, shape index: {}]
  %s3 = inlined_call_operand.vmem [shape: f32[2,64], index: 3, kind: output, shape index: {}]
  %s4 = sld [smem:[#allocation0]]
  $region22: #{downblock_forward.4} parent=0
    _
  %s6 = ssub.s32 1, %s4
  %s7 = scalar_select 0, %s6, %s4
  // Predicated region
  $region2: #{downblock_forward.4} parent=0 // pred_check
    _
  $region3: #{downblock_forward.4} parent=0 // pred_check_branch
    %9 = sbr.rel (0) target = $region5
  $region4: #{downblock_forward.4} parent=0 // pred_region
    _
  $region5: #{downblock_forward.4} parent=0 // pred_fallthru
    _
  // Predicated region
  $region6: #{downblock_forward.4} parent=0 // pred_check
    _
  $region7: #{downblock_forward.4} parent=0 // pred_check_branch
    %11 = sbr.rel (0) target = $region9
  $region8: #{downblock_forward.4} parent=0 // pred_region
    _
  $region9: #{downblock_forward.4} parent=0 // pred_fallthru
    _
  // Predicated region
  $region10: #{downblock_forward.4} parent=0 // pred_check
    _
  $region11: #{downblock_forward.4} parent=0 // pred_check_branch
    %13 = sbr.rel (0) target = $region13
  $region12: #{downblock_forward.4} parent=0 // pred_region
    _
  $region13: #{downblock_forward.4} parent=0 // pred_fallthru
    _
  %v14 = vld [vmem:[%s0] sm:$0x3]
  %v15 = vld [vmem:[%s1] sm:$0xff]
  %v16 = vld [vmem:[%s1 + $0x8] sm:$0xff]
  %v17 = vld [vmem:[%s1 + $0x10] sm:$0xff]
  %v18 = vld [vmem:[%s1 + $0x18] sm:$0xff]
  %v19 = vld [vmem:[%s1 + $0x20] sm:$0xff]
  %v20 = vld [vmem:[%s1 + $0x28] sm:$0xff]
  %v21 = vld [vmem:[%s1 + $0x30] sm:$0xff]
  %v22 = vld [vmem:[%s1 + $0x38] sm:$0xff]
  %v23 = vld [vmem:[%s2] sm:$0x1]
  %v25 = vperm.slane %v23, 0
  %vm27 = vcmask 523264
  %v29 = vsel %vm27, %v14, 0
  %31 = vmatpush.msra.mxu0 0.0
  %32 = vmatpush.msra.mxu0 0.0
  %33 = vmatpush.msra.mxu0 0.0
  %34 = vmatpush.msra.mxu0 0.0
  %35 = vmatpush.msra.mxu0 0.0
  %36 = vmatpush.msra.mxu0 0.0
  %37 = vmatpush.msra.mxu0 0.0
  %38 = vmatpush.msra.mxu0 0.0
  %39 = vmatpush.msra.mxu0 %v22
  %40 = vmatpush.msra.mxu0 %v21
  %41 = vmatpush.msra.mxu0 %v20
  %42 = vmatpush.msra.mxu0 %v19
  %43 = vmatpush.msra.mxu0 %v18
  %44 = vmatpush.msra.mxu0 %v17
  %45 = vmatpush.msra.mxu0 %v16
  %46 = vmatpush.msra.mxu0 %v15
  %47 = vmatmul.f32.gmra.mxu0 %v29
  %v48 = vpop.f32.mrf.mxu0
  %v49 = vadd.f32 %v25, %v48
  %50 = vdwg.mxu0
  %vm51 = vcmask 517120
  %52 = vst.msk [vmem:[%s3] sm:$0x3] %vm51, %v49
  // Predicated region
  $region14: #{downblock_forward.4} parent=0 // pred_check
    _
  $region15: #{downblock_forward.4} parent=0 // pred_check_branch
    %54 = sbr.rel (0) target = $region17
  $region16: #{downblock_forward.4} parent=0 // pred_region
    _
  $region17: #{downblock_forward.4} parent=0 // pred_fallthru
    _
  // Predicated region
  $region18: #{downblock_forward.4} parent=0 // pred_check
    _
  $region19: #{downblock_forward.4} parent=0 // pred_check_branch
    %56 = sbr.rel (0) target = $region21
  $region20: #{downblock_forward.4} parent=0 // pred_region
    _
  $region21: #{downblock_forward.4} parent=0 // pred_fallthru
    _

// kernel: downblock_forward.5
$region0: #{downblock_forward.5}
  #allocation0 [shape = 'u32[]', space=smem, size = 0x4, offset = 0x4, fixed_abs, tag = 'smem constant byte address 0x4 - core index']
  #allocation1 [shape = 'u32[72,128]{1,0:T(1,128)}', space=vmem, size = 0x9000, scoped, tag = 'internal scratch']
  %s0 = inlined_call_operand.vmem [shape: f32[2,64], index: 0, kind: input, shape index: {}]
  %s1 = inlined_call_operand.vmem [shape: f32[64,128], index: 1, kind: input, shape index: {}]
  %s2 = inlined_call_operand.vmem [shape: f32[1,128], index: 2, kind: input, shape index: {}]
  %s3 = inlined_call_operand.vmem [shape: f32[2,128], index: 3, kind: output, shape index: {}]
  %s4 = sld [smem:[#allocation0]]
  $region22: #{downblock_forward.5} parent=0
    _
  %s6 = ssub.s32 1, %s4
  %s7 = scalar_select 0, %s6, %s4
  // Predicated region
  $region2: #{downblock_forward.5} parent=0 // pred_check
    _
  $region3: #{downblock_forward.5} parent=0 // pred_check_branch
    %9 = sbr.rel (0) target = $region5
  $region4: #{downblock_forward.5} parent=0 // pred_region
    _
  $region5: #{downblock_forward.5} parent=0 // pred_fallthru
    _
  // Predicated region
  $region6: #{downblock_forward.5} parent=0 // pred_check
    _
  $region7: #{downblock_forward.5} parent=0 // pred_check_branch
    %11 = sbr.rel (0) target = $region9
  $region8: #{downblock_forward.5} parent=0 // pred_region
    _
  $region9: #{downblock_forward.5} parent=0 // pred_fallthru
    _
  // Predicated region
  $region10: #{downblock_forward.5} parent=0 // pred_check
    _
  $region11: #{downblock_forward.5} parent=0 // pred_check_branch
    %13 = sbr.rel (0) target = $region13
  $region12: #{downblock_forward.5} parent=0 // pred_region
    _
  $region13: #{downblock_forward.5} parent=0 // pred_fallthru
    _
  %v14 = vld [vmem:[%s0] sm:$0x3]
  %v15 = vld [vmem:[%s1] sm:$0xff]
  %v16 = vld [vmem:[%s1 + $0x8] sm:$0xff]
  %v17 = vld [vmem:[%s1 + $0x10] sm:$0xff]
  %v18 = vld [vmem:[%s1 + $0x18] sm:$0xff]
  %v19 = vld [vmem:[%s1 + $0x20] sm:$0xff]
  %v20 = vld [vmem:[%s1 + $0x28] sm:$0xff]
  %v21 = vld [vmem:[%s1 + $0x30] sm:$0xff]
  %v22 = vld [vmem:[%s1 + $0x38] sm:$0xff]
  %v23 = vld [vmem:[%s2] sm:$0x1]
  %v25 = vperm.slane %v23, 0
  %vm27 = vcmask 523264
  %v29 = vsel %vm27, %v14, 0
  %31 = vmatpush.msra.mxu0 0.0
  %32 = vmatpush.msra.mxu0 0.0
  %33 = vmatpush.msra.mxu0 0.0
  %34 = vmatpush.msra.mxu0 0.0
  %35 = vmatpush.msra.mxu0 0.0
  %36 = vmatpush.msra.mxu0 0.0
  %37 = vmatpush.msra.mxu0 0.0
  %38 = vmatpush.msra.mxu0 0.0
  %39 = vmatpush.msra.mxu0 %v22
  %40 = vmatpush.msra.mxu0 %v21
  %41 = vmatpush.msra.mxu0 %v20
  %42 = vmatpush.msra.mxu0 %v19
  %43 = vmatpush.msra.mxu0 %v18
  %44 = vmatpush.msra.mxu0 %v17
  %45 = vmatpush.msra.mxu0 %v16
  %46 = vmatpush.msra.mxu0 %v15
  %47 = vmatmul.f32.gmra.mxu0 %v29
  %v48 = vpop.f32.mrf.mxu0
  %v49 = vadd.f32 %v25, %v48
  %50 = vdwg.mxu0
  %51 = vst [vmem:[%s3] sm:$0x3] %v49
  // Predicated region
  $region14: #{downblock_forward.5} parent=0 // pred_check
    _
  $region15: #{downblock_forward.5} parent=0 // pred_check_branch
    %53 = sbr.rel (0) target = $region17
  $region16: #{downblock_forward.5} parent=0 // pred_region
    _
  $region17: #{downblock_forward.5} parent=0 // pred_fallthru
    _
  // Predicated region
  $region18: #{downblock_forward.5} parent=0 // pred_check
    _
  $region19: #{downblock_forward.5} parent=0 // pred_check_branch
    %55 = sbr.rel (0) target = $region21
  $region20: #{downblock_forward.5} parent=0 // pred_region
    _
  $region21: #{downblock_forward.5} parent=0 // pred_fallthru
    _

// kernel: downblock_forward.6
$region0: #{downblock_forward.6}
  #allocation0 [shape = 'u32[]', space=smem, size = 0x4, offset = 0x4, fixed_abs, tag = 'smem constant byte address 0x4 - core index']
  #allocation1 [shape = 'u32[72,128]{1,0:T(1,128)}', space=vmem, size = 0x9000, scoped, tag = 'internal scratch']
  %s0 = inlined_call_operand.vmem [shape: bf16[2,256,576], index: 0, kind: input, shape index: {}]
  %s1 = inlined_call_operand.vmem [shape: bf16[576,128], index: 1, kind: input, shape index: {}]
  %s2 = inlined_call_operand.vmem [shape: f32[2,1,576], index: 2, kind: input, shape index: {}]
  %s3 = inlined_call_operand.vmem [shape: f32[2,1,128], index: 3, kind: input, shape index: {}]
  %s4 = inlined_call_operand.vmem [shape: f32[2,1,128], index: 4, kind: input, shape index: {}]
  %s5 = inlined_call_operand.vmem [shape: bf16[2,256,128], index: 5, kind: output, shape index: {}]
  %s6 = sld [smem:[#allocation0]]
  $region53: #{downblock_forward.6} parent=0
    _
  %s8 = ssub.s32 1, %s6
  %s9 = scalar_select 0, %s8, %s6
  loop: start=0, step=1, limit=4
  $region2: #{downblock_forward.6} parent=0 // loop_pre_header
    _
  $region3: #{downblock_forward.6} parent=0 // loop_header
    %s11 = sphi 0, %s15
    %p12 = scmp.ge.s32.totalorder %s11, 4
    %s18 = sphi 0, %s37
    %s19 = sphi 0, %s33
    %s20 = sphi 0, %s29
    %s21 = sphi 0, %s18
    %s22 = sphi 0, %s19
    %s23 = sphi 0, %s20
    %s24 = sphi 0, %s21
    %s25 = sphi 0, %s22
    %s26 = sphi 0, %s23
    %s42 = sphi 0, %s44
    %s45 = sphi 0, %s42
    %s46 = sphi 0, %s45
    %s62 = sphi 0, %s46
    %s68 = sphi 0, %s70
    %s71 = sphi 0, %s68
    %s72 = sphi 0, %s71
    %s88 = sphi 0, %s72
    %s94 = sphi 0, %s96
    %s97 = sphi 0, %s94
    %s98 = sphi 0, %s97
    %s114 = sphi 0, %s98
    %s122 = sphi 0, %s124
    %s125 = sphi 0, %s122
    %s126 = sphi 0, %s125
    %s142 = sphi 0, %s126
    %s150 = sphi 0, %s152
    %s153 = sphi 0, %s150
    %s154 = sphi 0, %s153
    %s170 = sphi 0, %s154
    %s180 = sphi 0, %s182
    %s183 = sphi 0, %s180
    %s184 = sphi 0, %s183
    %s200 = sphi 0, %s184
  $region4: #{downblock_forward.6} parent=0 // loop_header_branch
    %14 = sbr.rel (%p12) target = $region8
  $region5: #{downblock_forward.6} parent=0 // loop_body
    %s16 = ssub.s32 %s11, 1
    %s17 = ssub.s32 %s11, 2
    %s27 = sadd.s32 1, %s20
    %p28 = scmp.ge.s32.totalorder %s27, 1
    %s29 = scalar_select %p28, 0, %s27
    %s30 = sadd.s32 1, %s19
    %s31 = scalar_select %p28, %s30, %s19
    %p32 = scmp.ge.s32.totalorder %s31, 1
    %s33 = scalar_select %p32, 0, %s31
    %s34 = sadd.s32 1, %s18
    %s35 = scalar_select %p32, %s34, %s18
    %p36 = scmp.ge.s32.totalorder %s35, 2
    %s37 = scalar_select %p36, 0, %s35
    %s38 = ssub.s32 %s18, %s37
    %s39 = ssub.s32 %s19, %s33
    %s40 = sor.u32 %s38, %s39
    %p41 = scmp.eq.s32.totalorder %s40, 0
    %s43 = sadd.s32 %s42, 1
    %s44 = scalar_select %p41, %s42, %s43
    %p47 = pneg %p41
    %p48 = scmp.eq.s32.totalorder %s11, 1
    %p49 = por %p47, %p48
    %p50 = scmp.ne.s32.totalorder %s42, %s45
    %p51 = scmp.eq.s32.totalorder %s11, 0
    %p52 = por %p50, %p51
    %p53 = scmp.ne.s32.totalorder %s42, %s45
    %p54 = scmp.eq.s32.totalorder %s16, 1
    %p55 = por %p53, %p54
    %p56 = scmp.ne.s32.totalorder %s45, %s46
    %p57 = scmp.eq.s32.totalorder %s16, 0
    %p58 = por %p56, %p57
    %p59 = scmp.ne.s32.totalorder %s45, %s46
    %p60 = scmp.eq.s32.totalorder %s17, 1
    %p61 = por %p59, %p60
    %p63 = scmp.ne.s32.totalorder %s46, %s62
    %p64 = scmp.eq.s32.totalorder %s17, 0
    %p65 = por %p63, %p64
    %s66 = ssub.s32 %s20, %s29
    %p67 = scmp.eq.s32.totalorder %s66, 0
    %s69 = sadd.s32 %s68, 1
    %s70 = scalar_select %p67, %s68, %s69
    %p73 = pneg %p67
    %p74 = scmp.eq.s32.totalorder %s11, 1
    %p75 = por %p73, %p74
    %p76 = scmp.ne.s32.totalorder %s68, %s71
    %p77 = scmp.eq.s32.totalorder %s11, 0
    %p78 = por %p76, %p77
    %p79 = scmp.ne.s32.totalorder %s68, %s71
    %p80 = scmp.eq.s32.totalorder %s16, 1
    %p81 = por %p79, %p80
    %p82 = scmp.ne.s32.totalorder %s71, %s72
    %p83 = scmp.eq.s32.totalorder %s16, 0
    %p84 = por %p82, %p83
    %p85 = scmp.ne.s32.totalorder %s71, %s72
    %p86 = scmp.eq.s32.totalorder %s17, 1
    %p87 = por %p85, %p86
    %p89 = scmp.ne.s32.totalorder %s72, %s88
    %p90 = scmp.eq.s32.totalorder %s17, 0
    %p91 = por %p89, %p90
    %s92 = ssub.s32 %s18, %s37
    %p93 = scmp.eq.s32.totalorder %s92, 0
    %s95 = sadd.s32 %s94, 1
    %s96 = scalar_select %p93, %s94, %s95
    %p99 = pneg %p93
    %p100 = scmp.eq.s32.totalorder %s11, 1
    %p101 = por %p99, %p100
    %p102 = scmp.ne.s32.totalorder %s94, %s97
    %p103 = scmp.eq.s32.totalorder %s11, 0
    %p104 = por %p102, %p103
    %p105 = scmp.ne.s32.totalorder %s94, %s97
    %p106 = scmp.eq.s32.totalorder %s16, 1
    %p107 = por %p105, %p106
    %p108 = scmp.ne.s32.totalorder %s97, %s98
    %p109 = scmp.eq.s32.totalorder %s16, 0
    %p110 = por %p108, %p109
    %p111 = scmp.ne.s32.totalorder %s97, %s98
    %p112 = scmp.eq.s32.totalorder %s17, 1
    %p113 = por %p111, %p112
    %p115 = scmp.ne.s32.totalorder %s98, %s114
    %p116 = scmp.eq.s32.totalorder %s17, 0
    %p117 = por %p115, %p116
    %s118 = ssub.s32 %s18, %s37
    %s119 = ssub.s32 %s20, %s29
    %s120 = sor.u32 %s118, %s119
    %p121 = scmp.eq.s32.totalorder %s120, 0
    %s123 = sadd.s32 %s122, 1
    %s124 = scalar_select %p121, %s122, %s123
    %p127 = pneg %p121
    %p128 = scmp.eq.s32.totalorder %s11, 1
    %p129 = por %p127, %p128
    %p130 = scmp.ne.s32.totalorder %s122, %s125
    %p131 = scmp.eq.s32.totalorder %s11, 0
    %p132 = por %p130, %p131
    %p133 = scmp.ne.s32.totalorder %s122, %s125
    %p134 = scmp.eq.s32.totalorder %s16, 1
    %p135 = por %p133, %p134
    %p136 = scmp.ne.s32.totalorder %s125, %s126
    %p137 = scmp.eq.s32.totalorder %s16, 0
    %p138 = por %p136, %p137
    %p139 = scmp.ne.s32.totalorder %s125, %s126
    %p140 = scmp.eq.s32.totalorder %s17, 1
    %p141 = por %p139, %p140
    %p143 = scmp.ne.s32.totalorder %s126, %s142
    %p144 = scmp.eq.s32.totalorder %s17, 0
    %p145 = por %p143, %p144
    %s146 = ssub.s32 %s18, %s37
    %s147 = ssub.s32 %s20, %s29
    %s148 = sor.u32 %s146, %s147
    %p149 = scmp.eq.s32.totalorder %s148, 0
    %s151 = sadd.s32 %s150, 1
    %s152 = scalar_select %p149, %s150, %s151
    %p155 = pneg %p149
    %p156 = scmp.eq.s32.totalorder %s11, 1
    %p157 = por %p155, %p156
    %p158 = scmp.ne.s32.totalorder %s150, %s153
    %p159 = scmp.eq.s32.totalorder %s11, 0
    %p160 = por %p158, %p159
    %p161 = scmp.ne.s32.totalorder %s150, %s153
    %p162 = scmp.eq.s32.totalorder %s16, 1
    %p163 = por %p161, %p162
    %p164 = scmp.ne.s32.totalorder %s153, %s154
    %p165 = scmp.eq.s32.totalorder %s16, 0
    %p166 = por %p164, %p165
    %p167 = scmp.ne.s32.totalorder %s153, %s154
    %p168 = scmp.eq.s32.totalorder %s17, 1
    %p169 = por %p167, %p168
    %p171 = scmp.ne.s32.totalorder %s154, %s170
    %p172 = scmp.eq.s32.totalorder %s17, 0
    %p173 = por %p171, %p172
    %s174 = ssub.s32 %s18, %s37
    %s175 = ssub.s32 %s19, %s33
    %s176 = sor.u32 %s174, %s175
    %s177 = ssub.s32 %s20, %s29
    %s178 = sor.u32 %s176, %s177
    %p179 = scmp.eq.s32.totalorder %s178, 0
    %s181 = sadd.s32 %s180, 1
    %s182 = scalar_select %p179, %s180, %s181
    %p185 = pneg %p179
    %p186 = scmp.eq.s32.totalorder %s11, 1
    %p187 = por %p185, %p186
    %p188 = scmp.ne.s32.totalorder %s180, %s183
    %p189 = scmp.eq.s32.totalorder %s11, 0
    %p190 = por %p188, %p189
    %p191 = scmp.ne.s32.totalorder %s180, %s183
    %p192 = scmp.eq.s32.totalorder %s16, 1
    %p193 = por %p191, %p192
    %p194 = scmp.ne.s32.totalorder %s183, %s184
    %p195 = scmp.eq.s32.totalorder %s16, 0
    %p196 = por %p194, %p195
    %p197 = scmp.ne.s32.totalorder %s183, %s184
    %p198 = scmp.eq.s32.totalorder %s17, 1
    %p199 = por %p197, %p198
    %p201 = scmp.ne.s32.totalorder %s184, %s200
    %p202 = scmp.eq.s32.totalorder %s17, 0
    %p203 = por %p201, %p202
    %p204 = scmp.le.s32.totalorder 1, %s11
    %p205 = scmp.lt.s32.totalorder %s11, 3
    %p206 = pnand %p204, %p205
    %p207 = pneg %p206
    // Predicated region
    $region9: #{downblock_forward.6} parent=5 // pred_check
      _
    $region10: #{downblock_forward.6} parent=5 // pred_check_branch
      %209 = sbr.rel (%p206) target = $region12
    $region11: #{downblock_forward.6} parent=5 // pred_region
      %s210 = ssub.s32 %s11, 1
      // Predicated region
      $region13: #{downblock_forward.6} parent=11 // pred_check
        %p211 = pneg %p84
      $region14: #{downblock_forward.6} parent=11 // pred_check_branch
        %213 = sbr.rel (%p211) target = $region16
      $region15: #{downblock_forward.6} parent=11 // pred_region
        %p214 = scmp.lt.s32.totalorder %s23, 0
        %s215 = scalar_select %p214, %s23, 0
        %s216 = smul.addr %s215, 4
        %s217 = scalar_lea.vmem %s1, %s216
      $region16: #{downblock_forward.6} parent=11 // pred_fallthru
        _
    $region12: #{downblock_forward.6} parent=5 // pred_fallthru
      _
    %p218 = scmp.lt.s32.totalorder %s11, 2
    // Predicated region
    $region17: #{downblock_forward.6} parent=5 // pred_check
      %p219 = pneg %p218
    $region18: #{downblock_forward.6} parent=5 // pred_check_branch
      %221 = sbr.rel (%p219) target = $region20
    $region19: #{downblock_forward.6} parent=5 // pred_region
      // Predicated region
      $region21: #{downblock_forward.6} parent=19 // pred_check
        %p222 = pneg %p52
      $region22: #{downblock_forward.6} parent=19 // pred_check_branch
        %224 = sbr.rel (%p222) target = $region24
      $region23: #{downblock_forward.6} parent=19 // pred_region
        %s225 = smul.u32 32, %s19
        %p226 = scmp.lt.s32.totalorder %s18, 1
        %s227 = scalar_select %p226, %s18, 1
        %p228 = scmp.lt.s32.totalorder %s225, 31
        %s229 = scalar_select %p228, %s225, 31
        %s230 = smul.addr %s229, 5
        %s231 = smul.addr %s227, 160
        %s232 = sadd.s32 %s230, %s231
        %s233 = smul.addr %s232, 4
        %s234 = scalar_lea.vmem %s0, %s233
        %s235 = smul.u32 32, %s19
      $region24: #{downblock_forward.6} parent=19 // pred_fallthru
        _
      // Predicated region
      $region25: #{downblock_forward.6} parent=19 // pred_check
        %p236 = pneg %p104
      $region26: #{downblock_forward.6} parent=19 // pred_check_branch
        %238 = sbr.rel (%p236) target = $region28
      $region27: #{downblock_forward.6} parent=19 // pred_region
        %p239 = scmp.lt.s32.totalorder %s18, 1
        %s240 = scalar_select %p239, %s18, 1
        %s241 = smul.addr %s240, 5
        %s242 = scalar_lea.vmem %s2, %s241
      $region28: #{downblock_forward.6} parent=19 // pred_fallthru
        _
      // Predicated region
      $region29: #{downblock_forward.6} parent=19 // pred_check
        %p243 = pneg %p132
      $region30: #{downblock_forward.6} parent=19 // pred_check_branch
        %245 = sbr.rel (%p243) target = $region32
      $region31: #{downblock_forward.6} parent=19 // pred_region
        %p246 = scmp.lt.s32.totalorder %s18, 1
        %s247 = scalar_select %p246, %s18, 1
        %p248 = scmp.lt.s32.totalorder %s20, 0
        %s249 = scalar_select %p248, %s20, 0
        %s250 = sadd.s32 %s249, %s247
        %s251 = scalar_lea.vmem %s3, %s250
      $region32: #{downblock_forward.6} parent=19 // pred_fallthru
        _
      // Predicated region
      $region33: #{downblock_forward.6} parent=19 // pred_check
        %p252 = pneg %p160
      $region34: #{downblock_forward.6} parent=19 // pred_check_branch
        %254 = sbr.rel (%p252) target = $region36
      $region35: #{downblock_forward.6} parent=19 // pred_region
        %p255 = scmp.lt.s32.totalorder %s18, 1
        %s256 = scalar_select %p255, %s18, 1
        %p257 = scmp.lt.s32.totalorder %s20, 0
        %s258 = scalar_select %p257, %s20, 0
        %s259 = sadd.s32 %s258, %s256
        %s260 = scalar_lea.vmem %s4, %s259
      $region36: #{downblock_forward.6} parent=19 // pred_fallthru
        _
    $region20: #{downblock_forward.6} parent=5 // pred_fallthru
      _
    %p261 = scmp.le.s32.totalorder 1, %s11
    %p262 = scmp.lt.s32.totalorder %s11, 3
    %p263 = pnand %p261, %p262
    %p264 = pneg %p263
    // Predicated region
    $region37: #{downblock_forward.6} parent=5 // pred_check
      _
    $region38: #{downblock_forward.6} parent=5 // pred_check_branch
      %266 = sbr.rel (%p263) target = $region40
    $region39: #{downblock_forward.6} parent=5 // pred_region
      %s267 = ssub.s32 %s11, 1
      %s268 = smul.u32 32, %s22
      %p269 = scmp.lt.s32.totalorder %s21, 1
      %s270 = scalar_select %p269, %s21, 1
      %p271 = scmp.lt.s32.totalorder %s268, 31
      %s272 = scalar_select %p271, %s268, 31
      %s273 = smul.addr %s272, 5
      %s274 = smul.addr %s270, 160
      %s275 = sadd.s32 %s273, %s274
      %s276 = smul.addr %s275, 4
      %s277 = scalar_lea.vmem %s0, %s276
      %p278 = pneg %p58
      %p279 = pneg %p55
      %p280 = scmp.lt.s32.totalorder %s23, 0
      %s281 = scalar_select %p280, %s23, 0
      %s282 = smul.addr %s281, 4
      %s283 = scalar_lea.vmem %s1, %s282
      %p284 = pneg %p84
      %p285 = pneg %p81
      %p286 = scmp.lt.s32.totalorder %s21, 1
      %s287 = scalar_select %p286, %s21, 1
      %s288 = smul.addr %s287, 5
      %s289 = scalar_lea.vmem %s2, %s288
      %p290 = pneg %p110
      %p291 = pneg %p107
      %p292 = scmp.lt.s32.totalorder %s21, 1
      %s293 = scalar_select %p292, %s21, 1
      %p294 = scmp.lt.s32.totalorder %s23, 0
      %s295 = scalar_select %p294, %s23, 0
      %s296 = sadd.s32 %s295, %s293
      %s297 = scalar_lea.vmem %s3, %s296
      %p298 = pneg %p138
      %p299 = pneg %p135
      %p300 = scmp.lt.s32.totalorder %s21, 1
      %s301 = scalar_select %p300, %s21, 1
      %p302 = scmp.lt.s32.totalorder %s23, 0
      %s303 = scalar_select %p302, %s23, 0
      %s304 = sadd.s32 %s303, %s301
      %s305 = scalar_lea.vmem %s4, %s304
      %p306 = pneg %p166
      %p307 = pneg %p163
      %p308 = pneg %p196
      %p309 = pneg %p193
      %s310 = smul.u32 32, %s22
      %p311 = scmp.lt.s32.totalorder %s21, 1
      %s312 = scalar_select %p311, %s21, 1
      %p313 = scmp.lt.s32.totalorder %s310, 31
      %s314 = scalar_select %p313, %s310, 31
      %p315 = scmp.lt.s32.totalorder %s23, 0
      %s316 = scalar_select %p315, %s23, 0
      %s317 = sadd.s32 %s316, %s314
      %s318 = smul.addr %s312, 32
      %s319 = sadd.s32 %s317, %s318
      %s320 = smul.addr %s319, 4
      %s321 = scalar_lea.vmem %s5, %s320
      %s322 = smul.u32 32, %s22
      %p323 = scmp.lt.s32.totalorder %s21, 1
      %s324 = scalar_select %p323, %s21, 1
      %p325 = scmp.lt.s32.totalorder %s322, 31
      %s326 = scalar_select %p325, %s322, 31
      %s327 = smul.addr %s326, 5
      %s328 = smul.addr %s324, 160
      %s329 = sadd.s32 %s327, %s328
      %s330 = smul.addr %s329, 4
      %s331 = scalar_lea.vmem %s0, %s330
      %s332 = smul.u32 32, %s22
      %p333 = scmp.lt.s32.totalorder %s23, 0
      %s334 = scalar_select %p333, %s23, 0
      %s335 = smul.addr %s334, 4
      %s336 = scalar_lea.vmem %s1, %s335
      %p337 = scmp.lt.s32.totalorder %s21, 1
      %s338 = scalar_select %p337, %s21, 1
      %s339 = smul.addr %s338, 5
      %s340 = scalar_lea.vmem %s2, %s339
      %p341 = scmp.lt.s32.totalorder %s21, 1
      %s342 = scalar_select %p341, %s21, 1
      %p343 = scmp.lt.s32.totalorder %s23, 0
      %s344 = scalar_select %p343, %s23, 0
      %s345 = sadd.s32 %s344, %s342
      %s346 = scalar_lea.vmem %s3, %s345
      %p347 = scmp.lt.s32.totalorder %s21, 1
      %s348 = scalar_select %p347, %s21, 1
      %p349 = scmp.lt.s32.totalorder %s23, 0
      %s350 = scalar_select %p349, %s23, 0
      %s351 = sadd.s32 %s350, %s348
      %s352 = scalar_lea.vmem %s4, %s351
      %s353 = smul.u32 32, %s22
      %p354 = scmp.lt.s32.totalorder %s21, 1
      %s355 = scalar_select %p354, %s21, 1
      %p356 = scmp.lt.s32.totalorder %s353, 31
      %s357 = scalar_select %p356, %s353, 31
      %p358 = scmp.lt.s32.totalorder %s23, 0
      %s359 = scalar_select %p358, %s23, 0
      %s360 = sadd.s32 %s359, %s357
      %s361 = smul.addr %s355, 32
      %s362 = sadd.s32 %s360, %s361
      %s363 = smul.addr %s362, 4
      %s364 = scalar_lea.vmem %s5, %s363
      %s365 = smul.u32 32, %s22
      %v367 = vld [vmem:[%s331] sm:$0xff]
      %v368 = vld [vmem:[%s331 + $0x8] sm:$0xff]
      %v369 = vld [vmem:[%s331 + $0x10] sm:$0xf]
      %v370 = vld [vmem:[%s331 + $0x14] sm:$0xff]
      %v371 = vld [vmem:[%s331 + $0x1c] sm:$0xff]
      %v372 = vld [vmem:[%s331 + $0x24] sm:$0xf]
      %v373 = vld [vmem:[%s331 + $0x28] sm:$0xff]
      %v374 = vld [vmem:[%s331 + $0x30] sm:$0xff]
      %v375 = vld [vmem:[%s331 + $0x38] sm:$0xf]
      %v376 = vld [vmem:[%s331 + $0x3c] sm:$0xff]
      %v377 = vld [vmem:[%s331 + $0x44] sm:$0xff]
      %v378 = vld [vmem:[%s331 + $0x4c] sm:$0xf]
      %v379 = vld [vmem:[%s331 + $0x50] sm:$0xff]
      %v380 = vld [vmem:[%s331 + $0x58] sm:$0xff]
      %v381 = vld [vmem:[%s331 + $0x60] sm:$0xf]
      %v382 = vld [vmem:[%s331 + $0x64] sm:$0xff]
      %v383 = vld [vmem:[%s331 + $0x6c] sm:$0xff]
      %v384 = vld [vmem:[%s331 + $0x74] sm:$0xf]
      %v385 = vld [vmem:[%s331 + $0x78] sm:$0xff]
      %v386 = vld [vmem:[%s331 + $0x80] sm:$0xff]
      %v387 = vld [vmem:[%s331 + $0x88] sm:$0xf]
      %v388 = vld [vmem:[%s331 + $0x8c] sm:$0xff]
      %v389 = vld [vmem:[%s331 + $0x94] sm:$0xff]
      %v390 = vld [vmem:[%s331 + $0x9c] sm:$0xf]
      %v391 = vld [vmem:[%s331 + $0xa0] sm:$0xff]
      %v392 = vld [vmem:[%s331 + $0xa8] sm:$0xff]
      %v393 = vld [vmem:[%s331 + $0xb0] sm:$0xf]
      %v394 = vld [vmem:[%s331 + $0xb4] sm:$0xff]
      %v395 = vld [vmem:[%s331 + $0xbc] sm:$0xff]
      %v396 = vld [vmem:[%s331 + $0xc4] sm:$0xf]
      %v397 = vld [vmem:[%s331 + $0xc8] sm:$0xff]
      %v398 = vld [vmem:[%s331 + $0xd0] sm:$0xff]
      %v399 = vld [vmem:[%s331 + $0xd8] sm:$0xf]
      %v400 = vld [vmem:[%s331 + $0xdc] sm:$0xff]
      %v401 = vld [vmem:[%s331 + $0xe4] sm:$0xff]
      %v402 = vld [vmem:[%s331 + $0xec] sm:$0xf]
      %v403 = vld [vmem:[%s331 + $0xf0] sm:$0xff]
      %v404 = vld [vmem:[%s331 + $0xf8] sm:$0xff]
      %v405 = vld [vmem:[%s331 + $0x100] sm:$0xf]
      %v406 = vld [vmem:[%s331 + $0x104] sm:$0xff]
      %v407 = vld [vmem:[%s331 + $0x10c] sm:$0xff]
      %v408 = vld [vmem:[%s331 + $0x114] sm:$0xf]
      %v409 = vld [vmem:[%s331 + $0x118] sm:$0xff]
      %v410 = vld [vmem:[%s331 + $0x120] sm:$0xff]
      %v411 = vld [vmem:[%s331 + $0x128] sm:$0xf]
      %v412 = vld [vmem:[%s331 + $0x12c] sm:$0xff]
      %v413 = vld [vmem:[%s331 + $0x134] sm:$0xff]
      %v414 = vld [vmem:[%s331 + $0x13c] sm:$0xf]
      %v415 = vld [vmem:[%s331 + $0x140] sm:$0xff]
      %v416 = vld [vmem:[%s331 + $0x148] sm:$0xff]
      %v417 = vld [vmem:[%s331 + $0x150] sm:$0xf]
      %v418 = vld [vmem:[%s331 + $0x154] sm:$0xff]
      %v419 = vld [vmem:[%s331 + $0x15c] sm:$0xff]
      %v420 = vld [vmem:[%s331 + $0x164] sm:$0xf]
      %v421 = vld [vmem:[%s331 + $0x168] sm:$0xff]
      %v422 = vld [vmem:[%s331 + $0x170] sm:$0xff]
      %v423 = vld [vmem:[%s331 + $0x178] sm:$0xf]
      %v424 = vld [vmem:[%s331 + $0x17c] sm:$0xff]
      %v425 = vld [vmem:[%s331 + $0x184] sm:$0xff]
      %v426 = vld [vmem:[%s331 + $0x18c] sm:$0xf]
      %v427 = vld [vmem:[%s331 + $0x190] sm:$0xff]
      %v428 = vld [vmem:[%s331 + $0x198] sm:$0xff]
      %v429 = vld [vmem:[%s331 + $0x1a0] sm:$0xf]
      %v430 = vld [vmem:[%s331 + $0x1a4] sm:$0xff]
      %v431 = vld [vmem:[%s331 + $0x1ac] sm:$0xff]
      %v432 = vld [vmem:[%s331 + $0x1b4] sm:$0xf]
      %v433 = vld [vmem:[%s331 + $0x1b8] sm:$0xff]
      %v434 = vld [vmem:[%s331 + $0x1c0] sm:$0xff]
      %v435 = vld [vmem:[%s331 + $0x1c8] sm:$0xf]
      %v436 = vld [vmem:[%s331 + $0x1cc] sm:$0xff]
      %v437 = vld [vmem:[%s331 + $0x1d4] sm:$0xff]
      %v438 = vld [vmem:[%s331 + $0x1dc] sm:$0xf]
      %v439 = vld [vmem:[%s331 + $0x1e0] sm:$0xff]
      %v440 = vld [vmem:[%s331 + $0x1e8] sm:$0xff]
      %v441 = vld [vmem:[%s331 + $0x1f0] sm:$0xf]
      %v442 = vld [vmem:[%s331 + $0x1f4] sm:$0xff]
      %v443 = vld [vmem:[%s331 + $0x1fc] sm:$0xff]
      %v444 = vld [vmem:[%s331 + $0x204] sm:$0xf]
      %v445 = vld [vmem:[%s331 + $0x208] sm:$0xff]
      %v446 = vld [vmem:[%s331 + $0x210] sm:$0xff]
      %v447 = vld [vmem:[%s331 + $0x218] sm:$0xf]
      %v448 = vld [vmem:[%s331 + $0x21c] sm:$0xff]
      %v449 = vld [vmem:[%s331 + $0x224] sm:$0xff]
      %v450 = vld [vmem:[%s331 + $0x22c] sm:$0xf]
      %v451 = vld [vmem:[%s331 + $0x230] sm:$0xff]
      %v452 = vld [vmem:[%s331 + $0x238] sm:$0xff]
      %v453 = vld [vmem:[%s331 + $0x240] sm:$0xf]
      %v454 = vld [vmem:[%s331 + $0x244] sm:$0xff]
      %v455 = vld [vmem:[%s331 + $0x24c] sm:$0xff]
      %v456 = vld [vmem:[%s331 + $0x254] sm:$0xf]
      %v457 = vld [vmem:[%s331 + $0x258] sm:$0xff]
      %v458 = vld [vmem:[%s331 + $0x260] sm:$0xff]
      %v459 = vld [vmem:[%s331 + $0x268] sm:$0xf]
      %v460 = vld [vmem:[%s331 + $0x26c] sm:$0xff]
      %v461 = vld [vmem:[%s331 + $0x274] sm:$0xff]
      %v462 = vld [vmem:[%s331 + $0x27c] sm:$0xf]
      %v463 = vunpack.c.l.bf16 %v367
      %v464 = vunpack.c.h.bf16 %v367
      %v465 = vunpack.c.l.bf16 %v368
      %v466 = vunpack.c.h.bf16 %v368
      %v467 = vunpack.c.l.bf16 %v369
      %v468 = vunpack.c.l.bf16 %v370
      %v469 = vunpack.c.h.bf16 %v370
      %v470 = vunpack.c.l.bf16 %v371
      %v471 = vunpack.c.h.bf16 %v371
      %v472 = vunpack.c.l.bf16 %v372
      %v473 = vunpack.c.l.bf16 %v373
      %v474 = vunpack.c.h.bf16 %v373
      %v475 = vunpack.c.l.bf16 %v374
      %v476 = vunpack.c.h.bf16 %v374
      %v477 = vunpack.c.l.bf16 %v375
      %v478 = vunpack.c.l.bf16 %v376
      %v479 = vunpack.c.h.bf16 %v376
      %v480 = vunpack.c.l.bf16 %v377
      %v481 = vunpack.c.h.bf16 %v377
      %v482 = vunpack.c.l.bf16 %v378
      %v483 = vunpack.c.l.bf16 %v379
      %v484 = vunpack.c.h.bf16 %v379
      %v485 = vunpack.c.l.bf16 %v380
      %v486 = vunpack.c.h.bf16 %v380
      %v487 = vunpack.c.l.bf16 %v381
      %v488 = vunpack.c.l.bf16 %v382
      %v489 = vunpack.c.h.bf16 %v382
      %v490 = vunpack.c.l.bf16 %v383
      %v491 = vunpack.c.h.bf16 %v383
      %v492 = vunpack.c.l.bf16 %v384
      %v493 = vunpack.c.l.bf16 %v385
      %v494 = vunpack.c.h.bf16 %v385
      %v495 = vunpack.c.l.bf16 %v386
      %v496 = vunpack.c.h.bf16 %v386
      %v497 = vunpack.c.l.bf16 %v387
      %v498 = vunpack.c.l.bf16 %v388
      %v499 = vunpack.c.h.bf16 %v388
      %v500 = vunpack.c.l.bf16 %v389
      %v501 = vunpack.c.h.bf16 %v389
      %v502 = vunpack.c.l.bf16 %v390
      %v503 = vunpack.c.l.bf16 %v391
      %v504 = vunpack.c.h.bf16 %v391
      %v505 = vunpack.c.l.bf16 %v392
      %v506 = vunpack.c.h.bf16 %v392
      %v507 = vunpack.c.l.bf16 %v393
      %v508 = vunpack.c.l.bf16 %v394
      %v509 = vunpack.c.h.bf16 %v394
      %v510 = vunpack.c.l.bf16 %v395
      %v511 = vunpack.c.h.bf16 %v395
      %v512 = vunpack.c.l.bf16 %v396
      %v513 = vunpack.c.l.bf16 %v397
      %v514 = vunpack.c.h.bf16 %v397
      %v515 = vunpack.c.l.bf16 %v398
      %v516 = vunpack.c.h.bf16 %v398
      %v517 = vunpack.c.l.bf16 %v399
      %v518 = vunpack.c.l.bf16 %v400
      %v519 = vunpack.c.h.bf16 %v400
      %v520 = vunpack.c.l.bf16 %v401
      %v521 = vunpack.c.h.bf16 %v401
      %v522 = vunpack.c.l.bf16 %v402
      %v523 = vunpack.c.l.bf16 %v403
      %v524 = vunpack.c.h.bf16 %v403
      %v525 = vunpack.c.l.bf16 %v404
      %v526 = vunpack.c.h.bf16 %v404
      %v527 = vunpack.c.l.bf16 %v405
      %v528 = vunpack.c.l.bf16 %v406
      %v529 = vunpack.c.h.bf16 %v406
      %v530 = vunpack.c.l.bf16 %v407
      %v531 = vunpack.c.h.bf16 %v407
      %v532 = vunpack.c.l.bf16 %v408
      %v533 = vunpack.c.l.bf16 %v409
      %v534 = vunpack.c.h.bf16 %v409
      %v535 = vunpack.c.l.bf16 %v410
      %v536 = vunpack.c.h.bf16 %v410
      %v537 = vunpack.c.l.bf16 %v411
      %v538 = vunpack.c.l.bf16 %v412
      %v539 = vunpack.c.h.bf16 %v412
      %v540 = vunpack.c.l.bf16 %v413
      %v541 = vunpack.c.h.bf16 %v413
      %v542 = vunpack.c.l.bf16 %v414
      %v543 = vunpack.c.l.bf16 %v415
      %v544 = vunpack.c.h.bf16 %v415
      %v545 = vunpack.c.l.bf16 %v416
      %v546 = vunpack.c.h.bf16 %v416
      %v547 = vunpack.c.l.bf16 %v417
      %v548 = vunpack.c.l.bf16 %v418
      %v549 = vunpack.c.h.bf16 %v418
      %v550 = vunpack.c.l.bf16 %v419
      %v551 = vunpack.c.h.bf16 %v419
      %v552 = vunpack.c.l.bf16 %v420
      %v553 = vunpack.c.l.bf16 %v421
      %v554 = vunpack.c.h.bf16 %v421
      %v555 = vunpack.c.l.bf16 %v422
      %v556 = vunpack.c.h.bf16 %v422
      %v557 = vunpack.c.l.bf16 %v423
      %v558 = vunpack.c.l.bf16 %v424
      %v559 = vunpack.c.h.bf16 %v424
      %v560 = vunpack.c.l.bf16 %v425
      %v561 = vunpack.c.h.bf16 %v425
      %v562 = vunpack.c.l.bf16 %v426
      %v563 = vunpack.c.l.bf16 %v427
      %v564 = vunpack.c.h.bf16 %v427
      %v565 = vunpack.c.l.bf16 %v428
      %v566 = vunpack.c.h.bf16 %v428
      %v567 = vunpack.c.l.bf16 %v429
      %v568 = vunpack.c.l.bf16 %v430
      %v569 = vunpack.c.h.bf16 %v430
      %v570 = vunpack.c.l.bf16 %v431
      %v571 = vunpack.c.h.bf16 %v431
      %v572 = vunpack.c.l.bf16 %v432
      %v573 = vunpack.c.l.bf16 %v433
      %v574 = vunpack.c.h.bf16 %v433
      %v575 = vunpack.c.l.bf16 %v434
      %v576 = vunpack.c.h.bf16 %v434
      %v577 = vunpack.c.l.bf16 %v435
      %v578 = vunpack.c.l.bf16 %v436
      %v579 = vunpack.c.h.bf16 %v436
      %v580 = vunpack.c.l.bf16 %v437
      %v581 = vunpack.c.h.bf16 %v437
      %v582 = vunpack.c.l.bf16 %v438
      %v583 = vunpack.c.l.bf16 %v439
      %v584 = vunpack.c.h.bf16 %v439
      %v585 = vunpack.c.l.bf16 %v440
      %v586 = vunpack.c.h.bf16 %v440
      %v587 = vunpack.c.l.bf16 %v441
      %v588 = vunpack.c.l.bf16 %v442
      %v589 = vunpack.c.h.bf16 %v442
      %v590 = vunpack.c.l.bf16 %v443
      %v591 = vunpack.c.h.bf16 %v443
      %v592 = vunpack.c.l.bf16 %v444
      %v593 = vunpack.c.l.bf16 %v445
      %v594 = vunpack.c.h.bf16 %v445
      %v595 = vunpack.c.l.bf16 %v446
      %v596 = vunpack.c.h.bf16 %v446
      %v597 = vunpack.c.l.bf16 %v447
      %v598 = vunpack.c.l.bf16 %v448
      %v599 = vunpack.c.h.bf16 %v448
      %v600 = vunpack.c.l.bf16 %v449
      %v601 = vunpack.c.h.bf16 %v449
      %v602 = vunpack.c.l.bf16 %v450
      %v603 = vunpack.c.l.bf16 %v451
      %v604 = vunpack.c.h.bf16 %v451
      %v605 = vunpack.c.l.bf16 %v452
      %v606 = vunpack.c.h.bf16 %v452
      %v607 = vunpack.c.l.bf16 %v453
      %v608 = vunpack.c.l.bf16 %v454
      %v609 = vunpack.c.h.bf16 %v454
      %v610 = vunpack.c.l.bf16 %v455
      %v611 = vunpack.c.h.bf16 %v455
      %v612 = vunpack.c.l.bf16 %v456
      %v613 = vunpack.c.l.bf16 %v457
      %v614 = vunpack.c.h.bf16 %v457
      %v615 = vunpack.c.l.bf16 %v458
      %v616 = vunpack.c.h.bf16 %v458
      %v617 = vunpack.c.l.bf16 %v459
      %v618 = vunpack.c.l.bf16 %v460
      %v619 = vunpack.c.h.bf16 %v460
      %v620 = vunpack.c.l.bf16 %v461
      %v621 = vunpack.c.h.bf16 %v461
      %v622 = vunpack.c.l.bf16 %v462
      %v623 = vld [vmem:[%s340] sm:$0x1f]
      %v625 = vperm.slane %v623, 0
      %v626 = vperm.slane %v623, 1
      %v627 = vperm.slane %v623, 2
      %v628 = vperm.slane %v623, 3
      %v629 = vperm.slane %v623, 4
      %v635 = vmul.f32 %v463, %v625
      %v636 = vmul.f32 %v464, %v626
      %v637 = vmul.f32 %v465, %v627
      %v638 = vmul.f32 %v466, %v628
      %v639 = vmul.f32 %v467, %v629
      %v640 = vmul.f32 %v468, %v625
      %v641 = vmul.f32 %v469, %v626
      %v642 = vmul.f32 %v470, %v627
      %v643 = vmul.f32 %v471, %v628
      %v644 = vmul.f32 %v472, %v629
      %v645 = vmul.f32 %v473, %v625
      %v646 = vmul.f32 %v474, %v626
      %v647 = vmul.f32 %v475, %v627
      %v648 = vmul.f32 %v476, %v628
      %v649 = vmul.f32 %v477, %v629
      %v650 = vmul.f32 %v478, %v625
      %v651 = vmul.f32 %v479, %v626
      %v652 = vmul.f32 %v480, %v627
      %v653 = vmul.f32 %v481, %v628
      %v654 = vmul.f32 %v482, %v629
      %v655 = vmul.f32 %v483, %v625
      %v656 = vmul.f32 %v484, %v626
      %v657 = vmul.f32 %v485, %v627
      %v658 = vmul.f32 %v486, %v628
      %v659 = vmul.f32 %v487, %v629
      %v660 = vmul.f32 %v488, %v625
      %v661 = vmul.f32 %v489, %v626
      %v662 = vmul.f32 %v490, %v627
      %v663 = vmul.f32 %v491, %v628
      %v664 = vmul.f32 %v492, %v629
      %v665 = vmul.f32 %v493, %v625
      %v666 = vmul.f32 %v494, %v626
      %v667 = vmul.f32 %v495, %v627
      %v668 = vmul.f32 %v496, %v628
      %v669 = vmul.f32 %v497, %v629
      %v670 = vmul.f32 %v498, %v625
      %v671 = vmul.f32 %v499, %v626
      %v672 = vmul.f32 %v500, %v627
      %v673 = vmul.f32 %v501, %v628
      %v674 = vmul.f32 %v502, %v629
      %v675 = vmul.f32 %v503, %v625
      %v676 = vmul.f32 %v504, %v626
      %v677 = vmul.f32 %v505, %v627
      %v678 = vmul.f32 %v506, %v628
      %v679 = vmul.f32 %v507, %v629
      %v680 = vmul.f32 %v508, %v625
      %v681 = vmul.f32 %v509, %v626
      %v682 = vmul.f32 %v510, %v627
      %v683 = vmul.f32 %v511, %v628
      %v684 = vmul.f32 %v512, %v629
      %v685 = vmul.f32 %v513, %v625
      %v686 = vmul.f32 %v514, %v626
      %v687 = vmul.f32 %v515, %v627
      %v688 = vmul.f32 %v516, %v628
      %v689 = vmul.f32 %v517, %v629
      %v690 = vmul.f32 %v518, %v625
      %v691 = vmul.f32 %v519, %v626
      %v692 = vmul.f32 %v520, %v627
      %v693 = vmul.f32 %v521, %v628
      %v694 = vmul.f32 %v522, %v629
      %v695 = vmul.f32 %v523, %v625
      %v696 = vmul.f32 %v524, %v626
      %v697 = vmul.f32 %v525, %v627
      %v698 = vmul.f32 %v526, %v628
      %v699 = vmul.f32 %v527, %v629
      %v700 = vmul.f32 %v528, %v625
      %v701 = vmul.f32 %v529, %v626
      %v702 = vmul.f32 %v530, %v627
      %v703 = vmul.f32 %v531, %v628
      %v704 = vmul.f32 %v532, %v629
      %v705 = vmul.f32 %v533, %v625
      %v706 = vmul.f32 %v534, %v626
      %v707 = vmul.f32 %v535, %v627
      %v708 = vmul.f32 %v536, %v628
      %v709 = vmul.f32 %v537, %v629
      %v710 = vmul.f32 %v538, %v625
      %v711 = vmul.f32 %v539, %v626
      %v712 = vmul.f32 %v540, %v627
      %v713 = vmul.f32 %v541, %v628
      %v714 = vmul.f32 %v542, %v629
      %v715 = vmul.f32 %v543, %v625
      %v716 = vmul.f32 %v544, %v626
      %v717 = vmul.f32 %v545, %v627
      %v718 = vmul.f32 %v546, %v628
      %v719 = vmul.f32 %v547, %v629
      %v720 = vmul.f32 %v548, %v625
      %v721 = vmul.f32 %v549, %v626
      %v722 = vmul.f32 %v550, %v627
      %v723 = vmul.f32 %v551, %v628
      %v724 = vmul.f32 %v552, %v629
      %v725 = vmul.f32 %v553, %v625
      %v726 = vmul.f32 %v554, %v626
      %v727 = vmul.f32 %v555, %v627
      %v728 = vmul.f32 %v556, %v628
      %v729 = vmul.f32 %v557, %v629
      %v730 = vmul.f32 %v558, %v625
      %v731 = vmul.f32 %v559, %v626
      %v732 = vmul.f32 %v560, %v627
      %v733 = vmul.f32 %v561, %v628
      %v734 = vmul.f32 %v562, %v629
      %v735 = vmul.f32 %v563, %v625
      %v736 = vmul.f32 %v564, %v626
      %v737 = vmul.f32 %v565, %v627
      %v738 = vmul.f32 %v566, %v628
      %v739 = vmul.f32 %v567, %v629
      %v740 = vmul.f32 %v568, %v625
      %v741 = vmul.f32 %v569, %v626
      %v742 = vmul.f32 %v570, %v627
      %v743 = vmul.f32 %v571, %v628
      %v744 = vmul.f32 %v572, %v629
      %v745 = vmul.f32 %v573, %v625
      %v746 = vmul.f32 %v574, %v626
      %v747 = vmul.f32 %v575, %v627
      %v748 = vmul.f32 %v576, %v628
      %v749 = vmul.f32 %v577, %v629
      %v750 = vmul.f32 %v578, %v625
      %v751 = vmul.f32 %v579, %v626
      %v752 = vmul.f32 %v580, %v627
      %v753 = vmul.f32 %v581, %v628
      %v754 = vmul.f32 %v582, %v629
      %v755 = vmul.f32 %v583, %v625
      %v756 = vmul.f32 %v584, %v626
      %v757 = vmul.f32 %v585, %v627
      %v758 = vmul.f32 %v586, %v628
      %v759 = vmul.f32 %v587, %v629
      %v760 = vmul.f32 %v588, %v625
      %v761 = vmul.f32 %v589, %v626
      %v762 = vmul.f32 %v590, %v627
      %v763 = vmul.f32 %v591, %v628
      %v764 = vmul.f32 %v592, %v629
      %v765 = vmul.f32 %v593, %v625
      %v766 = vmul.f32 %v594, %v626
      %v767 = vmul.f32 %v595, %v627
      %v768 = vmul.f32 %v596, %v628
      %v769 = vmul.f32 %v597, %v629
      %v770 = vmul.f32 %v598, %v625
      %v771 = vmul.f32 %v599, %v626
      %v772 = vmul.f32 %v600, %v627
      %v773 = vmul.f32 %v601, %v628
      %v774 = vmul.f32 %v602, %v629
      %v775 = vmul.f32 %v603, %v625
      %v776 = vmul.f32 %v604, %v626
      %v777 = vmul.f32 %v605, %v627
      %v778 = vmul.f32 %v606, %v628
      %v779 = vmul.f32 %v607, %v629
      %v780 = vmul.f32 %v608, %v625
      %v781 = vmul.f32 %v609, %v626
      %v782 = vmul.f32 %v610, %v627
      %v783 = vmul.f32 %v611, %v628
      %v784 = vmul.f32 %v612, %v629
      %v785 = vmul.f32 %v613, %v625
      %v786 = vmul.f32 %v614, %v626
      %v787 = vmul.f32 %v615, %v627
      %v788 = vmul.f32 %v616, %v628
      %v789 = vmul.f32 %v617, %v629
      %v790 = vmul.f32 %v618, %v625
      %v791 = vmul.f32 %v619, %v626
      %v792 = vmul.f32 %v620, %v627
      %v793 = vmul.f32 %v621, %v628
      %v794 = vmul.f32 %v622, %v629
      %v795 = vpack.c.bf16 %v640, %v635
      %v796 = vpack.c.bf16 %v641, %v636
      %v797 = vpack.c.bf16 %v642, %v637
      %v798 = vpack.c.bf16 %v643, %v638
      %v799 = vpack.c.bf16 %v644, %v639
      %v800 = vpack.c.bf16 %v650, %v645
      %v801 = vpack.c.bf16 %v651, %v646
      %v802 = vpack.c.bf16 %v652, %v647
      %v803 = vpack.c.bf16 %v653, %v648
      %v804 = vpack.c.bf16 %v654, %v649
      %v805 = vpack.c.bf16 %v660, %v655
      %v806 = vpack.c.bf16 %v661, %v656
      %v807 = vpack.c.bf16 %v662, %v657
      %v808 = vpack.c.bf16 %v663, %v658
      %v809 = vpack.c.bf16 %v664, %v659
      %v810 = vpack.c.bf16 %v670, %v665
      %v811 = vpack.c.bf16 %v671, %v666
      %v812 = vpack.c.bf16 %v672, %v667
      %v813 = vpack.c.bf16 %v673, %v668
      %v814 = vpack.c.bf16 %v674, %v669
      %v815 = vpack.c.bf16 %v680, %v675
      %v816 = vpack.c.bf16 %v681, %v676
      %v817 = vpack.c.bf16 %v682, %v677
      %v818 = vpack.c.bf16 %v683, %v678
      %v819 = vpack.c.bf16 %v684, %v679
      %v820 = vpack.c.bf16 %v690, %v685
      %v821 = vpack.c.bf16 %v691, %v686
      %v822 = vpack.c.bf16 %v692, %v687
      %v823 = vpack.c.bf16 %v693, %v688
      %v824 = vpack.c.bf16 %v694, %v689
      %v825 = vpack.c.bf16 %v700, %v695
      %v826 = vpack.c.bf16 %v701, %v696
      %v827 = vpack.c.bf16 %v702, %v697
      %v828 = vpack.c.bf16 %v703, %v698
      %v829 = vpack.c.bf16 %v704, %v699
      %v830 = vpack.c.bf16 %v710, %v705
      %v831 = vpack.c.bf16 %v711, %v706
      %v832 = vpack.c.bf16 %v712, %v707
      %v833 = vpack.c.bf16 %v713, %v708
      %v834 = vpack.c.bf16 %v714, %v709
      %v835 = vpack.c.bf16 %v720, %v715
      %v836 = vpack.c.bf16 %v721, %v716
      %v837 = vpack.c.bf16 %v722, %v717
      %v838 = vpack.c.bf16 %v723, %v718
      %v839 = vpack.c.bf16 %v724, %v719
      %v840 = vpack.c.bf16 %v730, %v725
      %v841 = vpack.c.bf16 %v731, %v726
      %v842 = vpack.c.bf16 %v732, %v727
      %v843 = vpack.c.bf16 %v733, %v728
      %v844 = vpack.c.bf16 %v734, %v729
      %v845 = vpack.c.bf16 %v740, %v735
      %v846 = vpack.c.bf16 %v741, %v736
      %v847 = vpack.c.bf16 %v742, %v737
      %v848 = vpack.c.bf16 %v743, %v738
      %v849 = vpack.c.bf16 %v744, %v739
      %v850 = vpack.c.bf16 %v750, %v745
      %v851 = vpack.c.bf16 %v751, %v746
      %v852 = vpack.c.bf16 %v752, %v747
      %v853 = vpack.c.bf16 %v753, %v748
      %v854 = vpack.c.bf16 %v754, %v749
      %v855 = vpack.c.bf16 %v760, %v755
      %v856 = vpack.c.bf16 %v761, %v756
      %v857 = vpack.c.bf16 %v762, %v757
      %v858 = vpack.c.bf16 %v763, %v758
      %v859 = vpack.c.bf16 %v764, %v759
      %v860 = vpack.c.bf16 %v770, %v765
      %v861 = vpack.c.bf16 %v771, %v766
      %v862 = vpack.c.bf16 %v772, %v767
      %v863 = vpack.c.bf16 %v773, %v768
      %v864 = vpack.c.bf16 %v774, %v769
      %v865 = vpack.c.bf16 %v780, %v775
      %v866 = vpack.c.bf16 %v781, %v776
      %v867 = vpack.c.bf16 %v782, %v777
      %v868 = vpack.c.bf16 %v783, %v778
      %v869 = vpack.c.bf16 %v784, %v779
      %v870 = vpack.c.bf16 %v790, %v785
      %v871 = vpack.c.bf16 %v791, %v786
      %v872 = vpack.c.bf16 %v792, %v787
      %v873 = vpack.c.bf16 %v793, %v788
      %v874 = vpack.c.bf16 %v794, %v789
      %v875 = vld [vmem:[%s336] sm:$0xf]
      %v876 = vld [vmem:[%s336 + $0x4] sm:$0xf]
      %v877 = vld [vmem:[%s336 + $0x8] sm:$0xf]
      %v878 = vld [vmem:[%s336 + $0xc] sm:$0xf]
      %v879 = vld [vmem:[%s336 + $0x10] sm:$0xf]
      %v880 = vld [vmem:[%s336 + $0x14] sm:$0xf]
      %v881 = vld [vmem:[%s336 + $0x18] sm:$0xf]
      %v882 = vld [vmem:[%s336 + $0x1c] sm:$0xf]
      %v883 = vld [vmem:[%s336 + $0x20] sm:$0xf]
      %v884 = vld [vmem:[%s336 + $0x24] sm:$0xf]
      %v885 = vld [vmem:[%s336 + $0x28] sm:$0xf]
      %v886 = vld [vmem:[%s336 + $0x2c] sm:$0xf]
      %v887 = vld [vmem:[%s336 + $0x30] sm:$0xf]
      %v888 = vld [vmem:[%s336 + $0x34] sm:$0xf]
      %v889 = vld [vmem:[%s336 + $0x38] sm:$0xf]
      %v890 = vld [vmem:[%s336 + $0x3c] sm:$0xf]
      %v891 = vld [vmem:[%s336 + $0x40] sm:$0xf]
      %v892 = vld [vmem:[%s336 + $0x44] sm:$0xf]
      %v893 = vld [vmem:[%s336 + $0x48] sm:$0xf]
      %v894 = vld [vmem:[%s336 + $0x4c] sm:$0xf]
      %v895 = vld [vmem:[%s336 + $0x50] sm:$0xf]
      %v896 = vld [vmem:[%s336 + $0x54] sm:$0xf]
      %v897 = vld [vmem:[%s336 + $0x58] sm:$0xf]
      %v898 = vld [vmem:[%s336 + $0x5c] sm:$0xf]
      %v899 = vld [vmem:[%s336 + $0x60] sm:$0xf]
      %v900 = vld [vmem:[%s336 + $0x64] sm:$0xf]
      %v901 = vld [vmem:[%s336 + $0x68] sm:$0xf]
      %v902 = vld [vmem:[%s336 + $0x6c] sm:$0xf]
      %v903 = vld [vmem:[%s336 + $0x70] sm:$0xf]
      %v904 = vld [vmem:[%s336 + $0x74] sm:$0xf]
      %v905 = vld [vmem:[%s336 + $0x78] sm:$0xf]
      %v906 = vld [vmem:[%s336 + $0x7c] sm:$0xf]
      %v907 = vld [vmem:[%s336 + $0x80] sm:$0xf]
      %v908 = vld [vmem:[%s336 + $0x84] sm:$0xf]
      %v909 = vld [vmem:[%s336 + $0x88] sm:$0xf]
      %v910 = vld [vmem:[%s336 + $0x8c] sm:$0xf]
      %v911 = vld [vmem:[%s336 + $0x90] sm:$0xf]
      %v912 = vld [vmem:[%s336 + $0x94] sm:$0xf]
      %v913 = vld [vmem:[%s336 + $0x98] sm:$0xf]
      %v914 = vld [vmem:[%s336 + $0x9c] sm:$0xf]
      %v915 = vld [vmem:[%s336 + $0xa0] sm:$0xf]
      %v916 = vld [vmem:[%s336 + $0xa4] sm:$0xf]
      %v917 = vld [vmem:[%s336 + $0xa8] sm:$0xf]
      %v918 = vld [vmem:[%s336 + $0xac] sm:$0xf]
      %v919 = vld [vmem:[%s336 + $0xb0] sm:$0xf]
      %v920 = vld [vmem:[%s336 + $0xb4] sm:$0xf]
      %v921 = vld [vmem:[%s336 + $0xb8] sm:$0xf]
      %v922 = vld [vmem:[%s336 + $0xbc] sm:$0xf]
      %v923 = vld [vmem:[%s336 + $0xc0] sm:$0xf]
      %v924 = vld [vmem:[%s336 + $0xc4] sm:$0xf]
      %v925 = vld [vmem:[%s336 + $0xc8] sm:$0xf]
      %v926 = vld [vmem:[%s336 + $0xcc] sm:$0xf]
      %v927 = vld [vmem:[%s336 + $0xd0] sm:$0xf]
      %v928 = vld [vmem:[%s336 + $0xd4] sm:$0xf]
      %v929 = vld [vmem:[%s336 + $0xd8] sm:$0xf]
      %v930 = vld [vmem:[%s336 + $0xdc] sm:$0xf]
      %v931 = vld [vmem:[%s336 + $0xe0] sm:$0xf]
      %v932 = vld [vmem:[%s336 + $0xe4] sm:$0xf]
      %v933 = vld [vmem:[%s336 + $0xe8] sm:$0xf]
      %v934 = vld [vmem:[%s336 + $0xec] sm:$0xf]
      %v935 = vld [vmem:[%s336 + $0xf0] sm:$0xf]
      %v936 = vld [vmem:[%s336 + $0xf4] sm:$0xf]
      %v937 = vld [vmem:[%s336 + $0xf8] sm:$0xf]
      %v938 = vld [vmem:[%s336 + $0xfc] sm:$0xf]
      %v939 = vld [vmem:[%s336 + $0x100] sm:$0xf]
      %v940 = vld [vmem:[%s336 + $0x104] sm:$0xf]
      %v941 = vld [vmem:[%s336 + $0x108] sm:$0xf]
      %v942 = vld [vmem:[%s336 + $0x10c] sm:$0xf]
      %v943 = vld [vmem:[%s336 + $0x110] sm:$0xf]
      %v944 = vld [vmem:[%s336 + $0x114] sm:$0xf]
      %v945 = vld [vmem:[%s336 + $0x118] sm:$0xf]
      %v946 = vld [vmem:[%s336 + $0x11c] sm:$0xf]
      %v1019 = vunpack.c.l.b16 %v875
      %v1020 = vunpack.c.l.b16 %v876
      %v1021 = vunpack.c.l.b16 %v877
      %v1022 = vunpack.c.l.b16 %v878
      %v1023 = vunpack.c.l.b16 %v879
      %v1024 = vunpack.c.l.b16 %v880
      %v1025 = vunpack.c.l.b16 %v881
      %v1026 = vunpack.c.l.b16 %v882
      %v1027 = vunpack.c.l.b16 %v883
      %v1028 = vunpack.c.l.b16 %v884
      %v1029 = vunpack.c.l.b16 %v885
      %v1030 = vunpack.c.l.b16 %v886
      %v1031 = vunpack.c.l.b16 %v887
      %v1032 = vunpack.c.l.b16 %v888
      %v1033 = vunpack.c.l.b16 %v889
      %v1034 = vunpack.c.l.b16 %v890
      %v1035 = vunpack.c.l.b16 %v891
      %v1036 = vunpack.c.l.b16 %v892
      %v1037 = vunpack.c.l.b16 %v893
      %v1038 = vunpack.c.l.b16 %v894
      %v1039 = vunpack.c.l.b16 %v895
      %v1040 = vunpack.c.l.b16 %v896
      %v1041 = vunpack.c.l.b16 %v897
      %v1042 = vunpack.c.l.b16 %v898
      %v1043 = vunpack.c.l.b16 %v899
      %v1044 = vunpack.c.l.b16 %v900
      %v1045 = vunpack.c.l.b16 %v901
      %v1046 = vunpack.c.l.b16 %v902
      %v1047 = vunpack.c.l.b16 %v903
      %v1048 = vunpack.c.l.b16 %v904
      %v1049 = vunpack.c.l.b16 %v905
      %v1050 = vunpack.c.l.b16 %v906
      %v1051 = vunpack.c.l.b16 %v907
      %v1052 = vunpack.c.l.b16 %v908
      %v1053 = vunpack.c.l.b16 %v909
      %v1054 = vunpack.c.l.b16 %v910
      %v1055 = vunpack.c.l.b16 %v911
      %v1056 = vunpack.c.l.b16 %v912
      %v1057 = vunpack.c.l.b16 %v913
      %v1058 = vunpack.c.l.b16 %v914
      %v1059 = vunpack.c.l.b16 %v915
      %v1060 = vunpack.c.l.b16 %v916
      %v1061 = vunpack.c.l.b16 %v917
      %v1062 = vunpack.c.l.b16 %v918
      %v1063 = vunpack.c.l.b16 %v919
      %v1064 = vunpack.c.l.b16 %v920
      %v1065 = vunpack.c.l.b16 %v921
      %v1066 = vunpack.c.l.b16 %v922
      %v1067 = vunpack.c.l.b16 %v923
      %v1068 = vunpack.c.l.b16 %v924
      %v1069 = vunpack.c.l.b16 %v925
      %v1070 = vunpack.c.l.b16 %v926
      %v1071 = vunpack.c.l.b16 %v927
      %v1072 = vunpack.c.l.b16 %v928
      %v1073 = vunpack.c.l.b16 %v929
      %v1074 = vunpack.c.l.b16 %v930
      %v1075 = vunpack.c.l.b16 %v931
      %v1076 = vunpack.c.l.b16 %v932
      %v1077 = vunpack.c.l.b16 %v933
      %v1078 = vunpack.c.l.b16 %v934
      %v1079 = vunpack.c.l.b16 %v935
      %v1080 = vunpack.c.l.b16 %v936
      %v1081 = vunpack.c.l.b16 %v937
      %v1082 = vunpack.c.l.b16 %v938
      %v1083 = vunpack.c.l.b16 %v939
      %v1084 = vunpack.c.l.b16 %v940
      %v1085 = vunpack.c.l.b16 %v941
      %v1086 = vunpack.c.l.b16 %v942
      %v1087 = vunpack.c.l.b16 %v943
      %v1088 = vunpack.c.l.b16 %v944
      %v1089 = vunpack.c.l.b16 %v945
      %v1090 = vunpack.c.l.b16 %v946
      %v1091 = vpack.c.b16 %v1020, %v1019
      %v1092 = vpack.c.b16 %v1022, %v1021
      %v1093 = vpack.c.b16 %v1024, %v1023
      %v1094 = vpack.c.b16 %v1026, %v1025
      %v1095 = vpack.c.b16 %v1028, %v1027
      %v1096 = vpack.c.b16 %v1030, %v1029
      %v1097 = vpack.c.b16 %v1032, %v1031
      %v1098 = vpack.c.b16 %v1034, %v1033
      %v1099 = vpack.c.b16 %v1036, %v1035
      %v1100 = vpack.c.b16 %v1038, %v1037
      %v1101 = vpack.c.b16 %v1040, %v1039
      %v1102 = vpack.c.b16 %v1042, %v1041
      %v1103 = vpack.c.b16 %v1044, %v1043
      %v1104 = vpack.c.b16 %v1046, %v1045
      %v1105 = vpack.c.b16 %v1048, %v1047
      %v1106 = vpack.c.b16 %v1050, %v1049
      %v1107 = vpack.c.b16 %v1052, %v1051
      %v1108 = vpack.c.b16 %v1054, %v1053
      %v1109 = vpack.c.b16 %v1056, %v1055
      %v1110 = vpack.c.b16 %v1058, %v1057
      %v1111 = vpack.c.b16 %v1060, %v1059
      %v1112 = vpack.c.b16 %v1062, %v1061
      %v1113 = vpack.c.b16 %v1064, %v1063
      %v1114 = vpack.c.b16 %v1066, %v1065
      %v1115 = vpack.c.b16 %v1068, %v1067
      %v1116 = vpack.c.b16 %v1070, %v1069
      %v1117 = vpack.c.b16 %v1072, %v1071
      %v1118 = vpack.c.b16 %v1074, %v1073
      %v1119 = vpack.c.b16 %v1076, %v1075
      %v1120 = vpack.c.b16 %v1078, %v1077
      %v1121 = vpack.c.b16 %v1080, %v1079
      %v1122 = vpack.c.b16 %v1082, %v1081
      %v1123 = vpack.c.b16 %v1084, %v1083
      %v1124 = vpack.c.b16 %v1086, %v1085
      %v1125 = vpack.c.b16 %v1088, %v1087
      %v1126 = vpack.c.b16 %v1090, %v1089
      %vm1163 = vcmask 523264
      %v1165 = vsel %vm1163, %v799, 0
      %v1168 = vsel %vm1163, %v804, 0
      %v1171 = vsel %vm1163, %v809, 0
      %v1174 = vsel %vm1163, %v814, 0
      %v1177 = vsel %vm1163, %v819, 0
      %v1180 = vsel %vm1163, %v824, 0
      %v1183 = vsel %vm1163, %v829, 0
      %v1186 = vsel %vm1163, %v834, 0
      %v1189 = vsel %vm1163, %v839, 0
      %v1192 = vsel %vm1163, %v844, 0
      %v1195 = vsel %vm1163, %v849, 0
      %v1198 = vsel %vm1163, %v854, 0
      %v1201 = vsel %vm1163, %v859, 0
      %v1204 = vsel %vm1163, %v864, 0
      %v1207 = vsel %vm1163, %v869, 0
      %v1210 = vsel %vm1163, %v874, 0
      %1212 = vmatpush.bf16.msra.mxu0 %v1098
      %1213 = vmatpush.bf16.msra.mxu0 %v1097
      %1214 = vmatpush.bf16.msra.mxu0 %v1096
      %1215 = vmatpush.bf16.msra.mxu0 %v1095
      %1216 = vmatpush.bf16.msra.mxu0 %v1094
      %1217 = vmatpush.bf16.msra.mxu0 %v1093
      %1218 = vmatpush.bf16.msra.mxu0 %v1092
      %1219 = vmatpush.bf16.msra.mxu0 %v1091
      %1220 = vmatmul.bf16.gmra.mxu0 %v795
      %v1221 = vpop.f32.mrf.mxu0
      %v1222 = vadd.f32 0.0, %v1221
      %v1223 = vpop.f32.mrf.mxu0
      %v1224 = vadd.f32 0.0, %v1223
      %1225 = vmatmul.bf16.gmra.mxu0 %v800
      %v1226 = vpop.f32.mrf.mxu0
      %v1227 = vadd.f32 0.0, %v1226
      %v1228 = vpop.f32.mrf.mxu0
      %v1229 = vadd.f32 0.0, %v1228
      %1230 = vmatmul.bf16.gmra.mxu0 %v805
      %v1231 = vpop.f32.mrf.mxu0
      %v1232 = vadd.f32 0.0, %v1231
      %v1233 = vpop.f32.mrf.mxu0
      %v1234 = vadd.f32 0.0, %v1233
      %1235 = vmatmul.bf16.gmra.mxu0 %v810
      %v1236 = vpop.f32.mrf.mxu0
      %v1237 = vadd.f32 0.0, %v1236
      %v1238 = vpop.f32.mrf.mxu0
      %v1239 = vadd.f32 0.0, %v1238
      %1240 = vmatmul.bf16.gmra.mxu0 %v815
      %v1241 = vpop.f32.mrf.mxu0
      %v1242 = vadd.f32 0.0, %v1241
      %v1243 = vpop.f32.mrf.mxu0
      %v1244 = vadd.f32 0.0, %v1243
      %1245 = vmatmul.bf16.gmra.mxu0 %v820
      %v1246 = vpop.f32.mrf.mxu0
      %v1247 = vadd.f32 0.0, %v1246
      %v1248 = vpop.f32.mrf.mxu0
      %v1249 = vadd.f32 0.0, %v1248
      %1250 = vmatmul.bf16.gmra.mxu0 %v825
      %v1251 = vpop.f32.mrf.mxu0
      %v1252 = vadd.f32 0.0, %v1251
      %v1253 = vpop.f32.mrf.mxu0
      %v1254 = vadd.f32 0.0, %v1253
      %1255 = vmatmul.bf16.gmra.mxu0 %v830
      %v1256 = vpop.f32.mrf.mxu0
      %v1257 = vadd.f32 0.0, %v1256
      %v1258 = vpop.f32.mrf.mxu0
      %v1259 = vadd.f32 0.0, %v1258
      %1260 = vmatmul.bf16.gmra.mxu0 %v835
      %v1261 = vpop.f32.mrf.mxu0
      %v1262 = vadd.f32 0.0, %v1261
      %v1263 = vpop.f32.mrf.mxu0
      %v1264 = vadd.f32 0.0, %v1263
      %1265 = vmatmul.bf16.gmra.mxu0 %v840
      %v1266 = vpop.f32.mrf.mxu0
      %v1267 = vadd.f32 0.0, %v1266
      %v1268 = vpop.f32.mrf.mxu0
      %v1269 = vadd.f32 0.0, %v1268
      %1270 = vmatmul.bf16.gmra.mxu0 %v845
      %v1271 = vpop.f32.mrf.mxu0
      %v1272 = vadd.f32 0.0, %v1271
      %v1273 = vpop.f32.mrf.mxu0
      %v1274 = vadd.f32 0.0, %v1273
      %1275 = vmatmul.bf16.gmra.mxu0 %v850
      %v1276 = vpop.f32.mrf.mxu0
      %v1277 = vadd.f32 0.0, %v1276
      %v1278 = vpop.f32.mrf.mxu0
      %v1279 = vadd.f32 0.0, %v1278
      %1280 = vmatmul.bf16.gmra.mxu0 %v855
      %v1281 = vpop.f32.mrf.mxu0
      %v1282 = vadd.f32 0.0, %v1281
      %v1283 = vpop.f32.mrf.mxu0
      %v1284 = vadd.f32 0.0, %v1283
      %1285 = vmatmul.bf16.gmra.mxu0 %v860
      %v1286 = vpop.f32.mrf.mxu0
      %v1287 = vadd.f32 0.0, %v1286
      %v1288 = vpop.f32.mrf.mxu0
      %v1289 = vadd.f32 0.0, %v1288
      %1290 = vmatmul.bf16.gmra.mxu0 %v865
      %v1291 = vpop.f32.mrf.mxu0
      %v1292 = vadd.f32 0.0, %v1291
      %v1293 = vpop.f32.mrf.mxu0
      %v1294 = vadd.f32 0.0, %v1293
      %1295 = vmatmul.bf16.gmra.mxu0 %v870
      %v1296 = vpop.f32.mrf.mxu0
      %v1297 = vadd.f32 0.0, %v1296
      %v1298 = vpop.f32.mrf.mxu0
      %v1299 = vadd.f32 0.0, %v1298
      %1300 = vdwg.mxu0
      %1301 = vmatpush.bf16.msra.mxu0 %v1106
      %1302 = vmatpush.bf16.msra.mxu0 %v1105
      %1303 = vmatpush.bf16.msra.mxu0 %v1104
      %1304 = vmatpush.bf16.msra.mxu0 %v1103
      %1305 = vmatpush.bf16.msra.mxu0 %v1102
      %1306 = vmatpush.bf16.msra.mxu0 %v1101
      %1307 = vmatpush.bf16.msra.mxu0 %v1100
      %1308 = vmatpush.bf16.msra.mxu0 %v1099
      %1309 = vmatmul.bf16.gmra.mxu0 %v796
      %v1310 = vpop.f32.mrf.mxu0
      %v1311 = vadd.f32 %v1222, %v1310
      %v1312 = vpop.f32.mrf.mxu0
      %v1313 = vadd.f32 %v1224, %v1312
      %1314 = vmatmul.bf16.gmra.mxu0 %v801
      %v1315 = vpop.f32.mrf.mxu0
      %v1316 = vadd.f32 %v1227, %v1315
      %v1317 = vpop.f32.mrf.mxu0
      %v1318 = vadd.f32 %v1229, %v1317
      %1319 = vmatmul.bf16.gmra.mxu0 %v806
      %v1320 = vpop.f32.mrf.mxu0
      %v1321 = vadd.f32 %v1232, %v1320
      %v1322 = vpop.f32.mrf.mxu0
      %v1323 = vadd.f32 %v1234, %v1322
      %1324 = vmatmul.bf16.gmra.mxu0 %v811
      %v1325 = vpop.f32.mrf.mxu0
      %v1326 = vadd.f32 %v1237, %v1325
      %v1327 = vpop.f32.mrf.mxu0
      %v1328 = vadd.f32 %v1239, %v1327
      %1329 = vmatmul.bf16.gmra.mxu0 %v816
      %v1330 = vpop.f32.mrf.mxu0
      %v1331 = vadd.f32 %v1242, %v1330
      %v1332 = vpop.f32.mrf.mxu0
      %v1333 = vadd.f32 %v1244, %v1332
      %1334 = vmatmul.bf16.gmra.mxu0 %v821
      %v1335 = vpop.f32.mrf.mxu0
      %v1336 = vadd.f32 %v1247, %v1335
      %v1337 = vpop.f32.mrf.mxu0
      %v1338 = vadd.f32 %v1249, %v1337
      %1339 = vmatmul.bf16.gmra.mxu0 %v826
      %v1340 = vpop.f32.mrf.mxu0
      %v1341 = vadd.f32 %v1252, %v1340
      %v1342 = vpop.f32.mrf.mxu0
      %v1343 = vadd.f32 %v1254, %v1342
      %1344 = vmatmul.bf16.gmra.mxu0 %v831
      %v1345 = vpop.f32.mrf.mxu0
      %v1346 = vadd.f32 %v1257, %v1345
      %v1347 = vpop.f32.mrf.mxu0
      %v1348 = vadd.f32 %v1259, %v1347
      %1349 = vmatmul.bf16.gmra.mxu0 %v836
      %v1350 = vpop.f32.mrf.mxu0
      %v1351 = vadd.f32 %v1262, %v1350
      %v1352 = vpop.f32.mrf.mxu0
      %v1353 = vadd.f32 %v1264, %v1352
      %1354 = vmatmul.bf16.gmra.mxu0 %v841
      %v1355 = vpop.f32.mrf.mxu0
      %v1356 = vadd.f32 %v1267, %v1355
      %v1357 = vpop.f32.mrf.mxu0
      %v1358 = vadd.f32 %v1269, %v1357
      %1359 = vmatmul.bf16.gmra.mxu0 %v846
      %v1360 = vpop.f32.mrf.mxu0
      %v1361 = vadd.f32 %v1272, %v1360
      %v1362 = vpop.f32.mrf.mxu0
      %v1363 = vadd.f32 %v1274, %v1362
      %1364 = vmatmul.bf16.gmra.mxu0 %v851
      %v1365 = vpop.f32.mrf.mxu0
      %v1366 = vadd.f32 %v1277, %v1365
      %v1367 = vpop.f32.mrf.mxu0
      %v1368 = vadd.f32 %v1279, %v1367
      %1369 = vmatmul.bf16.gmra.mxu0 %v856
      %v1370 = vpop.f32.mrf.mxu0
      %v1371 = vadd.f32 %v1282, %v1370
      %v1372 = vpop.f32.mrf.mxu0
      %v1373 = vadd.f32 %v1284, %v1372
      %1374 = vmatmul.bf16.gmra.mxu0 %v861
      %v1375 = vpop.f32.mrf.mxu0
      %v1376 = vadd.f32 %v1287, %v1375
      %v1377 = vpop.f32.mrf.mxu0
      %v1378 = vadd.f32 %v1289, %v1377
      %1379 = vmatmul.bf16.gmra.mxu0 %v866
      %v1380 = vpop.f32.mrf.mxu0
      %v1381 = vadd.f32 %v1292, %v1380
      %v1382 = vpop.f32.mrf.mxu0
      %v1383 = vadd.f32 %v1294, %v1382
      %1384 = vmatmul.bf16.gmra.mxu0 %v871
      %v1385 = vpop.f32.mrf.mxu0
      %v1386 = vadd.f32 %v1297, %v1385
      %v1387 = vpop.f32.mrf.mxu0
      %v1388 = vadd.f32 %v1299, %v1387
      %1389 = vdwg.mxu0
      %1390 = vmatpush.bf16.msra.mxu0 %v1114
      %1391 = vmatpush.bf16.msra.mxu0 %v1113
      %1392 = vmatpush.bf16.msra.mxu0 %v1112
      %1393 = vmatpush.bf16.msra.mxu0 %v1111
      %1394 = vmatpush.bf16.msra.mxu0 %v1110
      %1395 = vmatpush.bf16.msra.mxu0 %v1109
      %1396 = vmatpush.bf16.msra.mxu0 %v1108
      %1397 = vmatpush.bf16.msra.mxu0 %v1107
      %1398 = vmatmul.bf16.gmra.mxu0 %v797
      %v1399 = vpop.f32.mrf.mxu0
      %v1400 = vadd.f32 %v1311, %v1399
      %v1401 = vpop.f32.mrf.mxu0
      %v1402 = vadd.f32 %v1313, %v1401
      %1403 = vmatmul.bf16.gmra.mxu0 %v802
      %v1404 = vpop.f32.mrf.mxu0
      %v1405 = vadd.f32 %v1316, %v1404
      %v1406 = vpop.f32.mrf.mxu0
      %v1407 = vadd.f32 %v1318, %v1406
      %1408 = vmatmul.bf16.gmra.mxu0 %v807
      %v1409 = vpop.f32.mrf.mxu0
      %v1410 = vadd.f32 %v1321, %v1409
      %v1411 = vpop.f32.mrf.mxu0
      %v1412 = vadd.f32 %v1323, %v1411
      %1413 = vmatmul.bf16.gmra.mxu0 %v812
      %v1414 = vpop.f32.mrf.mxu0
      %v1415 = vadd.f32 %v1326, %v1414
      %v1416 = vpop.f32.mrf.mxu0
      %v1417 = vadd.f32 %v1328, %v1416
      %1418 = vmatmul.bf16.gmra.mxu0 %v817
      %v1419 = vpop.f32.mrf.mxu0
      %v1420 = vadd.f32 %v1331, %v1419
      %v1421 = vpop.f32.mrf.mxu0
      %v1422 = vadd.f32 %v1333, %v1421
      %1423 = vmatmul.bf16.gmra.mxu0 %v822
      %v1424 = vpop.f32.mrf.mxu0
      %v1425 = vadd.f32 %v1336, %v1424
      %v1426 = vpop.f32.mrf.mxu0
      %v1427 = vadd.f32 %v1338, %v1426
      %1428 = vmatmul.bf16.gmra.mxu0 %v827
      %v1429 = vpop.f32.mrf.mxu0
      %v1430 = vadd.f32 %v1341, %v1429
      %v1431 = vpop.f32.mrf.mxu0
      %v1432 = vadd.f32 %v1343, %v1431
      %1433 = vmatmul.bf16.gmra.mxu0 %v832
      %v1434 = vpop.f32.mrf.mxu0
      %v1435 = vadd.f32 %v1346, %v1434
      %v1436 = vpop.f32.mrf.mxu0
      %v1437 = vadd.f32 %v1348, %v1436
      %1438 = vmatmul.bf16.gmra.mxu0 %v837
      %v1439 = vpop.f32.mrf.mxu0
      %v1440 = vadd.f32 %v1351, %v1439
      %v1441 = vpop.f32.mrf.mxu0
      %v1442 = vadd.f32 %v1353, %v1441
      %1443 = vmatmul.bf16.gmra.mxu0 %v842
      %v1444 = vpop.f32.mrf.mxu0
      %v1445 = vadd.f32 %v1356, %v1444
      %v1446 = vpop.f32.mrf.mxu0
      %v1447 = vadd.f32 %v1358, %v1446
      %1448 = vmatmul.bf16.gmra.mxu0 %v847
      %v1449 = vpop.f32.mrf.mxu0
      %v1450 = vadd.f32 %v1361, %v1449
      %v1451 = vpop.f32.mrf.mxu0
      %v1452 = vadd.f32 %v1363, %v1451
      %1453 = vmatmul.bf16.gmra.mxu0 %v852
      %v1454 = vpop.f32.mrf.mxu0
      %v1455 = vadd.f32 %v1366, %v1454
      %v1456 = vpop.f32.mrf.mxu0
      %v1457 = vadd.f32 %v1368, %v1456
      %1458 = vmatmul.bf16.gmra.mxu0 %v857
      %v1459 = vpop.f32.mrf.mxu0
      %v1460 = vadd.f32 %v1371, %v1459
      %v1461 = vpop.f32.mrf.mxu0
      %v1462 = vadd.f32 %v1373, %v1461
      %1463 = vmatmul.bf16.gmra.mxu0 %v862
      %v1464 = vpop.f32.mrf.mxu0
      %v1465 = vadd.f32 %v1376, %v1464
      %v1466 = vpop.f32.mrf.mxu0
      %v1467 = vadd.f32 %v1378, %v1466
      %1468 = vmatmul.bf16.gmra.mxu0 %v867
      %v1469 = vpop.f32.mrf.mxu0
      %v1470 = vadd.f32 %v1381, %v1469
      %v1471 = vpop.f32.mrf.mxu0
      %v1472 = vadd.f32 %v1383, %v1471
      %1473 = vmatmul.bf16.gmra.mxu0 %v872
      %v1474 = vpop.f32.mrf.mxu0
      %v1475 = vadd.f32 %v1386, %v1474
      %v1476 = vpop.f32.mrf.mxu0
      %v1477 = vadd.f32 %v1388, %v1476
      %1478 = vdwg.mxu0
      %1479 = vmatpush.bf16.msra.mxu0 %v1122
      %1480 = vmatpush.bf16.msra.mxu0 %v1121
      %1481 = vmatpush.bf16.msra.mxu0 %v1120
      %1482 = vmatpush.bf16.msra.mxu0 %v1119
      %1483 = vmatpush.bf16.msra.mxu0 %v1118
      %1484 = vmatpush.bf16.msra.mxu0 %v1117
      %1485 = vmatpush.bf16.msra.mxu0 %v1116
      %1486 = vmatpush.bf16.msra.mxu0 %v1115
      %1487 = vmatmul.bf16.gmra.mxu0 %v798
      %v1488 = vpop.f32.mrf.mxu0
      %v1489 = vadd.f32 %v1400, %v1488
      %v1490 = vpop.f32.mrf.mxu0
      %v1491 = vadd.f32 %v1402, %v1490
      %1492 = vmatmul.bf16.gmra.mxu0 %v803
      %v1493 = vpop.f32.mrf.mxu0
      %v1494 = vadd.f32 %v1405, %v1493
      %v1495 = vpop.f32.mrf.mxu0
      %v1496 = vadd.f32 %v1407, %v1495
      %1497 = vmatmul.bf16.gmra.mxu0 %v808
      %v1498 = vpop.f32.mrf.mxu0
      %v1499 = vadd.f32 %v1410, %v1498
      %v1500 = vpop.f32.mrf.mxu0
      %v1501 = vadd.f32 %v1412, %v1500
      %1502 = vmatmul.bf16.gmra.mxu0 %v813
      %v1503 = vpop.f32.mrf.mxu0
      %v1504 = vadd.f32 %v1415, %v1503
      %v1505 = vpop.f32.mrf.mxu0
      %v1506 = vadd.f32 %v1417, %v1505
      %1507 = vmatmul.bf16.gmra.mxu0 %v818
      %v1508 = vpop.f32.mrf.mxu0
      %v1509 = vadd.f32 %v1420, %v1508
      %v1510 = vpop.f32.mrf.mxu0
      %v1511 = vadd.f32 %v1422, %v1510
      %1512 = vmatmul.bf16.gmra.mxu0 %v823
      %v1513 = vpop.f32.mrf.mxu0
      %v1514 = vadd.f32 %v1425, %v1513
      %v1515 = vpop.f32.mrf.mxu0
      %v1516 = vadd.f32 %v1427, %v1515
      %1517 = vmatmul.bf16.gmra.mxu0 %v828
      %v1518 = vpop.f32.mrf.mxu0
      %v1519 = vadd.f32 %v1430, %v1518
      %v1520 = vpop.f32.mrf.mxu0
      %v1521 = vadd.f32 %v1432, %v1520
      %1522 = vmatmul.bf16.gmra.mxu0 %v833
      %v1523 = vpop.f32.mrf.mxu0
      %v1524 = vadd.f32 %v1435, %v1523
      %v1525 = vpop.f32.mrf.mxu0
      %v1526 = vadd.f32 %v1437, %v1525
      %1527 = vmatmul.bf16.gmra.mxu0 %v838
      %v1528 = vpop.f32.mrf.mxu0
      %v1529 = vadd.f32 %v1440, %v1528
      %v1530 = vpop.f32.mrf.mxu0
      %v1531 = vadd.f32 %v1442, %v1530
      %1532 = vmatmul.bf16.gmra.mxu0 %v843
      %v1533 = vpop.f32.mrf.mxu0
      %v1534 = vadd.f32 %v1445, %v1533
      %v1535 = vpop.f32.mrf.mxu0
      %v1536 = vadd.f32 %v1447, %v1535
      %1537 = vmatmul.bf16.gmra.mxu0 %v848
      %v1538 = vpop.f32.mrf.mxu0
      %v1539 = vadd.f32 %v1450, %v1538
      %v1540 = vpop.f32.mrf.mxu0
      %v1541 = vadd.f32 %v1452, %v1540
      %1542 = vmatmul.bf16.gmra.mxu0 %v853
      %v1543 = vpop.f32.mrf.mxu0
      %v1544 = vadd.f32 %v1455, %v1543
      %v1545 = vpop.f32.mrf.mxu0
      %v1546 = vadd.f32 %v1457, %v1545
      %1547 = vmatmul.bf16.gmra.mxu0 %v858
      %v1548 = vpop.f32.mrf.mxu0
      %v1549 = vadd.f32 %v1460, %v1548
      %v1550 = vpop.f32.mrf.mxu0
      %v1551 = vadd.f32 %v1462, %v1550
      %1552 = vmatmul.bf16.gmra.mxu0 %v863
      %v1553 = vpop.f32.mrf.mxu0
      %v1554 = vadd.f32 %v1465, %v1553
      %v1555 = vpop.f32.mrf.mxu0
      %v1556 = vadd.f32 %v1467, %v1555
      %1557 = vmatmul.bf16.gmra.mxu0 %v868
      %v1558 = vpop.f32.mrf.mxu0
      %v1559 = vadd.f32 %v1470, %v1558
      %v1560 = vpop.f32.mrf.mxu0
      %v1561 = vadd.f32 %v1472, %v1560
      %1562 = vmatmul.bf16.gmra.mxu0 %v873
      %v1563 = vpop.f32.mrf.mxu0
      %v1564 = vadd.f32 %v1475, %v1563
      %v1565 = vpop.f32.mrf.mxu0
      %v1566 = vadd.f32 %v1477, %v1565
      %1567 = vdwg.mxu0
      %1568 = vmatpush.bf16.msra.mxu0 0
      %1569 = vmatpush.bf16.msra.mxu0 0
      %1570 = vmatpush.bf16.msra.mxu0 0
      %1571 = vmatpush.bf16.msra.mxu0 0
      %1572 = vmatpush.bf16.msra.mxu0 %v1126
      %1573 = vmatpush.bf16.msra.mxu0 %v1125
      %1574 = vmatpush.bf16.msra.mxu0 %v1124
      %1575 = vmatpush.bf16.msra.mxu0 %v1123
      %1576 = vmatmul.bf16.gmra.mxu0 %v1165
      %v1577 = vpop.f32.mrf.mxu0
      %v1578 = vadd.f32 %v1489, %v1577
      %v1579 = vpop.f32.mrf.mxu0
      %v1580 = vadd.f32 %v1491, %v1579
      %1581 = vmatmul.bf16.gmra.mxu0 %v1168
      %v1582 = vpop.f32.mrf.mxu0
      %v1583 = vadd.f32 %v1494, %v1582
      %v1584 = vpop.f32.mrf.mxu0
      %v1585 = vadd.f32 %v1496, %v1584
      %1586 = vmatmul.bf16.gmra.mxu0 %v1171
      %v1587 = vpop.f32.mrf.mxu0
      %v1588 = vadd.f32 %v1499, %v1587
      %v1589 = vpop.f32.mrf.mxu0
      %v1590 = vadd.f32 %v1501, %v1589
      %1591 = vmatmul.bf16.gmra.mxu0 %v1174
      %v1592 = vpop.f32.mrf.mxu0
      %v1593 = vadd.f32 %v1504, %v1592
      %v1594 = vpop.f32.mrf.mxu0
      %v1595 = vadd.f32 %v1506, %v1594
      %1596 = vmatmul.bf16.gmra.mxu0 %v1177
      %v1597 = vpop.f32.mrf.mxu0
      %v1598 = vadd.f32 %v1509, %v1597
      %v1599 = vpop.f32.mrf.mxu0
      %v1600 = vadd.f32 %v1511, %v1599
      %1601 = vmatmul.bf16.gmra.mxu0 %v1180
      %v1602 = vpop.f32.mrf.mxu0
      %v1603 = vadd.f32 %v1514, %v1602
      %v1604 = vpop.f32.mrf.mxu0
      %v1605 = vadd.f32 %v1516, %v1604
      %1606 = vmatmul.bf16.gmra.mxu0 %v1183
      %v1607 = vpop.f32.mrf.mxu0
      %v1608 = vadd.f32 %v1519, %v1607
      %v1609 = vpop.f32.mrf.mxu0
      %v1610 = vadd.f32 %v1521, %v1609
      %1611 = vmatmul.bf16.gmra.mxu0 %v1186
      %v1612 = vpop.f32.mrf.mxu0
      %v1613 = vadd.f32 %v1524, %v1612
      %v1614 = vpop.f32.mrf.mxu0
      %v1615 = vadd.f32 %v1526, %v1614
      %1616 = vmatmul.bf16.gmra.mxu0 %v1189
      %v1617 = vpop.f32.mrf.mxu0
      %v1618 = vadd.f32 %v1529, %v1617
      %v1619 = vpop.f32.mrf.mxu0
      %v1620 = vadd.f32 %v1531, %v1619
      %1621 = vmatmul.bf16.gmra.mxu0 %v1192
      %v1622 = vpop.f32.mrf.mxu0
      %v1623 = vadd.f32 %v1534, %v1622
      %v1624 = vpop.f32.mrf.mxu0
      %v1625 = vadd.f32 %v1536, %v1624
      %1626 = vmatmul.bf16.gmra.mxu0 %v1195
      %v1627 = vpop.f32.mrf.mxu0
      %v1628 = vadd.f32 %v1539, %v1627
      %v1629 = vpop.f32.mrf.mxu0
      %v1630 = vadd.f32 %v1541, %v1629
      %1631 = vmatmul.bf16.gmra.mxu0 %v1198
      %v1632 = vpop.f32.mrf.mxu0
      %v1633 = vadd.f32 %v1544, %v1632
      %v1634 = vpop.f32.mrf.mxu0
      %v1635 = vadd.f32 %v1546, %v1634
      %1636 = vmatmul.bf16.gmra.mxu0 %v1201
      %v1637 = vpop.f32.mrf.mxu0
      %v1638 = vadd.f32 %v1549, %v1637
      %v1639 = vpop.f32.mrf.mxu0
      %v1640 = vadd.f32 %v1551, %v1639
      %1641 = vmatmul.bf16.gmra.mxu0 %v1204
      %v1642 = vpop.f32.mrf.mxu0
      %v1643 = vadd.f32 %v1554, %v1642
      %v1644 = vpop.f32.mrf.mxu0
      %v1645 = vadd.f32 %v1556, %v1644
      %1646 = vmatmul.bf16.gmra.mxu0 %v1207
      %v1647 = vpop.f32.mrf.mxu0
      %v1648 = vadd.f32 %v1559, %v1647
      %v1649 = vpop.f32.mrf.mxu0
      %v1650 = vadd.f32 %v1561, %v1649
      %1651 = vmatmul.bf16.gmra.mxu0 %v1210
      %v1652 = vpop.f32.mrf.mxu0
      %v1653 = vadd.f32 %v1564, %v1652
      %v1654 = vpop.f32.mrf.mxu0
      %v1655 = vadd.f32 %v1566, %v1654
      %1656 = vdwg.mxu0
      %v1657 = vld [vmem:[%s346] sm:$0x1]
      %v1659 = vperm.slane %v1657, 0
      %v1661 = vmul.f32 %v1578, %v1659
      %v1662 = vmul.f32 %v1580, %v1659
      %v1663 = vmul.f32 %v1583, %v1659
      %v1664 = vmul.f32 %v1585, %v1659
      %v1665 = vmul.f32 %v1588, %v1659
      %v1666 = vmul.f32 %v1590, %v1659
      %v1667 = vmul.f32 %v1593, %v1659
      %v1668 = vmul.f32 %v1595, %v1659
      %v1669 = vmul.f32 %v1598, %v1659
      %v1670 = vmul.f32 %v1600, %v1659
      %v1671 = vmul.f32 %v1603, %v1659
      %v1672 = vmul.f32 %v1605, %v1659
      %v1673 = vmul.f32 %v1608, %v1659
      %v1674 = vmul.f32 %v1610, %v1659
      %v1675 = vmul.f32 %v1613, %v1659
      %v1676 = vmul.f32 %v1615, %v1659
      %v1677 = vmul.f32 %v1618, %v1659
      %v1678 = vmul.f32 %v1620, %v1659
      %v1679 = vmul.f32 %v1623, %v1659
      %v1680 = vmul.f32 %v1625, %v1659
      %v1681 = vmul.f32 %v1628, %v1659
      %v1682 = vmul.f32 %v1630, %v1659
      %v1683 = vmul.f32 %v1633, %v1659
      %v1684 = vmul.f32 %v1635, %v1659
      %v1685 = vmul.f32 %v1638, %v1659
      %v1686 = vmul.f32 %v1640, %v1659
      %v1687 = vmul.f32 %v1643, %v1659
      %v1688 = vmul.f32 %v1645, %v1659
      %v1689 = vmul.f32 %v1648, %v1659
      %v1690 = vmul.f32 %v1650, %v1659
      %v1691 = vmul.f32 %v1653, %v1659
      %v1692 = vmul.f32 %v1655, %v1659
      %v1693 = vld [vmem:[%s352] sm:$0x1]
      %v1695 = vperm.slane %v1693, 0
      %v1697 = vadd.f32 %v1661, %v1695
      %v1698 = vadd.f32 %v1662, %v1695
      %v1699 = vadd.f32 %v1663, %v1695
      %v1700 = vadd.f32 %v1664, %v1695
      %v1701 = vadd.f32 %v1665, %v1695
      %v1702 = vadd.f32 %v1666, %v1695
      %v1703 = vadd.f32 %v1667, %v1695
      %v1704 = vadd.f32 %v1668, %v1695
      %v1705 = vadd.f32 %v1669, %v1695
      %v1706 = vadd.f32 %v1670, %v1695
      %v1707 = vadd.f32 %v1671, %v1695
      %v1708 = vadd.f32 %v1672, %v1695
      %v1709 = vadd.f32 %v1673, %v1695
      %v1710 = vadd.f32 %v1674, %v1695
      %v1711 = vadd.f32 %v1675, %v1695
      %v1712 = vadd.f32 %v1676, %v1695
      %v1713 = vadd.f32 %v1677, %v1695
      %v1714 = vadd.f32 %v1678, %v1695
      %v1715 = vadd.f32 %v1679, %v1695
      %v1716 = vadd.f32 %v1680, %v1695
      %v1717 = vadd.f32 %v1681, %v1695
      %v1718 = vadd.f32 %v1682, %v1695
      %v1719 = vadd.f32 %v1683, %v1695
      %v1720 = vadd.f32 %v1684, %v1695
      %v1721 = vadd.f32 %v1685, %v1695
      %v1722 = vadd.f32 %v1686, %v1695
      %v1723 = vadd.f32 %v1687, %v1695
      %v1724 = vadd.f32 %v1688, %v1695
      %v1725 = vadd.f32 %v1689, %v1695
      %v1726 = vadd.f32 %v1690, %v1695
      %v1727 = vadd.f32 %v1691, %v1695
      %v1728 = vadd.f32 %v1692, %v1695
      %vm1729 = vcmp.ge.f32.partialorder %v1697, 0.0
      %vm1730 = vcmp.ge.f32.partialorder %v1698, 0.0
      %vm1731 = vcmp.ge.f32.partialorder %v1699, 0.0
      %vm1732 = vcmp.ge.f32.partialorder %v1700, 0.0
      %vm1733 = vcmp.ge.f32.partialorder %v1701, 0.0
      %vm1734 = vcmp.ge.f32.partialorder %v1702, 0.0
      %vm1735 = vcmp.ge.f32.partialorder %v1703, 0.0
      %vm1736 = vcmp.ge.f32.partialorder %v1704, 0.0
      %vm1737 = vcmp.ge.f32.partialorder %v1705, 0.0
      %vm1738 = vcmp.ge.f32.partialorder %v1706, 0.0
      %vm1739 = vcmp.ge.f32.partialorder %v1707, 0.0
      %vm1740 = vcmp.ge.f32.partialorder %v1708, 0.0
      %vm1741 = vcmp.ge.f32.partialorder %v1709, 0.0
      %vm1742 = vcmp.ge.f32.partialorder %v1710, 0.0
      %vm1743 = vcmp.ge.f32.partialorder %v1711, 0.0
      %vm1744 = vcmp.ge.f32.partialorder %v1712, 0.0
      %vm1745 = vcmp.ge.f32.partialorder %v1713, 0.0
      %vm1746 = vcmp.ge.f32.partialorder %v1714, 0.0
      %vm1747 = vcmp.ge.f32.partialorder %v1715, 0.0
      %vm1748 = vcmp.ge.f32.partialorder %v1716, 0.0
      %vm1749 = vcmp.ge.f32.partialorder %v1717, 0.0
      %vm1750 = vcmp.ge.f32.partialorder %v1718, 0.0
      %vm1751 = vcmp.ge.f32.partialorder %v1719, 0.0
      %vm1752 = vcmp.ge.f32.partialorder %v1720, 0.0
      %vm1753 = vcmp.ge.f32.partialorder %v1721, 0.0
      %vm1754 = vcmp.ge.f32.partialorder %v1722, 0.0
      %vm1755 = vcmp.ge.f32.partialorder %v1723, 0.0
      %vm1756 = vcmp.ge.f32.partialorder %v1724, 0.0
      %vm1757 = vcmp.ge.f32.partialorder %v1725, 0.0
      %vm1758 = vcmp.ge.f32.partialorder %v1726, 0.0
      %vm1759 = vcmp.ge.f32.partialorder %v1727, 0.0
      %vm1760 = vcmp.ge.f32.partialorder %v1728, 0.0
      %v1761 = vmul.f32 %v1697, 0.01
      %v1762 = vmul.f32 %v1698, 0.01
      %v1763 = vmul.f32 %v1699, 0.01
      %v1764 = vmul.f32 %v1700, 0.01
      %v1765 = vmul.f32 %v1701, 0.01
      %v1766 = vmul.f32 %v1702, 0.01
      %v1767 = vmul.f32 %v1703, 0.01
      %v1768 = vmul.f32 %v1704, 0.01
      %v1769 = vmul.f32 %v1705, 0.01
      %v1770 = vmul.f32 %v1706, 0.01
      %v1771 = vmul.f32 %v1707, 0.01
      %v1772 = vmul.f32 %v1708, 0.01
      %v1773 = vmul.f32 %v1709, 0.01
      %v1774 = vmul.f32 %v1710, 0.01
      %v1775 = vmul.f32 %v1711, 0.01
      %v1776 = vmul.f32 %v1712, 0.01
      %v1777 = vmul.f32 %v1713, 0.01
      %v1778 = vmul.f32 %v1714, 0.01
      %v1779 = vmul.f32 %v1715, 0.01
      %v1780 = vmul.f32 %v1716, 0.01
      %v1781 = vmul.f32 %v1717, 0.01
      %v1782 = vmul.f32 %v1718, 0.01
      %v1783 = vmul.f32 %v1719, 0.01
      %v1784 = vmul.f32 %v1720, 0.01
      %v1785 = vmul.f32 %v1721, 0.01
      %v1786 = vmul.f32 %v1722, 0.01
      %v1787 = vmul.f32 %v1723, 0.01
      %v1788 = vmul.f32 %v1724, 0.01
      %v1789 = vmul.f32 %v1725, 0.01
      %v1790 = vmul.f32 %v1726, 0.01
      %v1791 = vmul.f32 %v1727, 0.01
      %v1792 = vmul.f32 %v1728, 0.01
      %v1793 = vsel %vm1729, %v1697, %v1761
      %v1794 = vsel %vm1730, %v1698, %v1762
      %v1795 = vsel %vm1731, %v1699, %v1763
      %v1796 = vsel %vm1732, %v1700, %v1764
      %v1797 = vsel %vm1733, %v1701, %v1765
      %v1798 = vsel %vm1734, %v1702, %v1766
      %v1799 = vsel %vm1735, %v1703, %v1767
      %v1800 = vsel %vm1736, %v1704, %v1768
      %v1801 = vsel %vm1737, %v1705, %v1769
      %v1802 = vsel %vm1738, %v1706, %v1770
      %v1803 = vsel %vm1739, %v1707, %v1771
      %v1804 = vsel %vm1740, %v1708, %v1772
      %v1805 = vsel %vm1741, %v1709, %v1773
      %v1806 = vsel %vm1742, %v1710, %v1774
      %v1807 = vsel %vm1743, %v1711, %v1775
      %v1808 = vsel %vm1744, %v1712, %v1776
      %v1809 = vsel %vm1745, %v1713, %v1777
      %v1810 = vsel %vm1746, %v1714, %v1778
      %v1811 = vsel %vm1747, %v1715, %v1779
      %v1812 = vsel %vm1748, %v1716, %v1780
      %v1813 = vsel %vm1749, %v1717, %v1781
      %v1814 = vsel %vm1750, %v1718, %v1782
      %v1815 = vsel %vm1751, %v1719, %v1783
      %v1816 = vsel %vm1752, %v1720, %v1784
      %v1817 = vsel %vm1753, %v1721, %v1785
      %v1818 = vsel %vm1754, %v1722, %v1786
      %v1819 = vsel %vm1755, %v1723, %v1787
      %v1820 = vsel %vm1756, %v1724, %v1788
      %v1821 = vsel %vm1757, %v1725, %v1789
      %v1822 = vsel %vm1758, %v1726, %v1790
      %v1823 = vsel %vm1759, %v1727, %v1791
      %v1824 = vsel %vm1760, %v1728, %v1792
      %v1825 = vpack.c.bf16 %v1793, %v1793
      %v1826 = vpack.c.bf16 %v1794, %v1794
      %v1827 = vpack.c.bf16 %v1795, %v1795
      %v1828 = vpack.c.bf16 %v1796, %v1796
      %v1829 = vpack.c.bf16 %v1797, %v1797
      %v1830 = vpack.c.bf16 %v1798, %v1798
      %v1831 = vpack.c.bf16 %v1799, %v1799
      %v1832 = vpack.c.bf16 %v1800, %v1800
      %v1833 = vpack.c.bf16 %v1801, %v1801
      %v1834 = vpack.c.bf16 %v1802, %v1802
      %v1835 = vpack.c.bf16 %v1803, %v1803
      %v1836 = vpack.c.bf16 %v1804, %v1804
      %v1837 = vpack.c.bf16 %v1805, %v1805
      %v1838 = vpack.c.bf16 %v1806, %v1806
      %v1839 = vpack.c.bf16 %v1807, %v1807
      %v1840 = vpack.c.bf16 %v1808, %v1808
      %v1841 = vpack.c.bf16 %v1809, %v1809
      %v1842 = vpack.c.bf16 %v1810, %v1810
      %v1843 = vpack.c.bf16 %v1811, %v1811
      %v1844 = vpack.c.bf16 %v1812, %v1812
      %v1845 = vpack.c.bf16 %v1813, %v1813
      %v1846 = vpack.c.bf16 %v1814, %v1814
      %v1847 = vpack.c.bf16 %v1815, %v1815
      %v1848 = vpack.c.bf16 %v1816, %v1816
      %v1849 = vpack.c.bf16 %v1817, %v1817
      %v1850 = vpack.c.bf16 %v1818, %v1818
      %v1851 = vpack.c.bf16 %v1819, %v1819
      %v1852 = vpack.c.bf16 %v1820, %v1820
      %v1853 = vpack.c.bf16 %v1821, %v1821
      %v1854 = vpack.c.bf16 %v1822, %v1822
      %v1855 = vpack.c.bf16 %v1823, %v1823
      %v1856 = vpack.c.bf16 %v1824, %v1824
      %1857 = vst [vmem:[%s364] sm:$0xf] %v1825
      %1858 = vst [vmem:[%s364 + $0x4] sm:$0xf] %v1826
      %1859 = vst [vmem:[%s364 + $0x8] sm:$0xf] %v1827
      %1860 = vst [vmem:[%s364 + $0xc] sm:$0xf] %v1828
      %1861 = vst [vmem:[%s364 + $0x10] sm:$0xf] %v1829
      %1862 = vst [vmem:[%s364 + $0x14] sm:$0xf] %v1830
      %1863 = vst [vmem:[%s364 + $0x18] sm:$0xf] %v1831
      %1864 = vst [vmem:[%s364 + $0x1c] sm:$0xf] %v1832
      %1865 = vst [vmem:[%s364 + $0x20] sm:$0xf] %v1833
      %1866 = vst [vmem:[%s364 + $0x24] sm:$0xf] %v1834
      %1867 = vst [vmem:[%s364 + $0x28] sm:$0xf] %v1835
      %1868 = vst [vmem:[%s364 + $0x2c] sm:$0xf] %v1836
      %1869 = vst [vmem:[%s364 + $0x30] sm:$0xf] %v1837
      %1870 = vst [vmem:[%s364 + $0x34] sm:$0xf] %v1838
      %1871 = vst [vmem:[%s364 + $0x38] sm:$0xf] %v1839
      %1872 = vst [vmem:[%s364 + $0x3c] sm:$0xf] %v1840
      %1873 = vst [vmem:[%s364 + $0x40] sm:$0xf] %v1841
      %1874 = vst [vmem:[%s364 + $0x44] sm:$0xf] %v1842
      %1875 = vst [vmem:[%s364 + $0x48] sm:$0xf] %v1843
      %1876 = vst [vmem:[%s364 + $0x4c] sm:$0xf] %v1844
      %1877 = vst [vmem:[%s364 + $0x50] sm:$0xf] %v1845
      %1878 = vst [vmem:[%s364 + $0x54] sm:$0xf] %v1846
      %1879 = vst [vmem:[%s364 + $0x58] sm:$0xf] %v1847
      %1880 = vst [vmem:[%s364 + $0x5c] sm:$0xf] %v1848
      %1881 = vst [vmem:[%s364 + $0x60] sm:$0xf] %v1849
      %1882 = vst [vmem:[%s364 + $0x64] sm:$0xf] %v1850
      %1883 = vst [vmem:[%s364 + $0x68] sm:$0xf] %v1851
      %1884 = vst [vmem:[%s364 + $0x6c] sm:$0xf] %v1852
      %1885 = vst [vmem:[%s364 + $0x70] sm:$0xf] %v1853
      %1886 = vst [vmem:[%s364 + $0x74] sm:$0xf] %v1854
      %1887 = vst [vmem:[%s364 + $0x78] sm:$0xf] %v1855
      %1888 = vst [vmem:[%s364 + $0x7c] sm:$0xf] %v1856
      %s1889 = smul.u32 32, %s22
      %p1890 = scmp.lt.s32.totalorder %s21, 1
      %s1891 = scalar_select %p1890, %s21, 1
      %p1892 = scmp.lt.s32.totalorder %s1889, 31
      %s1893 = scalar_select %p1892, %s1889, 31
      %p1894 = scmp.lt.s32.totalorder %s23, 0
      %s1895 = scalar_select %p1894, %s23, 0
      %s1896 = sadd.s32 %s1895, %s1893
      %s1897 = smul.addr %s1891, 32
      %s1898 = sadd.s32 %s1896, %s1897
      %s1899 = smul.addr %s1898, 4
      %s1900 = scalar_lea.vmem %s5, %s1899
      // Predicated region
      $region41: #{downblock_forward.6} parent=39 // pred_check
        %p1901 = pneg %p193
      $region42: #{downblock_forward.6} parent=39 // pred_check_branch
        %1903 = sbr.rel (%p1901) target = $region44
      $region43: #{downblock_forward.6} parent=39 // pred_region
        %s1904 = smul.u32 32, %s22
      $region44: #{downblock_forward.6} parent=39 // pred_fallthru
        _
    $region40: #{downblock_forward.6} parent=5 // pred_fallthru
      _
    %p1905 = scmp.le.s32.totalorder 2, %s11
    // Predicated region
    $region45: #{downblock_forward.6} parent=5 // pred_check
      %p1906 = pneg %p1905
    $region46: #{downblock_forward.6} parent=5 // pred_check_branch
      %1908 = sbr.rel (%p1906) target = $region48
    $region47: #{downblock_forward.6} parent=5 // pred_region
      %s1909 = ssub.s32 %s11, 2
      // Predicated region
      $region49: #{downblock_forward.6} parent=47 // pred_check
        %p1910 = pneg %p199
      $region50: #{downblock_forward.6} parent=47 // pred_check_branch
        %1912 = sbr.rel (%p1910) target = $region52
      $region51: #{downblock_forward.6} parent=47 // pred_region
        %s1913 = smul.u32 32, %s25
        %p1914 = scmp.lt.s32.totalorder %s24, 1
        %s1915 = scalar_select %p1914, %s24, 1
        %p1916 = scmp.lt.s32.totalorder %s1913, 31
        %s1917 = scalar_select %p1916, %s1913, 31
        %p1918 = scmp.lt.s32.totalorder %s26, 0
        %s1919 = scalar_select %p1918, %s26, 0
        %s1920 = sadd.s32 %s1919, %s1917
        %s1921 = smul.addr %s1915, 32
        %s1922 = sadd.s32 %s1920, %s1921
        %s1923 = smul.addr %s1922, 4
        %s1924 = scalar_lea.vmem %s5, %s1923
      $region52: #{downblock_forward.6} parent=47 // pred_fallthru
        _
    $region48: #{downblock_forward.6} parent=5 // pred_fallthru
      _
  $region6: #{downblock_forward.6} parent=0 // loop_footer
    %s15 = sadd.s32 1, %s11
  $region7: #{downblock_forward.6} parent=0 // loop_footer_branch
    %10 = sbr.rel target = $region3
  $region8: #{downblock_forward.6} parent=0 // loop_exit
    _

// kernel: downblock_forward.7
$region0: #{downblock_forward.7}
  #allocation0 [shape = 'u32[]', space=smem, size = 0x4, offset = 0x4, fixed_abs, tag = 'smem constant byte address 0x4 - core index']
  #allocation1 [shape = 'u32[72,128]{1,0:T(1,128)}', space=vmem, size = 0x9000, scoped, tag = 'internal scratch']
  %s0 = inlined_call_operand.vmem [shape: bf16[2,256,1152], index: 0, kind: input, shape index: {}]
  %s1 = inlined_call_operand.vmem [shape: bf16[1152,128], index: 1, kind: input, shape index: {}]
  %s2 = inlined_call_operand.vmem [shape: f32[2,1,1152], index: 2, kind: input, shape index: {}]
  %s3 = inlined_call_operand.vmem [shape: f32[2,1,128], index: 3, kind: input, shape index: {}]
  %s4 = inlined_call_operand.vmem [shape: f32[2,1,128], index: 4, kind: input, shape index: {}]
  %s5 = inlined_call_operand.vmem [shape: f32[2,256,128], index: 5, kind: output, shape index: {}]
  %s6 = sld [smem:[#allocation0]]
  $region53: #{downblock_forward.7} parent=0
    _
  %s8 = ssub.s32 1, %s6
  %s9 = scalar_select 0, %s8, %s6
  loop: start=0, step=1, limit=4
  $region2: #{downblock_forward.7} parent=0 // loop_pre_header
    _
  $region3: #{downblock_forward.7} parent=0 // loop_header
    %s11 = sphi 0, %s15
    %p12 = scmp.ge.s32.totalorder %s11, 4
    %s18 = sphi 0, %s37
    %s19 = sphi 0, %s33
    %s20 = sphi 0, %s29
    %s21 = sphi 0, %s18
    %s22 = sphi 0, %s19
    %s23 = sphi 0, %s20
    %s24 = sphi 0, %s21
    %s25 = sphi 0, %s22
    %s26 = sphi 0, %s23
    %s42 = sphi 0, %s44
    %s45 = sphi 0, %s42
    %s46 = sphi 0, %s45
    %s62 = sphi 0, %s46
    %s68 = sphi 0, %s70
    %s71 = sphi 0, %s68
    %s72 = sphi 0, %s71
    %s88 = sphi 0, %s72
    %s94 = sphi 0, %s96
    %s97 = sphi 0, %s94
    %s98 = sphi 0, %s97
    %s114 = sphi 0, %s98
    %s122 = sphi 0, %s124
    %s125 = sphi 0, %s122
    %s126 = sphi 0, %s125
    %s142 = sphi 0, %s126
    %s150 = sphi 0, %s152
    %s153 = sphi 0, %s150
    %s154 = sphi 0, %s153
    %s170 = sphi 0, %s154
    %s180 = sphi 0, %s182
    %s183 = sphi 0, %s180
    %s184 = sphi 0, %s183
    %s200 = sphi 0, %s184
  $region4: #{downblock_forward.7} parent=0 // loop_header_branch
    %14 = sbr.rel (%p12) target = $region8
  $region5: #{downblock_forward.7} parent=0 // loop_body
    %s16 = ssub.s32 %s11, 1
    %s17 = ssub.s32 %s11, 2
    %s27 = sadd.s32 1, %s20
    %p28 = scmp.ge.s32.totalorder %s27, 1
    %s29 = scalar_select %p28, 0, %s27
    %s30 = sadd.s32 1, %s19
    %s31 = scalar_select %p28, %s30, %s19
    %p32 = scmp.ge.s32.totalorder %s31, 1
    %s33 = scalar_select %p32, 0, %s31
    %s34 = sadd.s32 1, %s18
    %s35 = scalar_select %p32, %s34, %s18
    %p36 = scmp.ge.s32.totalorder %s35, 2
    %s37 = scalar_select %p36, 0, %s35
    %s38 = ssub.s32 %s18, %s37
    %s39 = ssub.s32 %s19, %s33
    %s40 = sor.u32 %s38, %s39
    %p41 = scmp.eq.s32.totalorder %s40, 0
    %s43 = sadd.s32 %s42, 1
    %s44 = scalar_select %p41, %s42, %s43
    %p47 = pneg %p41
    %p48 = scmp.eq.s32.totalorder %s11, 1
    %p49 = por %p47, %p48
    %p50 = scmp.ne.s32.totalorder %s42, %s45
    %p51 = scmp.eq.s32.totalorder %s11, 0
    %p52 = por %p50, %p51
    %p53 = scmp.ne.s32.totalorder %s42, %s45
    %p54 = scmp.eq.s32.totalorder %s16, 1
    %p55 = por %p53, %p54
    %p56 = scmp.ne.s32.totalorder %s45, %s46
    %p57 = scmp.eq.s32.totalorder %s16, 0
    %p58 = por %p56, %p57
    %p59 = scmp.ne.s32.totalorder %s45, %s46
    %p60 = scmp.eq.s32.totalorder %s17, 1
    %p61 = por %p59, %p60
    %p63 = scmp.ne.s32.totalorder %s46, %s62
    %p64 = scmp.eq.s32.totalorder %s17, 0
    %p65 = por %p63, %p64
    %s66 = ssub.s32 %s20, %s29
    %p67 = scmp.eq.s32.totalorder %s66, 0
    %s69 = sadd.s32 %s68, 1
    %s70 = scalar_select %p67, %s68, %s69
    %p73 = pneg %p67
    %p74 = scmp.eq.s32.totalorder %s11, 1
    %p75 = por %p73, %p74
    %p76 = scmp.ne.s32.totalorder %s68, %s71
    %p77 = scmp.eq.s32.totalorder %s11, 0
    %p78 = por %p76, %p77
    %p79 = scmp.ne.s32.totalorder %s68, %s71
    %p80 = scmp.eq.s32.totalorder %s16, 1
    %p81 = por %p79, %p80
    %p82 = scmp.ne.s32.totalorder %s71, %s72
    %p83 = scmp.eq.s32.totalorder %s16, 0
    %p84 = por %p82, %p83
    %p85 = scmp.ne.s32.totalorder %s71, %s72
    %p86 = scmp.eq.s32.totalorder %s17, 1
    %p87 = por %p85, %p86
    %p89 = scmp.ne.s32.totalorder %s72, %s88
    %p90 = scmp.eq.s32.totalorder %s17, 0
    %p91 = por %p89, %p90
    %s92 = ssub.s32 %s18, %s37
    %p93 = scmp.eq.s32.totalorder %s92, 0
    %s95 = sadd.s32 %s94, 1
    %s96 = scalar_select %p93, %s94, %s95
    %p99 = pneg %p93
    %p100 = scmp.eq.s32.totalorder %s11, 1
    %p101 = por %p99, %p100
    %p102 = scmp.ne.s32.totalorder %s94, %s97
    %p103 = scmp.eq.s32.totalorder %s11, 0
    %p104 = por %p102, %p103
    %p105 = scmp.ne.s32.totalorder %s94, %s97
    %p106 = scmp.eq.s32.totalorder %s16, 1
    %p107 = por %p105, %p106
    %p108 = scmp.ne.s32.totalorder %s97, %s98
    %p109 = scmp.eq.s32.totalorder %s16, 0
    %p110 = por %p108, %p109
    %p111 = scmp.ne.s32.totalorder %s97, %s98
    %p112 = scmp.eq.s32.totalorder %s17, 1
    %p113 = por %p111, %p112
    %p115 = scmp.ne.s32.totalorder %s98, %s114
    %p116 = scmp.eq.s32.totalorder %s17, 0
    %p117 = por %p115, %p116
    %s118 = ssub.s32 %s18, %s37
    %s119 = ssub.s32 %s20, %s29
    %s120 = sor.u32 %s118, %s119
    %p121 = scmp.eq.s32.totalorder %s120, 0
    %s123 = sadd.s32 %s122, 1
    %s124 = scalar_select %p121, %s122, %s123
    %p127 = pneg %p121
    %p128 = scmp.eq.s32.totalorder %s11, 1
    %p129 = por %p127, %p128
    %p130 = scmp.ne.s32.totalorder %s122, %s125
    %p131 = scmp.eq.s32.totalorder %s11, 0
    %p132 = por %p130, %p131
    %p133 = scmp.ne.s32.totalorder %s122, %s125
    %p134 = scmp.eq.s32.totalorder %s16, 1
    %p135 = por %p133, %p134
    %p136 = scmp.ne.s32.totalorder %s125, %s126
    %p137 = scmp.eq.s32.totalorder %s16, 0
    %p138 = por %p136, %p137
    %p139 = scmp.ne.s32.totalorder %s125, %s126
    %p140 = scmp.eq.s32.totalorder %s17, 1
    %p141 = por %p139, %p140
    %p143 = scmp.ne.s32.totalorder %s126, %s142
    %p144 = scmp.eq.s32.totalorder %s17, 0
    %p145 = por %p143, %p144
    %s146 = ssub.s32 %s18, %s37
    %s147 = ssub.s32 %s20, %s29
    %s148 = sor.u32 %s146, %s147
    %p149 = scmp.eq.s32.totalorder %s148, 0
    %s151 = sadd.s32 %s150, 1
    %s152 = scalar_select %p149, %s150, %s151
    %p155 = pneg %p149
    %p156 = scmp.eq.s32.totalorder %s11, 1
    %p157 = por %p155, %p156
    %p158 = scmp.ne.s32.totalorder %s150, %s153
    %p159 = scmp.eq.s32.totalorder %s11, 0
    %p160 = por %p158, %p159
    %p161 = scmp.ne.s32.totalorder %s150, %s153
    %p162 = scmp.eq.s32.totalorder %s16, 1
    %p163 = por %p161, %p162
    %p164 = scmp.ne.s32.totalorder %s153, %s154
    %p165 = scmp.eq.s32.totalorder %s16, 0
    %p166 = por %p164, %p165
    %p167 = scmp.ne.s32.totalorder %s153, %s154
    %p168 = scmp.eq.s32.totalorder %s17, 1
    %p169 = por %p167, %p168
    %p171 = scmp.ne.s32.totalorder %s154, %s170
    %p172 = scmp.eq.s32.totalorder %s17, 0
    %p173 = por %p171, %p172
    %s174 = ssub.s32 %s18, %s37
    %s175 = ssub.s32 %s19, %s33
    %s176 = sor.u32 %s174, %s175
    %s177 = ssub.s32 %s20, %s29
    %s178 = sor.u32 %s176, %s177
    %p179 = scmp.eq.s32.totalorder %s178, 0
    %s181 = sadd.s32 %s180, 1
    %s182 = scalar_select %p179, %s180, %s181
    %p185 = pneg %p179
    %p186 = scmp.eq.s32.totalorder %s11, 1
    %p187 = por %p185, %p186
    %p188 = scmp.ne.s32.totalorder %s180, %s183
    %p189 = scmp.eq.s32.totalorder %s11, 0
    %p190 = por %p188, %p189
    %p191 = scmp.ne.s32.totalorder %s180, %s183
    %p192 = scmp.eq.s32.totalorder %s16, 1
    %p193 = por %p191, %p192
    %p194 = scmp.ne.s32.totalorder %s183, %s184
    %p195 = scmp.eq.s32.totalorder %s16, 0
    %p196 = por %p194, %p195
    %p197 = scmp.ne.s32.totalorder %s183, %s184
    %p198 = scmp.eq.s32.totalorder %s17, 1
    %p199 = por %p197, %p198
    %p201 = scmp.ne.s32.totalorder %s184, %s200
    %p202 = scmp.eq.s32.totalorder %s17, 0
    %p203 = por %p201, %p202
    %p204 = scmp.le.s32.totalorder 1, %s11
    %p205 = scmp.lt.s32.totalorder %s11, 3
    %p206 = pnand %p204, %p205
    %p207 = pneg %p206
    // Predicated region
    $region9: #{downblock_forward.7} parent=5 // pred_check
      _
    $region10: #{downblock_forward.7} parent=5 // pred_check_branch
      %209 = sbr.rel (%p206) target = $region12
    $region11: #{downblock_forward.7} parent=5 // pred_region
      %s210 = ssub.s32 %s11, 1
      // Predicated region
      $region13: #{downblock_forward.7} parent=11 // pred_check
        %p211 = pneg %p84
      $region14: #{downblock_forward.7} parent=11 // pred_check_branch
        %213 = sbr.rel (%p211) target = $region16
      $region15: #{downblock_forward.7} parent=11 // pred_region
        %p214 = scmp.lt.s32.totalorder %s23, 0
        %s215 = scalar_select %p214, %s23, 0
        %s216 = smul.addr %s215, 4
        %s217 = scalar_lea.vmem %s1, %s216
      $region16: #{downblock_forward.7} parent=11 // pred_fallthru
        _
    $region12: #{downblock_forward.7} parent=5 // pred_fallthru
      _
    %p218 = scmp.lt.s32.totalorder %s11, 2
    // Predicated region
    $region17: #{downblock_forward.7} parent=5 // pred_check
      %p219 = pneg %p218
    $region18: #{downblock_forward.7} parent=5 // pred_check_branch
      %221 = sbr.rel (%p219) target = $region20
    $region19: #{downblock_forward.7} parent=5 // pred_region
      // Predicated region
      $region21: #{downblock_forward.7} parent=19 // pred_check
        %p222 = pneg %p52
      $region22: #{downblock_forward.7} parent=19 // pred_check_branch
        %224 = sbr.rel (%p222) target = $region24
      $region23: #{downblock_forward.7} parent=19 // pred_region
        %s225 = smul.u32 32, %s19
        %p226 = scmp.lt.s32.totalorder %s18, 1
        %s227 = scalar_select %p226, %s18, 1
        %p228 = scmp.lt.s32.totalorder %s225, 31
        %s229 = scalar_select %p228, %s225, 31
        %s230 = smul.addr %s229, 9
        %s231 = smul.addr %s227, 288
        %s232 = sadd.s32 %s230, %s231
        %s233 = smul.addr %s232, 4
        %s234 = scalar_lea.vmem %s0, %s233
        %s235 = smul.u32 32, %s19
      $region24: #{downblock_forward.7} parent=19 // pred_fallthru
        _
      // Predicated region
      $region25: #{downblock_forward.7} parent=19 // pred_check
        %p236 = pneg %p104
      $region26: #{downblock_forward.7} parent=19 // pred_check_branch
        %238 = sbr.rel (%p236) target = $region28
      $region27: #{downblock_forward.7} parent=19 // pred_region
        %p239 = scmp.lt.s32.totalorder %s18, 1
        %s240 = scalar_select %p239, %s18, 1
        %s241 = smul.addr %s240, 9
        %s242 = scalar_lea.vmem %s2, %s241
      $region28: #{downblock_forward.7} parent=19 // pred_fallthru
        _
      // Predicated region
      $region29: #{downblock_forward.7} parent=19 // pred_check
        %p243 = pneg %p132
      $region30: #{downblock_forward.7} parent=19 // pred_check_branch
        %245 = sbr.rel (%p243) target = $region32
      $region31: #{downblock_forward.7} parent=19 // pred_region
        %p246 = scmp.lt.s32.totalorder %s18, 1
        %s247 = scalar_select %p246, %s18, 1
        %p248 = scmp.lt.s32.totalorder %s20, 0
        %s249 = scalar_select %p248, %s20, 0
        %s250 = sadd.s32 %s249, %s247
        %s251 = scalar_lea.vmem %s3, %s250
      $region32: #{downblock_forward.7} parent=19 // pred_fallthru
        _
      // Predicated region
      $region33: #{downblock_forward.7} parent=19 // pred_check
        %p252 = pneg %p160
      $region34: #{downblock_forward.7} parent=19 // pred_check_branch
        %254 = sbr.rel (%p252) target = $region36
      $region35: #{downblock_forward.7} parent=19 // pred_region
        %p255 = scmp.lt.s32.totalorder %s18, 1
        %s256 = scalar_select %p255, %s18, 1
        %p257 = scmp.lt.s32.totalorder %s20, 0
        %s258 = scalar_select %p257, %s20, 0
        %s259 = sadd.s32 %s258, %s256
        %s260 = scalar_lea.vmem %s4, %s259
      $region36: #{downblock_forward.7} parent=19 // pred_fallthru
        _
    $region20: #{downblock_forward.7} parent=5 // pred_fallthru
      _
    %p261 = scmp.le.s32.totalorder 1, %s11
    %p262 = scmp.lt.s32.totalorder %s11, 3
    %p263 = pnand %p261, %p262
    %p264 = pneg %p263
    // Predicated region
    $region37: #{downblock_forward.7} parent=5 // pred_check
      _
    $region38: #{downblock_forward.7} parent=5 // pred_check_branch
      %266 = sbr.rel (%p263) target = $region40
    $region39: #{downblock_forward.7} parent=5 // pred_region
      %s267 = ssub.s32 %s11, 1
      %s268 = smul.u32 32, %s22
      %p269 = scmp.lt.s32.totalorder %s21, 1
      %s270 = scalar_select %p269, %s21, 1
      %p271 = scmp.lt.s32.totalorder %s268, 31
      %s272 = scalar_select %p271, %s268, 31
      %s273 = smul.addr %s272, 9
      %s274 = smul.addr %s270, 288
      %s275 = sadd.s32 %s273, %s274
      %s276 = smul.addr %s275, 4
      %s277 = scalar_lea.vmem %s0, %s276
      %p278 = pneg %p58
      %p279 = pneg %p55
      %p280 = scmp.lt.s32.totalorder %s23, 0
      %s281 = scalar_select %p280, %s23, 0
      %s282 = smul.addr %s281, 4
      %s283 = scalar_lea.vmem %s1, %s282
      %p284 = pneg %p84
      %p285 = pneg %p81
      %p286 = scmp.lt.s32.totalorder %s21, 1
      %s287 = scalar_select %p286, %s21, 1
      %s288 = smul.addr %s287, 9
      %s289 = scalar_lea.vmem %s2, %s288
      %p290 = pneg %p110
      %p291 = pneg %p107
      %p292 = scmp.lt.s32.totalorder %s21, 1
      %s293 = scalar_select %p292, %s21, 1
      %p294 = scmp.lt.s32.totalorder %s23, 0
      %s295 = scalar_select %p294, %s23, 0
      %s296 = sadd.s32 %s295, %s293
      %s297 = scalar_lea.vmem %s3, %s296
      %p298 = pneg %p138
      %p299 = pneg %p135
      %p300 = scmp.lt.s32.totalorder %s21, 1
      %s301 = scalar_select %p300, %s21, 1
      %p302 = scmp.lt.s32.totalorder %s23, 0
      %s303 = scalar_select %p302, %s23, 0
      %s304 = sadd.s32 %s303, %s301
      %s305 = scalar_lea.vmem %s4, %s304
      %p306 = pneg %p166
      %p307 = pneg %p163
      %p308 = pneg %p196
      %p309 = pneg %p193
      %s310 = smul.u32 32, %s22
      %p311 = scmp.lt.s32.totalorder %s21, 1
      %s312 = scalar_select %p311, %s21, 1
      %p313 = scmp.lt.s32.totalorder %s310, 31
      %s314 = scalar_select %p313, %s310, 31
      %p315 = scmp.lt.s32.totalorder %s23, 0
      %s316 = scalar_select %p315, %s23, 0
      %s317 = sadd.s32 %s316, %s314
      %s318 = smul.addr %s312, 32
      %s319 = sadd.s32 %s317, %s318
      %s320 = smul.addr %s319, 8
      %s321 = scalar_lea.vmem %s5, %s320
      %s322 = smul.u32 32, %s22
      %p323 = scmp.lt.s32.totalorder %s21, 1
      %s324 = scalar_select %p323, %s21, 1
      %p325 = scmp.lt.s32.totalorder %s322, 31
      %s326 = scalar_select %p325, %s322, 31
      %s327 = smul.addr %s326, 9
      %s328 = smul.addr %s324, 288
      %s329 = sadd.s32 %s327, %s328
      %s330 = smul.addr %s329, 4
      %s331 = scalar_lea.vmem %s0, %s330
      %s332 = smul.u32 32, %s22
      %p333 = scmp.lt.s32.totalorder %s23, 0
      %s334 = scalar_select %p333, %s23, 0
      %s335 = smul.addr %s334, 4
      %s336 = scalar_lea.vmem %s1, %s335
      %p337 = scmp.lt.s32.totalorder %s21, 1
      %s338 = scalar_select %p337, %s21, 1
      %s339 = smul.addr %s338, 9
      %s340 = scalar_lea.vmem %s2, %s339
      %p341 = scmp.lt.s32.totalorder %s21, 1
      %s342 = scalar_select %p341, %s21, 1
      %p343 = scmp.lt.s32.totalorder %s23, 0
      %s344 = scalar_select %p343, %s23, 0
      %s345 = sadd.s32 %s344, %s342
      %s346 = scalar_lea.vmem %s3, %s345
      %p347 = scmp.lt.s32.totalorder %s21, 1
      %s348 = scalar_select %p347, %s21, 1
      %p349 = scmp.lt.s32.totalorder %s23, 0
      %s350 = scalar_select %p349, %s23, 0
      %s351 = sadd.s32 %s350, %s348
      %s352 = scalar_lea.vmem %s4, %s351
      %s353 = smul.u32 32, %s22
      %p354 = scmp.lt.s32.totalorder %s21, 1
      %s355 = scalar_select %p354, %s21, 1
      %p356 = scmp.lt.s32.totalorder %s353, 31
      %s357 = scalar_select %p356, %s353, 31
      %p358 = scmp.lt.s32.totalorder %s23, 0
      %s359 = scalar_select %p358, %s23, 0
      %s360 = sadd.s32 %s359, %s357
      %s361 = smul.addr %s355, 32
      %s362 = sadd.s32 %s360, %s361
      %s363 = smul.addr %s362, 8
      %s364 = scalar_lea.vmem %s5, %s363
      %s365 = smul.u32 32, %s22
      %v366 = vld [vmem:[%s331] sm:$0xff]
      %v367 = vld [vmem:[%s331 + $0x8] sm:$0xff]
      %v368 = vld [vmem:[%s331 + $0x10] sm:$0xff]
      %v369 = vld [vmem:[%s331 + $0x18] sm:$0xff]
      %v370 = vld [vmem:[%s331 + $0x20] sm:$0xf]
      %v371 = vld [vmem:[%s331 + $0x24] sm:$0xff]
      %v372 = vld [vmem:[%s331 + $0x2c] sm:$0xff]
      %v373 = vld [vmem:[%s331 + $0x34] sm:$0xff]
      %v374 = vld [vmem:[%s331 + $0x3c] sm:$0xff]
      %v375 = vld [vmem:[%s331 + $0x44] sm:$0xf]
      %v376 = vld [vmem:[%s331 + $0x48] sm:$0xff]
      %v377 = vld [vmem:[%s331 + $0x50] sm:$0xff]
      %v378 = vld [vmem:[%s331 + $0x58] sm:$0xff]
      %v379 = vld [vmem:[%s331 + $0x60] sm:$0xff]
      %v380 = vld [vmem:[%s331 + $0x68] sm:$0xf]
      %v381 = vld [vmem:[%s331 + $0x6c] sm:$0xff]
      %v382 = vld [vmem:[%s331 + $0x74] sm:$0xff]
      %v383 = vld [vmem:[%s331 + $0x7c] sm:$0xff]
      %v384 = vld [vmem:[%s331 + $0x84] sm:$0xff]
      %v385 = vld [vmem:[%s331 + $0x8c] sm:$0xf]
      %v386 = vld [vmem:[%s331 + $0x90] sm:$0xff]
      %v387 = vld [vmem:[%s331 + $0x98] sm:$0xff]
      %v388 = vld [vmem:[%s331 + $0xa0] sm:$0xff]
      %v389 = vld [vmem:[%s331 + $0xa8] sm:$0xff]
      %v390 = vld [vmem:[%s331 + $0xb0] sm:$0xf]
      %v391 = vld [vmem:[%s331 + $0xb4] sm:$0xff]
      %v392 = vld [vmem:[%s331 + $0xbc] sm:$0xff]
      %v393 = vld [vmem:[%s331 + $0xc4] sm:$0xff]
      %v394 = vld [vmem:[%s331 + $0xcc] sm:$0xff]
      %v395 = vld [vmem:[%s331 + $0xd4] sm:$0xf]
      %v396 = vld [vmem:[%s331 + $0xd8] sm:$0xff]
      %v397 = vld [vmem:[%s331 + $0xe0] sm:$0xff]
      %v398 = vld [vmem:[%s331 + $0xe8] sm:$0xff]
      %v399 = vld [vmem:[%s331 + $0xf0] sm:$0xff]
      %v400 = vld [vmem:[%s331 + $0xf8] sm:$0xf]
      %v401 = vld [vmem:[%s331 + $0xfc] sm:$0xff]
      %v402 = vld [vmem:[%s331 + $0x104] sm:$0xff]
      %v403 = vld [vmem:[%s331 + $0x10c] sm:$0xff]
      %v404 = vld [vmem:[%s331 + $0x114] sm:$0xff]
      %v405 = vld [vmem:[%s331 + $0x11c] sm:$0xf]
      %v406 = vld [vmem:[%s331 + $0x120] sm:$0xff]
      %v407 = vld [vmem:[%s331 + $0x128] sm:$0xff]
      %v408 = vld [vmem:[%s331 + $0x130] sm:$0xff]
      %v409 = vld [vmem:[%s331 + $0x138] sm:$0xff]
      %v410 = vld [vmem:[%s331 + $0x140] sm:$0xf]
      %v411 = vld [vmem:[%s331 + $0x144] sm:$0xff]
      %v412 = vld [vmem:[%s331 + $0x14c] sm:$0xff]
      %v413 = vld [vmem:[%s331 + $0x154] sm:$0xff]
      %v414 = vld [vmem:[%s331 + $0x15c] sm:$0xff]
      %v415 = vld [vmem:[%s331 + $0x164] sm:$0xf]
      %v416 = vld [vmem:[%s331 + $0x168] sm:$0xff]
      %v417 = vld [vmem:[%s331 + $0x170] sm:$0xff]
      %v418 = vld [vmem:[%s331 + $0x178] sm:$0xff]
      %v419 = vld [vmem:[%s331 + $0x180] sm:$0xff]
      %v420 = vld [vmem:[%s331 + $0x188] sm:$0xf]
      %v421 = vld [vmem:[%s331 + $0x18c] sm:$0xff]
      %v422 = vld [vmem:[%s331 + $0x194] sm:$0xff]
      %v423 = vld [vmem:[%s331 + $0x19c] sm:$0xff]
      %v424 = vld [vmem:[%s331 + $0x1a4] sm:$0xff]
      %v425 = vld [vmem:[%s331 + $0x1ac] sm:$0xf]
      %v426 = vld [vmem:[%s331 + $0x1b0] sm:$0xff]
      %v427 = vld [vmem:[%s331 + $0x1b8] sm:$0xff]
      %v428 = vld [vmem:[%s331 + $0x1c0] sm:$0xff]
      %v429 = vld [vmem:[%s331 + $0x1c8] sm:$0xff]
      %v430 = vld [vmem:[%s331 + $0x1d0] sm:$0xf]
      %v431 = vld [vmem:[%s331 + $0x1d4] sm:$0xff]
      %v432 = vld [vmem:[%s331 + $0x1dc] sm:$0xff]
      %v433 = vld [vmem:[%s331 + $0x1e4] sm:$0xff]
      %v434 = vld [vmem:[%s331 + $0x1ec] sm:$0xff]
      %v435 = vld [vmem:[%s331 + $0x1f4] sm:$0xf]
      %v436 = vld [vmem:[%s331 + $0x1f8] sm:$0xff]
      %v437 = vld [vmem:[%s331 + $0x200] sm:$0xff]
      %v438 = vld [vmem:[%s331 + $0x208] sm:$0xff]
      %v439 = vld [vmem:[%s331 + $0x210] sm:$0xff]
      %v440 = vld [vmem:[%s331 + $0x218] sm:$0xf]
      %v441 = vld [vmem:[%s331 + $0x21c] sm:$0xff]
      %v442 = vld [vmem:[%s331 + $0x224] sm:$0xff]
      %v443 = vld [vmem:[%s331 + $0x22c] sm:$0xff]
      %v444 = vld [vmem:[%s331 + $0x234] sm:$0xff]
      %v445 = vld [vmem:[%s331 + $0x23c] sm:$0xf]
      %v446 = vld [vmem:[%s331 + $0x240] sm:$0xff]
      %v447 = vld [vmem:[%s331 + $0x248] sm:$0xff]
      %v448 = vld [vmem:[%s331 + $0x250] sm:$0xff]
      %v449 = vld [vmem:[%s331 + $0x258] sm:$0xff]
      %v450 = vld [vmem:[%s331 + $0x260] sm:$0xf]
      %v451 = vld [vmem:[%s331 + $0x264] sm:$0xff]
      %v452 = vld [vmem:[%s331 + $0x26c] sm:$0xff]
      %v453 = vld [vmem:[%s331 + $0x274] sm:$0xff]
      %v454 = vld [vmem:[%s331 + $0x27c] sm:$0xff]
      %v455 = vld [vmem:[%s331 + $0x284] sm:$0xf]
      %v456 = vld [vmem:[%s331 + $0x288] sm:$0xff]
      %v457 = vld [vmem:[%s331 + $0x290] sm:$0xff]
      %v458 = vld [vmem:[%s331 + $0x298] sm:$0xff]
      %v459 = vld [vmem:[%s331 + $0x2a0] sm:$0xff]
      %v460 = vld [vmem:[%s331 + $0x2a8] sm:$0xf]
      %v461 = vld [vmem:[%s331 + $0x2ac] sm:$0xff]
      %v462 = vld [vmem:[%s331 + $0x2b4] sm:$0xff]
      %v463 = vld [vmem:[%s331 + $0x2bc] sm:$0xff]
      %v464 = vld [vmem:[%s331 + $0x2c4] sm:$0xff]
      %v465 = vld [vmem:[%s331 + $0x2cc] sm:$0xf]
      %v466 = vld [vmem:[%s331 + $0x2d0] sm:$0xff]
      %v467 = vld [vmem:[%s331 + $0x2d8] sm:$0xff]
      %v468 = vld [vmem:[%s331 + $0x2e0] sm:$0xff]
      %v469 = vld [vmem:[%s331 + $0x2e8] sm:$0xff]
      %v470 = vld [vmem:[%s331 + $0x2f0] sm:$0xf]
      %v471 = vld [vmem:[%s331 + $0x2f4] sm:$0xff]
      %v472 = vld [vmem:[%s331 + $0x2fc] sm:$0xff]
      %v473 = vld [vmem:[%s331 + $0x304] sm:$0xff]
      %v474 = vld [vmem:[%s331 + $0x30c] sm:$0xff]
      %v475 = vld [vmem:[%s331 + $0x314] sm:$0xf]
      %v476 = vld [vmem:[%s331 + $0x318] sm:$0xff]
      %v477 = vld [vmem:[%s331 + $0x320] sm:$0xff]
      %v478 = vld [vmem:[%s331 + $0x328] sm:$0xff]
      %v479 = vld [vmem:[%s331 + $0x330] sm:$0xff]
      %v480 = vld [vmem:[%s331 + $0x338] sm:$0xf]
      %v481 = vld [vmem:[%s331 + $0x33c] sm:$0xff]
      %v482 = vld [vmem:[%s331 + $0x344] sm:$0xff]
      %v483 = vld [vmem:[%s331 + $0x34c] sm:$0xff]
      %v484 = vld [vmem:[%s331 + $0x354] sm:$0xff]
      %v485 = vld [vmem:[%s331 + $0x35c] sm:$0xf]
      %v486 = vld [vmem:[%s331 + $0x360] sm:$0xff]
      %v487 = vld [vmem:[%s331 + $0x368] sm:$0xff]
      %v488 = vld [vmem:[%s331 + $0x370] sm:$0xff]
      %v489 = vld [vmem:[%s331 + $0x378] sm:$0xff]
      %v490 = vld [vmem:[%s331 + $0x380] sm:$0xf]
      %v491 = vld [vmem:[%s331 + $0x384] sm:$0xff]
      %v492 = vld [vmem:[%s331 + $0x38c] sm:$0xff]
      %v493 = vld [vmem:[%s331 + $0x394] sm:$0xff]
      %v494 = vld [vmem:[%s331 + $0x39c] sm:$0xff]
      %v495 = vld [vmem:[%s331 + $0x3a4] sm:$0xf]
      %v496 = vld [vmem:[%s331 + $0x3a8] sm:$0xff]
      %v497 = vld [vmem:[%s331 + $0x3b0] sm:$0xff]
      %v498 = vld [vmem:[%s331 + $0x3b8] sm:$0xff]
      %v499 = vld [vmem:[%s331 + $0x3c0] sm:$0xff]
      %v500 = vld [vmem:[%s331 + $0x3c8] sm:$0xf]
      %v501 = vld [vmem:[%s331 + $0x3cc] sm:$0xff]
      %v502 = vld [vmem:[%s331 + $0x3d4] sm:$0xff]
      %v503 = vld [vmem:[%s331 + $0x3dc] sm:$0xff]
      %v504 = vld [vmem:[%s331 + $0x3e4] sm:$0xff]
      %v505 = vld [vmem:[%s331 + $0x3ec] sm:$0xf]
      %v506 = vld [vmem:[%s331 + $0x3f0] sm:$0xff]
      %v507 = vld [vmem:[%s331 + $0x3f8] sm:$0xff]
      %v508 = vld [vmem:[%s331 + $0x400] sm:$0xff]
      %v509 = vld [vmem:[%s331 + $0x408] sm:$0xff]
      %v510 = vld [vmem:[%s331 + $0x410] sm:$0xf]
      %v511 = vld [vmem:[%s331 + $0x414] sm:$0xff]
      %v512 = vld [vmem:[%s331 + $0x41c] sm:$0xff]
      %v513 = vld [vmem:[%s331 + $0x424] sm:$0xff]
      %v514 = vld [vmem:[%s331 + $0x42c] sm:$0xff]
      %v515 = vld [vmem:[%s331 + $0x434] sm:$0xf]
      %v516 = vld [vmem:[%s331 + $0x438] sm:$0xff]
      %v517 = vld [vmem:[%s331 + $0x440] sm:$0xff]
      %v518 = vld [vmem:[%s331 + $0x448] sm:$0xff]
      %v519 = vld [vmem:[%s331 + $0x450] sm:$0xff]
      %v520 = vld [vmem:[%s331 + $0x458] sm:$0xf]
      %v521 = vld [vmem:[%s331 + $0x45c] sm:$0xff]
      %v522 = vld [vmem:[%s331 + $0x464] sm:$0xff]
      %v523 = vld [vmem:[%s331 + $0x46c] sm:$0xff]
      %v524 = vld [vmem:[%s331 + $0x474] sm:$0xff]
      %v525 = vld [vmem:[%s331 + $0x47c] sm:$0xf]
      %v526 = vunpack.c.l.bf16 %v366
      %v527 = vunpack.c.h.bf16 %v366
      %v528 = vunpack.c.l.bf16 %v367
      %v529 = vunpack.c.h.bf16 %v367
      %v530 = vunpack.c.l.bf16 %v368
      %v531 = vunpack.c.h.bf16 %v368
      %v532 = vunpack.c.l.bf16 %v369
      %v533 = vunpack.c.h.bf16 %v369
      %v534 = vunpack.c.l.bf16 %v370
      %v535 = vunpack.c.l.bf16 %v371
      %v536 = vunpack.c.h.bf16 %v371
      %v537 = vunpack.c.l.bf16 %v372
      %v538 = vunpack.c.h.bf16 %v372
      %v539 = vunpack.c.l.bf16 %v373
      %v540 = vunpack.c.h.bf16 %v373
      %v541 = vunpack.c.l.bf16 %v374
      %v542 = vunpack.c.h.bf16 %v374
      %v543 = vunpack.c.l.bf16 %v375
      %v544 = vunpack.c.l.bf16 %v376
      %v545 = vunpack.c.h.bf16 %v376
      %v546 = vunpack.c.l.bf16 %v377
      %v547 = vunpack.c.h.bf16 %v377
      %v548 = vunpack.c.l.bf16 %v378
      %v549 = vunpack.c.h.bf16 %v378
      %v550 = vunpack.c.l.bf16 %v379
      %v551 = vunpack.c.h.bf16 %v379
      %v552 = vunpack.c.l.bf16 %v380
      %v553 = vunpack.c.l.bf16 %v381
      %v554 = vunpack.c.h.bf16 %v381
      %v555 = vunpack.c.l.bf16 %v382
      %v556 = vunpack.c.h.bf16 %v382
      %v557 = vunpack.c.l.bf16 %v383
      %v558 = vunpack.c.h.bf16 %v383
      %v559 = vunpack.c.l.bf16 %v384
      %v560 = vunpack.c.h.bf16 %v384
      %v561 = vunpack.c.l.bf16 %v385
      %v562 = vunpack.c.l.bf16 %v386
      %v563 = vunpack.c.h.bf16 %v386
      %v564 = vunpack.c.l.bf16 %v387
      %v565 = vunpack.c.h.bf16 %v387
      %v566 = vunpack.c.l.bf16 %v388
      %v567 = vunpack.c.h.bf16 %v388
      %v568 = vunpack.c.l.bf16 %v389
      %v569 = vunpack.c.h.bf16 %v389
      %v570 = vunpack.c.l.bf16 %v390
      %v571 = vunpack.c.l.bf16 %v391
      %v572 = vunpack.c.h.bf16 %v391
      %v573 = vunpack.c.l.bf16 %v392
      %v574 = vunpack.c.h.bf16 %v392
      %v575 = vunpack.c.l.bf16 %v393
      %v576 = vunpack.c.h.bf16 %v393
      %v577 = vunpack.c.l.bf16 %v394
      %v578 = vunpack.c.h.bf16 %v394
      %v579 = vunpack.c.l.bf16 %v395
      %v580 = vunpack.c.l.bf16 %v396
      %v581 = vunpack.c.h.bf16 %v396
      %v582 = vunpack.c.l.bf16 %v397
      %v583 = vunpack.c.h.bf16 %v397
      %v584 = vunpack.c.l.bf16 %v398
      %v585 = vunpack.c.h.bf16 %v398
      %v586 = vunpack.c.l.bf16 %v399
      %v587 = vunpack.c.h.bf16 %v399
      %v588 = vunpack.c.l.bf16 %v400
      %v589 = vunpack.c.l.bf16 %v401
      %v590 = vunpack.c.h.bf16 %v401
      %v591 = vunpack.c.l.bf16 %v402
      %v592 = vunpack.c.h.bf16 %v402
      %v593 = vunpack.c.l.bf16 %v403
      %v594 = vunpack.c.h.bf16 %v403
      %v595 = vunpack.c.l.bf16 %v404
      %v596 = vunpack.c.h.bf16 %v404
      %v597 = vunpack.c.l.bf16 %v405
      %v598 = vunpack.c.l.bf16 %v406
      %v599 = vunpack.c.h.bf16 %v406
      %v600 = vunpack.c.l.bf16 %v407
      %v601 = vunpack.c.h.bf16 %v407
      %v602 = vunpack.c.l.bf16 %v408
      %v603 = vunpack.c.h.bf16 %v408
      %v604 = vunpack.c.l.bf16 %v409
      %v605 = vunpack.c.h.bf16 %v409
      %v606 = vunpack.c.l.bf16 %v410
      %v607 = vunpack.c.l.bf16 %v411
      %v608 = vunpack.c.h.bf16 %v411
      %v609 = vunpack.c.l.bf16 %v412
      %v610 = vunpack.c.h.bf16 %v412
      %v611 = vunpack.c.l.bf16 %v413
      %v612 = vunpack.c.h.bf16 %v413
      %v613 = vunpack.c.l.bf16 %v414
      %v614 = vunpack.c.h.bf16 %v414
      %v615 = vunpack.c.l.bf16 %v415
      %v616 = vunpack.c.l.bf16 %v416
      %v617 = vunpack.c.h.bf16 %v416
      %v618 = vunpack.c.l.bf16 %v417
      %v619 = vunpack.c.h.bf16 %v417
      %v620 = vunpack.c.l.bf16 %v418
      %v621 = vunpack.c.h.bf16 %v418
      %v622 = vunpack.c.l.bf16 %v419
      %v623 = vunpack.c.h.bf16 %v419
      %v624 = vunpack.c.l.bf16 %v420
      %v625 = vunpack.c.l.bf16 %v421
      %v626 = vunpack.c.h.bf16 %v421
      %v627 = vunpack.c.l.bf16 %v422
      %v628 = vunpack.c.h.bf16 %v422
      %v629 = vunpack.c.l.bf16 %v423
      %v630 = vunpack.c.h.bf16 %v423
      %v631 = vunpack.c.l.bf16 %v424
      %v632 = vunpack.c.h.bf16 %v424
      %v633 = vunpack.c.l.bf16 %v425
      %v634 = vunpack.c.l.bf16 %v426
      %v635 = vunpack.c.h.bf16 %v426
      %v636 = vunpack.c.l.bf16 %v427
      %v637 = vunpack.c.h.bf16 %v427
      %v638 = vunpack.c.l.bf16 %v428
      %v639 = vunpack.c.h.bf16 %v428
      %v640 = vunpack.c.l.bf16 %v429
      %v641 = vunpack.c.h.bf16 %v429
      %v642 = vunpack.c.l.bf16 %v430
      %v643 = vunpack.c.l.bf16 %v431
      %v644 = vunpack.c.h.bf16 %v431
      %v645 = vunpack.c.l.bf16 %v432
      %v646 = vunpack.c.h.bf16 %v432
      %v647 = vunpack.c.l.bf16 %v433
      %v648 = vunpack.c.h.bf16 %v433
      %v649 = vunpack.c.l.bf16 %v434
      %v650 = vunpack.c.h.bf16 %v434
      %v651 = vunpack.c.l.bf16 %v435
      %v652 = vunpack.c.l.bf16 %v436
      %v653 = vunpack.c.h.bf16 %v436
      %v654 = vunpack.c.l.bf16 %v437
      %v655 = vunpack.c.h.bf16 %v437
      %v656 = vunpack.c.l.bf16 %v438
      %v657 = vunpack.c.h.bf16 %v438
      %v658 = vunpack.c.l.bf16 %v439
      %v659 = vunpack.c.h.bf16 %v439
      %v660 = vunpack.c.l.bf16 %v440
      %v661 = vunpack.c.l.bf16 %v441
      %v662 = vunpack.c.h.bf16 %v441
      %v663 = vunpack.c.l.bf16 %v442
      %v664 = vunpack.c.h.bf16 %v442
      %v665 = vunpack.c.l.bf16 %v443
      %v666 = vunpack.c.h.bf16 %v443
      %v667 = vunpack.c.l.bf16 %v444
      %v668 = vunpack.c.h.bf16 %v444
      %v669 = vunpack.c.l.bf16 %v445
      %v670 = vunpack.c.l.bf16 %v446
      %v671 = vunpack.c.h.bf16 %v446
      %v672 = vunpack.c.l.bf16 %v447
      %v673 = vunpack.c.h.bf16 %v447
      %v674 = vunpack.c.l.bf16 %v448
      %v675 = vunpack.c.h.bf16 %v448
      %v676 = vunpack.c.l.bf16 %v449
      %v677 = vunpack.c.h.bf16 %v449
      %v678 = vunpack.c.l.bf16 %v450
      %v679 = vunpack.c.l.bf16 %v451
      %v680 = vunpack.c.h.bf16 %v451
      %v681 = vunpack.c.l.bf16 %v452
      %v682 = vunpack.c.h.bf16 %v452
      %v683 = vunpack.c.l.bf16 %v453
      %v684 = vunpack.c.h.bf16 %v453
      %v685 = vunpack.c.l.bf16 %v454
      %v686 = vunpack.c.h.bf16 %v454
      %v687 = vunpack.c.l.bf16 %v455
      %v688 = vunpack.c.l.bf16 %v456
      %v689 = vunpack.c.h.bf16 %v456
      %v690 = vunpack.c.l.bf16 %v457
      %v691 = vunpack.c.h.bf16 %v457
      %v692 = vunpack.c.l.bf16 %v458
      %v693 = vunpack.c.h.bf16 %v458
      %v694 = vunpack.c.l.bf16 %v459
      %v695 = vunpack.c.h.bf16 %v459
      %v696 = vunpack.c.l.bf16 %v460
      %v697 = vunpack.c.l.bf16 %v461
      %v698 = vunpack.c.h.bf16 %v461
      %v699 = vunpack.c.l.bf16 %v462
      %v700 = vunpack.c.h.bf16 %v462
      %v701 = vunpack.c.l.bf16 %v463
      %v702 = vunpack.c.h.bf16 %v463
      %v703 = vunpack.c.l.bf16 %v464
      %v704 = vunpack.c.h.bf16 %v464
      %v705 = vunpack.c.l.bf16 %v465
      %v706 = vunpack.c.l.bf16 %v466
      %v707 = vunpack.c.h.bf16 %v466
      %v708 = vunpack.c.l.bf16 %v467
      %v709 = vunpack.c.h.bf16 %v467
      %v710 = vunpack.c.l.bf16 %v468
      %v711 = vunpack.c.h.bf16 %v468
      %v712 = vunpack.c.l.bf16 %v469
      %v713 = vunpack.c.h.bf16 %v469
      %v714 = vunpack.c.l.bf16 %v470
      %v715 = vunpack.c.l.bf16 %v471
      %v716 = vunpack.c.h.bf16 %v471
      %v717 = vunpack.c.l.bf16 %v472
      %v718 = vunpack.c.h.bf16 %v472
      %v719 = vunpack.c.l.bf16 %v473
      %v720 = vunpack.c.h.bf16 %v473
      %v721 = vunpack.c.l.bf16 %v474
      %v722 = vunpack.c.h.bf16 %v474
      %v723 = vunpack.c.l.bf16 %v475
      %v724 = vunpack.c.l.bf16 %v476
      %v725 = vunpack.c.h.bf16 %v476
      %v726 = vunpack.c.l.bf16 %v477
      %v727 = vunpack.c.h.bf16 %v477
      %v728 = vunpack.c.l.bf16 %v478
      %v729 = vunpack.c.h.bf16 %v478
      %v730 = vunpack.c.l.bf16 %v479
      %v731 = vunpack.c.h.bf16 %v479
      %v732 = vunpack.c.l.bf16 %v480
      %v733 = vunpack.c.l.bf16 %v481
      %v734 = vunpack.c.h.bf16 %v481
      %v735 = vunpack.c.l.bf16 %v482
      %v736 = vunpack.c.h.bf16 %v482
      %v737 = vunpack.c.l.bf16 %v483
      %v738 = vunpack.c.h.bf16 %v483
      %v739 = vunpack.c.l.bf16 %v484
      %v740 = vunpack.c.h.bf16 %v484
      %v741 = vunpack.c.l.bf16 %v485
      %v742 = vunpack.c.l.bf16 %v486
      %v743 = vunpack.c.h.bf16 %v486
      %v744 = vunpack.c.l.bf16 %v487
      %v745 = vunpack.c.h.bf16 %v487
      %v746 = vunpack.c.l.bf16 %v488
      %v747 = vunpack.c.h.bf16 %v488
      %v748 = vunpack.c.l.bf16 %v489
      %v749 = vunpack.c.h.bf16 %v489
      %v750 = vunpack.c.l.bf16 %v490
      %v751 = vunpack.c.l.bf16 %v491
      %v752 = vunpack.c.h.bf16 %v491
      %v753 = vunpack.c.l.bf16 %v492
      %v754 = vunpack.c.h.bf16 %v492
      %v755 = vunpack.c.l.bf16 %v493
      %v756 = vunpack.c.h.bf16 %v493
      %v757 = vunpack.c.l.bf16 %v494
      %v758 = vunpack.c.h.bf16 %v494
      %v759 = vunpack.c.l.bf16 %v495
      %v760 = vunpack.c.l.bf16 %v496
      %v761 = vunpack.c.h.bf16 %v496
      %v762 = vunpack.c.l.bf16 %v497
      %v763 = vunpack.c.h.bf16 %v497
      %v764 = vunpack.c.l.bf16 %v498
      %v765 = vunpack.c.h.bf16 %v498
      %v766 = vunpack.c.l.bf16 %v499
      %v767 = vunpack.c.h.bf16 %v499
      %v768 = vunpack.c.l.bf16 %v500
      %v769 = vunpack.c.l.bf16 %v501
      %v770 = vunpack.c.h.bf16 %v501
      %v771 = vunpack.c.l.bf16 %v502
      %v772 = vunpack.c.h.bf16 %v502
      %v773 = vunpack.c.l.bf16 %v503
      %v774 = vunpack.c.h.bf16 %v503
      %v775 = vunpack.c.l.bf16 %v504
      %v776 = vunpack.c.h.bf16 %v504
      %v777 = vunpack.c.l.bf16 %v505
      %v778 = vunpack.c.l.bf16 %v506
      %v779 = vunpack.c.h.bf16 %v506
      %v780 = vunpack.c.l.bf16 %v507
      %v781 = vunpack.c.h.bf16 %v507
      %v782 = vunpack.c.l.bf16 %v508
      %v783 = vunpack.c.h.bf16 %v508
      %v784 = vunpack.c.l.bf16 %v509
      %v785 = vunpack.c.h.bf16 %v509
      %v786 = vunpack.c.l.bf16 %v510
      %v787 = vunpack.c.l.bf16 %v511
      %v788 = vunpack.c.h.bf16 %v511
      %v789 = vunpack.c.l.bf16 %v512
      %v790 = vunpack.c.h.bf16 %v512
      %v791 = vunpack.c.l.bf16 %v513
      %v792 = vunpack.c.h.bf16 %v513
      %v793 = vunpack.c.l.bf16 %v514
      %v794 = vunpack.c.h.bf16 %v514
      %v795 = vunpack.c.l.bf16 %v515
      %v796 = vunpack.c.l.bf16 %v516
      %v797 = vunpack.c.h.bf16 %v516
      %v798 = vunpack.c.l.bf16 %v517
      %v799 = vunpack.c.h.bf16 %v517
      %v800 = vunpack.c.l.bf16 %v518
      %v801 = vunpack.c.h.bf16 %v518
      %v802 = vunpack.c.l.bf16 %v519
      %v803 = vunpack.c.h.bf16 %v519
      %v804 = vunpack.c.l.bf16 %v520
      %v805 = vunpack.c.l.bf16 %v521
      %v806 = vunpack.c.h.bf16 %v521
      %v807 = vunpack.c.l.bf16 %v522
      %v808 = vunpack.c.h.bf16 %v522
      %v809 = vunpack.c.l.bf16 %v523
      %v810 = vunpack.c.h.bf16 %v523
      %v811 = vunpack.c.l.bf16 %v524
      %v812 = vunpack.c.h.bf16 %v524
      %v813 = vunpack.c.l.bf16 %v525
      %v814 = vld [vmem:[%s340] sm:$0xff]
      %v815 = vld [vmem:[%s340 + $0x8] sm:$0x1]
      %v818 = vperm.slane %v814, 0
      %v819 = vperm.slane %v814, 1
      %v820 = vperm.slane %v814, 2
      %v821 = vperm.slane %v814, 3
      %v822 = vperm.slane %v814, 4
      %v823 = vperm.slane %v814, 5
      %v824 = vperm.slane %v814, 6
      %v825 = vperm.slane %v814, 7
      %v826 = vperm.slane %v815, 0
      %v836 = vmul.f32 %v526, %v818
      %v837 = vmul.f32 %v527, %v819
      %v838 = vmul.f32 %v528, %v820
      %v839 = vmul.f32 %v529, %v821
      %v840 = vmul.f32 %v530, %v822
      %v841 = vmul.f32 %v531, %v823
      %v842 = vmul.f32 %v532, %v824
      %v843 = vmul.f32 %v533, %v825
      %v844 = vmul.f32 %v534, %v826
      %v845 = vmul.f32 %v535, %v818
      %v846 = vmul.f32 %v536, %v819
      %v847 = vmul.f32 %v537, %v820
      %v848 = vmul.f32 %v538, %v821
      %v849 = vmul.f32 %v539, %v822
      %v850 = vmul.f32 %v540, %v823
      %v851 = vmul.f32 %v541, %v824
      %v852 = vmul.f32 %v542, %v825
      %v853 = vmul.f32 %v543, %v826
      %v854 = vmul.f32 %v544, %v818
      %v855 = vmul.f32 %v545, %v819
      %v856 = vmul.f32 %v546, %v820
      %v857 = vmul.f32 %v547, %v821
      %v858 = vmul.f32 %v548, %v822
      %v859 = vmul.f32 %v549, %v823
      %v860 = vmul.f32 %v550, %v824
      %v861 = vmul.f32 %v551, %v825
      %v862 = vmul.f32 %v552, %v826
      %v863 = vmul.f32 %v553, %v818
      %v864 = vmul.f32 %v554, %v819
      %v865 = vmul.f32 %v555, %v820
      %v866 = vmul.f32 %v556, %v821
      %v867 = vmul.f32 %v557, %v822
      %v868 = vmul.f32 %v558, %v823
      %v869 = vmul.f32 %v559, %v824
      %v870 = vmul.f32 %v560, %v825
      %v871 = vmul.f32 %v561, %v826
      %v872 = vmul.f32 %v562, %v818
      %v873 = vmul.f32 %v563, %v819
      %v874 = vmul.f32 %v564, %v820
      %v875 = vmul.f32 %v565, %v821
      %v876 = vmul.f32 %v566, %v822
      %v877 = vmul.f32 %v567, %v823
      %v878 = vmul.f32 %v568, %v824
      %v879 = vmul.f32 %v569, %v825
      %v880 = vmul.f32 %v570, %v826
      %v881 = vmul.f32 %v571, %v818
      %v882 = vmul.f32 %v572, %v819
      %v883 = vmul.f32 %v573, %v820
      %v884 = vmul.f32 %v574, %v821
      %v885 = vmul.f32 %v575, %v822
      %v886 = vmul.f32 %v576, %v823
      %v887 = vmul.f32 %v577, %v824
      %v888 = vmul.f32 %v578, %v825
      %v889 = vmul.f32 %v579, %v826
      %v890 = vmul.f32 %v580, %v818
      %v891 = vmul.f32 %v581, %v819
      %v892 = vmul.f32 %v582, %v820
      %v893 = vmul.f32 %v583, %v821
      %v894 = vmul.f32 %v584, %v822
      %v895 = vmul.f32 %v585, %v823
      %v896 = vmul.f32 %v586, %v824
      %v897 = vmul.f32 %v587, %v825
      %v898 = vmul.f32 %v588, %v826
      %v899 = vmul.f32 %v589, %v818
      %v900 = vmul.f32 %v590, %v819
      %v901 = vmul.f32 %v591, %v820
      %v902 = vmul.f32 %v592, %v821
      %v903 = vmul.f32 %v593, %v822
      %v904 = vmul.f32 %v594, %v823
      %v905 = vmul.f32 %v595, %v824
      %v906 = vmul.f32 %v596, %v825
      %v907 = vmul.f32 %v597, %v826
      %v908 = vmul.f32 %v598, %v818
      %v909 = vmul.f32 %v599, %v819
      %v910 = vmul.f32 %v600, %v820
      %v911 = vmul.f32 %v601, %v821
      %v912 = vmul.f32 %v602, %v822
      %v913 = vmul.f32 %v603, %v823
      %v914 = vmul.f32 %v604, %v824
      %v915 = vmul.f32 %v605, %v825
      %v916 = vmul.f32 %v606, %v826
      %v917 = vmul.f32 %v607, %v818
      %v918 = vmul.f32 %v608, %v819
      %v919 = vmul.f32 %v609, %v820
      %v920 = vmul.f32 %v610, %v821
      %v921 = vmul.f32 %v611, %v822
      %v922 = vmul.f32 %v612, %v823
      %v923 = vmul.f32 %v613, %v824
      %v924 = vmul.f32 %v614, %v825
      %v925 = vmul.f32 %v615, %v826
      %v926 = vmul.f32 %v616, %v818
      %v927 = vmul.f32 %v617, %v819
      %v928 = vmul.f32 %v618, %v820
      %v929 = vmul.f32 %v619, %v821
      %v930 = vmul.f32 %v620, %v822
      %v931 = vmul.f32 %v621, %v823
      %v932 = vmul.f32 %v622, %v824
      %v933 = vmul.f32 %v623, %v825
      %v934 = vmul.f32 %v624, %v826
      %v935 = vmul.f32 %v625, %v818
      %v936 = vmul.f32 %v626, %v819
      %v937 = vmul.f32 %v627, %v820
      %v938 = vmul.f32 %v628, %v821
      %v939 = vmul.f32 %v629, %v822
      %v940 = vmul.f32 %v630, %v823
      %v941 = vmul.f32 %v631, %v824
      %v942 = vmul.f32 %v632, %v825
      %v943 = vmul.f32 %v633, %v826
      %v944 = vmul.f32 %v634, %v818
      %v945 = vmul.f32 %v635, %v819
      %v946 = vmul.f32 %v636, %v820
      %v947 = vmul.f32 %v637, %v821
      %v948 = vmul.f32 %v638, %v822
      %v949 = vmul.f32 %v639, %v823
      %v950 = vmul.f32 %v640, %v824
      %v951 = vmul.f32 %v641, %v825
      %v952 = vmul.f32 %v642, %v826
      %v953 = vmul.f32 %v643, %v818
      %v954 = vmul.f32 %v644, %v819
      %v955 = vmul.f32 %v645, %v820
      %v956 = vmul.f32 %v646, %v821
      %v957 = vmul.f32 %v647, %v822
      %v958 = vmul.f32 %v648, %v823
      %v959 = vmul.f32 %v649, %v824
      %v960 = vmul.f32 %v650, %v825
      %v961 = vmul.f32 %v651, %v826
      %v962 = vmul.f32 %v652, %v818
      %v963 = vmul.f32 %v653, %v819
      %v964 = vmul.f32 %v654, %v820
      %v965 = vmul.f32 %v655, %v821
      %v966 = vmul.f32 %v656, %v822
      %v967 = vmul.f32 %v657, %v823
      %v968 = vmul.f32 %v658, %v824
      %v969 = vmul.f32 %v659, %v825
      %v970 = vmul.f32 %v660, %v826
      %v971 = vmul.f32 %v661, %v818
      %v972 = vmul.f32 %v662, %v819
      %v973 = vmul.f32 %v663, %v820
      %v974 = vmul.f32 %v664, %v821
      %v975 = vmul.f32 %v665, %v822
      %v976 = vmul.f32 %v666, %v823
      %v977 = vmul.f32 %v667, %v824
      %v978 = vmul.f32 %v668, %v825
      %v979 = vmul.f32 %v669, %v826
      %v980 = vmul.f32 %v670, %v818
      %v981 = vmul.f32 %v671, %v819
      %v982 = vmul.f32 %v672, %v820
      %v983 = vmul.f32 %v673, %v821
      %v984 = vmul.f32 %v674, %v822
      %v985 = vmul.f32 %v675, %v823
      %v986 = vmul.f32 %v676, %v824
      %v987 = vmul.f32 %v677, %v825
      %v988 = vmul.f32 %v678, %v826
      %v989 = vmul.f32 %v679, %v818
      %v990 = vmul.f32 %v680, %v819
      %v991 = vmul.f32 %v681, %v820
      %v992 = vmul.f32 %v682, %v821
      %v993 = vmul.f32 %v683, %v822
      %v994 = vmul.f32 %v684, %v823
      %v995 = vmul.f32 %v685, %v824
      %v996 = vmul.f32 %v686, %v825
      %v997 = vmul.f32 %v687, %v826
      %v998 = vmul.f32 %v688, %v818
      %v999 = vmul.f32 %v689, %v819
      %v1000 = vmul.f32 %v690, %v820
      %v1001 = vmul.f32 %v691, %v821
      %v1002 = vmul.f32 %v692, %v822
      %v1003 = vmul.f32 %v693, %v823
      %v1004 = vmul.f32 %v694, %v824
      %v1005 = vmul.f32 %v695, %v825
      %v1006 = vmul.f32 %v696, %v826
      %v1007 = vmul.f32 %v697, %v818
      %v1008 = vmul.f32 %v698, %v819
      %v1009 = vmul.f32 %v699, %v820
      %v1010 = vmul.f32 %v700, %v821
      %v1011 = vmul.f32 %v701, %v822
      %v1012 = vmul.f32 %v702, %v823
      %v1013 = vmul.f32 %v703, %v824
      %v1014 = vmul.f32 %v704, %v825
      %v1015 = vmul.f32 %v705, %v826
      %v1016 = vmul.f32 %v706, %v818
      %v1017 = vmul.f32 %v707, %v819
      %v1018 = vmul.f32 %v708, %v820
      %v1019 = vmul.f32 %v709, %v821
      %v1020 = vmul.f32 %v710, %v822
      %v1021 = vmul.f32 %v711, %v823
      %v1022 = vmul.f32 %v712, %v824
      %v1023 = vmul.f32 %v713, %v825
      %v1024 = vmul.f32 %v714, %v826
      %v1025 = vmul.f32 %v715, %v818
      %v1026 = vmul.f32 %v716, %v819
      %v1027 = vmul.f32 %v717, %v820
      %v1028 = vmul.f32 %v718, %v821
      %v1029 = vmul.f32 %v719, %v822
      %v1030 = vmul.f32 %v720, %v823
      %v1031 = vmul.f32 %v721, %v824
      %v1032 = vmul.f32 %v722, %v825
      %v1033 = vmul.f32 %v723, %v826
      %v1034 = vmul.f32 %v724, %v818
      %v1035 = vmul.f32 %v725, %v819
      %v1036 = vmul.f32 %v726, %v820
      %v1037 = vmul.f32 %v727, %v821
      %v1038 = vmul.f32 %v728, %v822
      %v1039 = vmul.f32 %v729, %v823
      %v1040 = vmul.f32 %v730, %v824
      %v1041 = vmul.f32 %v731, %v825
      %v1042 = vmul.f32 %v732, %v826
      %v1043 = vmul.f32 %v733, %v818
      %v1044 = vmul.f32 %v734, %v819
      %v1045 = vmul.f32 %v735, %v820
      %v1046 = vmul.f32 %v736, %v821
      %v1047 = vmul.f32 %v737, %v822
      %v1048 = vmul.f32 %v738, %v823
      %v1049 = vmul.f32 %v739, %v824
      %v1050 = vmul.f32 %v740, %v825
      %v1051 = vmul.f32 %v741, %v826
      %v1052 = vmul.f32 %v742, %v818
      %v1053 = vmul.f32 %v743, %v819
      %v1054 = vmul.f32 %v744, %v820
      %v1055 = vmul.f32 %v745, %v821
      %v1056 = vmul.f32 %v746, %v822
      %v1057 = vmul.f32 %v747, %v823
      %v1058 = vmul.f32 %v748, %v824
      %v1059 = vmul.f32 %v749, %v825
      %v1060 = vmul.f32 %v750, %v826
      %v1061 = vmul.f32 %v751, %v818
      %v1062 = vmul.f32 %v752, %v819
      %v1063 = vmul.f32 %v753, %v820
      %v1064 = vmul.f32 %v754, %v821
      %v1065 = vmul.f32 %v755, %v822
      %v1066 = vmul.f32 %v756, %v823
      %v1067 = vmul.f32 %v757, %v824
      %v1068 = vmul.f32 %v758, %v825
      %v1069 = vmul.f32 %v759, %v826
      %v1070 = vmul.f32 %v760, %v818
      %v1071 = vmul.f32 %v761, %v819
      %v1072 = vmul.f32 %v762, %v820
      %v1073 = vmul.f32 %v763, %v821
      %v1074 = vmul.f32 %v764, %v822
      %v1075 = vmul.f32 %v765, %v823
      %v1076 = vmul.f32 %v766, %v824
      %v1077 = vmul.f32 %v767, %v825
      %v1078 = vmul.f32 %v768, %v826
      %v1079 = vmul.f32 %v769, %v818
      %v1080 = vmul.f32 %v770, %v819
      %v1081 = vmul.f32 %v771, %v820
      %v1082 = vmul.f32 %v772, %v821
      %v1083 = vmul.f32 %v773, %v822
      %v1084 = vmul.f32 %v774, %v823
      %v1085 = vmul.f32 %v775, %v824
      %v1086 = vmul.f32 %v776, %v825
      %v1087 = vmul.f32 %v777, %v826
      %v1088 = vmul.f32 %v778, %v818
      %v1089 = vmul.f32 %v779, %v819
      %v1090 = vmul.f32 %v780, %v820
      %v1091 = vmul.f32 %v781, %v821
      %v1092 = vmul.f32 %v782, %v822
      %v1093 = vmul.f32 %v783, %v823
      %v1094 = vmul.f32 %v784, %v824
      %v1095 = vmul.f32 %v785, %v825
      %v1096 = vmul.f32 %v786, %v826
      %v1097 = vmul.f32 %v787, %v818
      %v1098 = vmul.f32 %v788, %v819
      %v1099 = vmul.f32 %v789, %v820
      %v1100 = vmul.f32 %v790, %v821
      %v1101 = vmul.f32 %v791, %v822
      %v1102 = vmul.f32 %v792, %v823
      %v1103 = vmul.f32 %v793, %v824
      %v1104 = vmul.f32 %v794, %v825
      %v1105 = vmul.f32 %v795, %v826
      %v1106 = vmul.f32 %v796, %v818
      %v1107 = vmul.f32 %v797, %v819
      %v1108 = vmul.f32 %v798, %v820
      %v1109 = vmul.f32 %v799, %v821
      %v1110 = vmul.f32 %v800, %v822
      %v1111 = vmul.f32 %v801, %v823
      %v1112 = vmul.f32 %v802, %v824
      %v1113 = vmul.f32 %v803, %v825
      %v1114 = vmul.f32 %v804, %v826
      %v1115 = vmul.f32 %v805, %v818
      %v1116 = vmul.f32 %v806, %v819
      %v1117 = vmul.f32 %v807, %v820
      %v1118 = vmul.f32 %v808, %v821
      %v1119 = vmul.f32 %v809, %v822
      %v1120 = vmul.f32 %v810, %v823
      %v1121 = vmul.f32 %v811, %v824
      %v1122 = vmul.f32 %v812, %v825
      %v1123 = vmul.f32 %v813, %v826
      %v1124 = vpack.c.bf16 %v845, %v836
      %v1125 = vpack.c.bf16 %v846, %v837
      %v1126 = vpack.c.bf16 %v847, %v838
      %v1127 = vpack.c.bf16 %v848, %v839
      %v1128 = vpack.c.bf16 %v849, %v840
      %v1129 = vpack.c.bf16 %v850, %v841
      %v1130 = vpack.c.bf16 %v851, %v842
      %v1131 = vpack.c.bf16 %v852, %v843
      %v1132 = vpack.c.bf16 %v853, %v844
      %v1133 = vpack.c.bf16 %v863, %v854
      %v1134 = vpack.c.bf16 %v864, %v855
      %v1135 = vpack.c.bf16 %v865, %v856
      %v1136 = vpack.c.bf16 %v866, %v857
      %v1137 = vpack.c.bf16 %v867, %v858
      %v1138 = vpack.c.bf16 %v868, %v859
      %v1139 = vpack.c.bf16 %v869, %v860
      %v1140 = vpack.c.bf16 %v870, %v861
      %v1141 = vpack.c.bf16 %v871, %v862
      %v1142 = vpack.c.bf16 %v881, %v872
      %v1143 = vpack.c.bf16 %v882, %v873
      %v1144 = vpack.c.bf16 %v883, %v874
      %v1145 = vpack.c.bf16 %v884, %v875
      %v1146 = vpack.c.bf16 %v885, %v876
      %v1147 = vpack.c.bf16 %v886, %v877
      %v1148 = vpack.c.bf16 %v887, %v878
      %v1149 = vpack.c.bf16 %v888, %v879
      %v1150 = vpack.c.bf16 %v889, %v880
      %v1151 = vpack.c.bf16 %v899, %v890
      %v1152 = vpack.c.bf16 %v900, %v891
      %v1153 = vpack.c.bf16 %v901, %v892
      %v1154 = vpack.c.bf16 %v902, %v893
      %v1155 = vpack.c.bf16 %v903, %v894
      %v1156 = vpack.c.bf16 %v904, %v895
      %v1157 = vpack.c.bf16 %v905, %v896
      %v1158 = vpack.c.bf16 %v906, %v897
      %v1159 = vpack.c.bf16 %v907, %v898
      %v1160 = vpack.c.bf16 %v917, %v908
      %v1161 = vpack.c.bf16 %v918, %v909
      %v1162 = vpack.c.bf16 %v919, %v910
      %v1163 = vpack.c.bf16 %v920, %v911
      %v1164 = vpack.c.bf16 %v921, %v912
      %v1165 = vpack.c.bf16 %v922, %v913
      %v1166 = vpack.c.bf16 %v923, %v914
      %v1167 = vpack.c.bf16 %v924, %v915
      %v1168 = vpack.c.bf16 %v925, %v916
      %v1169 = vpack.c.bf16 %v935, %v926
      %v1170 = vpack.c.bf16 %v936, %v927
      %v1171 = vpack.c.bf16 %v937, %v928
      %v1172 = vpack.c.bf16 %v938, %v929
      %v1173 = vpack.c.bf16 %v939, %v930
      %v1174 = vpack.c.bf16 %v940, %v931
      %v1175 = vpack.c.bf16 %v941, %v932
      %v1176 = vpack.c.bf16 %v942, %v933
      %v1177 = vpack.c.bf16 %v943, %v934
      %v1178 = vpack.c.bf16 %v953, %v944
      %v1179 = vpack.c.bf16 %v954, %v945
      %v1180 = vpack.c.bf16 %v955, %v946
      %v1181 = vpack.c.bf16 %v956, %v947
      %v1182 = vpack.c.bf16 %v957, %v948
      %v1183 = vpack.c.bf16 %v958, %v949
      %v1184 = vpack.c.bf16 %v959, %v950
      %v1185 = vpack.c.bf16 %v960, %v951
      %v1186 = vpack.c.bf16 %v961, %v952
      %v1187 = vpack.c.bf16 %v971, %v962
      %v1188 = vpack.c.bf16 %v972, %v963
      %v1189 = vpack.c.bf16 %v973, %v964
      %v1190 = vpack.c.bf16 %v974, %v965
      %v1191 = vpack.c.bf16 %v975, %v966
      %v1192 = vpack.c.bf16 %v976, %v967
      %v1193 = vpack.c.bf16 %v977, %v968
      %v1194 = vpack.c.bf16 %v978, %v969
      %v1195 = vpack.c.bf16 %v979, %v970
      %v1196 = vpack.c.bf16 %v989, %v980
      %v1197 = vpack.c.bf16 %v990, %v981
      %v1198 = vpack.c.bf16 %v991, %v982
      %v1199 = vpack.c.bf16 %v992, %v983
      %v1200 = vpack.c.bf16 %v993, %v984
      %v1201 = vpack.c.bf16 %v994, %v985
      %v1202 = vpack.c.bf16 %v995, %v986
      %v1203 = vpack.c.bf16 %v996, %v987
      %v1204 = vpack.c.bf16 %v997, %v988
      %v1205 = vpack.c.bf16 %v1007, %v998
      %v1206 = vpack.c.bf16 %v1008, %v999
      %v1207 = vpack.c.bf16 %v1009, %v1000
      %v1208 = vpack.c.bf16 %v1010, %v1001
      %v1209 = vpack.c.bf16 %v1011, %v1002
      %v1210 = vpack.c.bf16 %v1012, %v1003
      %v1211 = vpack.c.bf16 %v1013, %v1004
      %v1212 = vpack.c.bf16 %v1014, %v1005
      %v1213 = vpack.c.bf16 %v1015, %v1006
      %v1214 = vpack.c.bf16 %v1025, %v1016
      %v1215 = vpack.c.bf16 %v1026, %v1017
      %v1216 = vpack.c.bf16 %v1027, %v1018
      %v1217 = vpack.c.bf16 %v1028, %v1019
      %v1218 = vpack.c.bf16 %v1029, %v1020
      %v1219 = vpack.c.bf16 %v1030, %v1021
      %v1220 = vpack.c.bf16 %v1031, %v1022
      %v1221 = vpack.c.bf16 %v1032, %v1023
      %v1222 = vpack.c.bf16 %v1033, %v1024
      %v1223 = vpack.c.bf16 %v1043, %v1034
      %v1224 = vpack.c.bf16 %v1044, %v1035
      %v1225 = vpack.c.bf16 %v1045, %v1036
      %v1226 = vpack.c.bf16 %v1046, %v1037
      %v1227 = vpack.c.bf16 %v1047, %v1038
      %v1228 = vpack.c.bf16 %v1048, %v1039
      %v1229 = vpack.c.bf16 %v1049, %v1040
      %v1230 = vpack.c.bf16 %v1050, %v1041
      %v1231 = vpack.c.bf16 %v1051, %v1042
      %v1232 = vpack.c.bf16 %v1061, %v1052
      %v1233 = vpack.c.bf16 %v1062, %v1053
      %v1234 = vpack.c.bf16 %v1063, %v1054
      %v1235 = vpack.c.bf16 %v1064, %v1055
      %v1236 = vpack.c.bf16 %v1065, %v1056
      %v1237 = vpack.c.bf16 %v1066, %v1057
      %v1238 = vpack.c.bf16 %v1067, %v1058
      %v1239 = vpack.c.bf16 %v1068, %v1059
      %v1240 = vpack.c.bf16 %v1069, %v1060
      %v1241 = vpack.c.bf16 %v1079, %v1070
      %v1242 = vpack.c.bf16 %v1080, %v1071
      %v1243 = vpack.c.bf16 %v1081, %v1072
      %v1244 = vpack.c.bf16 %v1082, %v1073
      %v1245 = vpack.c.bf16 %v1083, %v1074
      %v1246 = vpack.c.bf16 %v1084, %v1075
      %v1247 = vpack.c.bf16 %v1085, %v1076
      %v1248 = vpack.c.bf16 %v1086, %v1077
      %v1249 = vpack.c.bf16 %v1087, %v1078
      %v1250 = vpack.c.bf16 %v1097, %v1088
      %v1251 = vpack.c.bf16 %v1098, %v1089
      %v1252 = vpack.c.bf16 %v1099, %v1090
      %v1253 = vpack.c.bf16 %v1100, %v1091
      %v1254 = vpack.c.bf16 %v1101, %v1092
      %v1255 = vpack.c.bf16 %v1102, %v1093
      %v1256 = vpack.c.bf16 %v1103, %v1094
      %v1257 = vpack.c.bf16 %v1104, %v1095
      %v1258 = vpack.c.bf16 %v1105, %v1096
      %v1259 = vpack.c.bf16 %v1115, %v1106
      %v1260 = vpack.c.bf16 %v1116, %v1107
      %v1261 = vpack.c.bf16 %v1117, %v1108
      %v1262 = vpack.c.bf16 %v1118, %v1109
      %v1263 = vpack.c.bf16 %v1119, %v1110
      %v1264 = vpack.c.bf16 %v1120, %v1111
      %v1265 = vpack.c.bf16 %v1121, %v1112
      %v1266 = vpack.c.bf16 %v1122, %v1113
      %v1267 = vpack.c.bf16 %v1123, %v1114
      %v1268 = vld [vmem:[%s336] sm:$0xf]
      %v1269 = vld [vmem:[%s336 + $0x4] sm:$0xf]
      %v1270 = vld [vmem:[%s336 + $0x8] sm:$0xf]
      %v1271 = vld [vmem:[%s336 + $0xc] sm:$0xf]
      %v1272 = vld [vmem:[%s336 + $0x10] sm:$0xf]
      %v1273 = vld [vmem:[%s336 + $0x14] sm:$0xf]
      %v1274 = vld [vmem:[%s336 + $0x18] sm:$0xf]
      %v1275 = vld [vmem:[%s336 + $0x1c] sm:$0xf]
      %v1276 = vld [vmem:[%s336 + $0x20] sm:$0xf]
      %v1277 = vld [vmem:[%s336 + $0x24] sm:$0xf]
      %v1278 = vld [vmem:[%s336 + $0x28] sm:$0xf]
      %v1279 = vld [vmem:[%s336 + $0x2c] sm:$0xf]
      %v1280 = vld [vmem:[%s336 + $0x30] sm:$0xf]
      %v1281 = vld [vmem:[%s336 + $0x34] sm:$0xf]
      %v1282 = vld [vmem:[%s336 + $0x38] sm:$0xf]
      %v1283 = vld [vmem:[%s336 + $0x3c] sm:$0xf]
      %v1284 = vld [vmem:[%s336 + $0x40] sm:$0xf]
      %v1285 = vld [vmem:[%s336 + $0x44] sm:$0xf]
      %v1286 = vld [vmem:[%s336 + $0x48] sm:$0xf]
      %v1287 = vld [vmem:[%s336 + $0x4c] sm:$0xf]
      %v1288 = vld [vmem:[%s336 + $0x50] sm:$0xf]
      %v1289 = vld [vmem:[%s336 + $0x54] sm:$0xf]
      %v1290 = vld [vmem:[%s336 + $0x58] sm:$0xf]
      %v1291 = vld [vmem:[%s336 + $0x5c] sm:$0xf]
      %v1292 = vld [vmem:[%s336 + $0x60] sm:$0xf]
      %v1293 = vld [vmem:[%s336 + $0x64] sm:$0xf]
      %v1294 = vld [vmem:[%s336 + $0x68] sm:$0xf]
      %v1295 = vld [vmem:[%s336 + $0x6c] sm:$0xf]
      %v1296 = vld [vmem:[%s336 + $0x70] sm:$0xf]
      %v1297 = vld [vmem:[%s336 + $0x74] sm:$0xf]
      %v1298 = vld [vmem:[%s336 + $0x78] sm:$0xf]
      %v1299 = vld [vmem:[%s336 + $0x7c] sm:$0xf]
      %v1300 = vld [vmem:[%s336 + $0x80] sm:$0xf]
      %v1301 = vld [vmem:[%s336 + $0x84] sm:$0xf]
      %v1302 = vld [vmem:[%s336 + $0x88] sm:$0xf]
      %v1303 = vld [vmem:[%s336 + $0x8c] sm:$0xf]
      %v1304 = vld [vmem:[%s336 + $0x90] sm:$0xf]
      %v1305 = vld [vmem:[%s336 + $0x94] sm:$0xf]
      %v1306 = vld [vmem:[%s336 + $0x98] sm:$0xf]
      %v1307 = vld [vmem:[%s336 + $0x9c] sm:$0xf]
      %v1308 = vld [vmem:[%s336 + $0xa0] sm:$0xf]
      %v1309 = vld [vmem:[%s336 + $0xa4] sm:$0xf]
      %v1310 = vld [vmem:[%s336 + $0xa8] sm:$0xf]
      %v1311 = vld [vmem:[%s336 + $0xac] sm:$0xf]
      %v1312 = vld [vmem:[%s336 + $0xb0] sm:$0xf]
      %v1313 = vld [vmem:[%s336 + $0xb4] sm:$0xf]
      %v1314 = vld [vmem:[%s336 + $0xb8] sm:$0xf]
      %v1315 = vld [vmem:[%s336 + $0xbc] sm:$0xf]
      %v1316 = vld [vmem:[%s336 + $0xc0] sm:$0xf]
      %v1317 = vld [vmem:[%s336 + $0xc4] sm:$0xf]
      %v1318 = vld [vmem:[%s336 + $0xc8] sm:$0xf]
      %v1319 = vld [vmem:[%s336 + $0xcc] sm:$0xf]
      %v1320 = vld [vmem:[%s336 + $0xd0] sm:$0xf]
      %v1321 = vld [vmem:[%s336 + $0xd4] sm:$0xf]
      %v1322 = vld [vmem:[%s336 + $0xd8] sm:$0xf]
      %v1323 = vld [vmem:[%s336 + $0xdc] sm:$0xf]
      %v1324 = vld [vmem:[%s336 + $0xe0] sm:$0xf]
      %v1325 = vld [vmem:[%s336 + $0xe4] sm:$0xf]
      %v1326 = vld [vmem:[%s336 + $0xe8] sm:$0xf]
      %v1327 = vld [vmem:[%s336 + $0xec] sm:$0xf]
      %v1328 = vld [vmem:[%s336 + $0xf0] sm:$0xf]
      %v1329 = vld [vmem:[%s336 + $0xf4] sm:$0xf]
      %v1330 = vld [vmem:[%s336 + $0xf8] sm:$0xf]
      %v1331 = vld [vmem:[%s336 + $0xfc] sm:$0xf]
      %v1332 = vld [vmem:[%s336 + $0x100] sm:$0xf]
      %v1333 = vld [vmem:[%s336 + $0x104] sm:$0xf]
      %v1334 = vld [vmem:[%s336 + $0x108] sm:$0xf]
      %v1335 = vld [vmem:[%s336 + $0x10c] sm:$0xf]
      %v1336 = vld [vmem:[%s336 + $0x110] sm:$0xf]
      %v1337 = vld [vmem:[%s336 + $0x114] sm:$0xf]
      %v1338 = vld [vmem:[%s336 + $0x118] sm:$0xf]
      %v1339 = vld [vmem:[%s336 + $0x11c] sm:$0xf]
      %v1340 = vld [vmem:[%s336 + $0x120] sm:$0xf]
      %v1341 = vld [vmem:[%s336 + $0x124] sm:$0xf]
      %v1342 = vld [vmem:[%s336 + $0x128] sm:$0xf]
      %v1343 = vld [vmem:[%s336 + $0x12c] sm:$0xf]
      %v1344 = vld [vmem:[%s336 + $0x130] sm:$0xf]
      %v1345 = vld [vmem:[%s336 + $0x134] sm:$0xf]
      %v1346 = vld [vmem:[%s336 + $0x138] sm:$0xf]
      %v1347 = vld [vmem:[%s336 + $0x13c] sm:$0xf]
      %v1348 = vld [vmem:[%s336 + $0x140] sm:$0xf]
      %v1349 = vld [vmem:[%s336 + $0x144] sm:$0xf]
      %v1350 = vld [vmem:[%s336 + $0x148] sm:$0xf]
      %v1351 = vld [vmem:[%s336 + $0x14c] sm:$0xf]
      %v1352 = vld [vmem:[%s336 + $0x150] sm:$0xf]
      %v1353 = vld [vmem:[%s336 + $0x154] sm:$0xf]
      %v1354 = vld [vmem:[%s336 + $0x158] sm:$0xf]
      %v1355 = vld [vmem:[%s336 + $0x15c] sm:$0xf]
      %v1356 = vld [vmem:[%s336 + $0x160] sm:$0xf]
      %v1357 = vld [vmem:[%s336 + $0x164] sm:$0xf]
      %v1358 = vld [vmem:[%s336 + $0x168] sm:$0xf]
      %v1359 = vld [vmem:[%s336 + $0x16c] sm:$0xf]
      %v1360 = vld [vmem:[%s336 + $0x170] sm:$0xf]
      %v1361 = vld [vmem:[%s336 + $0x174] sm:$0xf]
      %v1362 = vld [vmem:[%s336 + $0x178] sm:$0xf]
      %v1363 = vld [vmem:[%s336 + $0x17c] sm:$0xf]
      %v1364 = vld [vmem:[%s336 + $0x180] sm:$0xf]
      %v1365 = vld [vmem:[%s336 + $0x184] sm:$0xf]
      %v1366 = vld [vmem:[%s336 + $0x188] sm:$0xf]
      %v1367 = vld [vmem:[%s336 + $0x18c] sm:$0xf]
      %v1368 = vld [vmem:[%s336 + $0x190] sm:$0xf]
      %v1369 = vld [vmem:[%s336 + $0x194] sm:$0xf]
      %v1370 = vld [vmem:[%s336 + $0x198] sm:$0xf]
      %v1371 = vld [vmem:[%s336 + $0x19c] sm:$0xf]
      %v1372 = vld [vmem:[%s336 + $0x1a0] sm:$0xf]
      %v1373 = vld [vmem:[%s336 + $0x1a4] sm:$0xf]
      %v1374 = vld [vmem:[%s336 + $0x1a8] sm:$0xf]
      %v1375 = vld [vmem:[%s336 + $0x1ac] sm:$0xf]
      %v1376 = vld [vmem:[%s336 + $0x1b0] sm:$0xf]
      %v1377 = vld [vmem:[%s336 + $0x1b4] sm:$0xf]
      %v1378 = vld [vmem:[%s336 + $0x1b8] sm:$0xf]
      %v1379 = vld [vmem:[%s336 + $0x1bc] sm:$0xf]
      %v1380 = vld [vmem:[%s336 + $0x1c0] sm:$0xf]
      %v1381 = vld [vmem:[%s336 + $0x1c4] sm:$0xf]
      %v1382 = vld [vmem:[%s336 + $0x1c8] sm:$0xf]
      %v1383 = vld [vmem:[%s336 + $0x1cc] sm:$0xf]
      %v1384 = vld [vmem:[%s336 + $0x1d0] sm:$0xf]
      %v1385 = vld [vmem:[%s336 + $0x1d4] sm:$0xf]
      %v1386 = vld [vmem:[%s336 + $0x1d8] sm:$0xf]
      %v1387 = vld [vmem:[%s336 + $0x1dc] sm:$0xf]
      %v1388 = vld [vmem:[%s336 + $0x1e0] sm:$0xf]
      %v1389 = vld [vmem:[%s336 + $0x1e4] sm:$0xf]
      %v1390 = vld [vmem:[%s336 + $0x1e8] sm:$0xf]
      %v1391 = vld [vmem:[%s336 + $0x1ec] sm:$0xf]
      %v1392 = vld [vmem:[%s336 + $0x1f0] sm:$0xf]
      %v1393 = vld [vmem:[%s336 + $0x1f4] sm:$0xf]
      %v1394 = vld [vmem:[%s336 + $0x1f8] sm:$0xf]
      %v1395 = vld [vmem:[%s336 + $0x1fc] sm:$0xf]
      %v1396 = vld [vmem:[%s336 + $0x200] sm:$0xf]
      %v1397 = vld [vmem:[%s336 + $0x204] sm:$0xf]
      %v1398 = vld [vmem:[%s336 + $0x208] sm:$0xf]
      %v1399 = vld [vmem:[%s336 + $0x20c] sm:$0xf]
      %v1400 = vld [vmem:[%s336 + $0x210] sm:$0xf]
      %v1401 = vld [vmem:[%s336 + $0x214] sm:$0xf]
      %v1402 = vld [vmem:[%s336 + $0x218] sm:$0xf]
      %v1403 = vld [vmem:[%s336 + $0x21c] sm:$0xf]
      %v1404 = vld [vmem:[%s336 + $0x220] sm:$0xf]
      %v1405 = vld [vmem:[%s336 + $0x224] sm:$0xf]
      %v1406 = vld [vmem:[%s336 + $0x228] sm:$0xf]
      %v1407 = vld [vmem:[%s336 + $0x22c] sm:$0xf]
      %v1408 = vld [vmem:[%s336 + $0x230] sm:$0xf]
      %v1409 = vld [vmem:[%s336 + $0x234] sm:$0xf]
      %v1410 = vld [vmem:[%s336 + $0x238] sm:$0xf]
      %v1411 = vld [vmem:[%s336 + $0x23c] sm:$0xf]
      %v1556 = vunpack.c.l.b16 %v1268
      %v1557 = vunpack.c.l.b16 %v1269
      %v1558 = vunpack.c.l.b16 %v1270
      %v1559 = vunpack.c.l.b16 %v1271
      %v1560 = vunpack.c.l.b16 %v1272
      %v1561 = vunpack.c.l.b16 %v1273
      %v1562 = vunpack.c.l.b16 %v1274
      %v1563 = vunpack.c.l.b16 %v1275
      %v1564 = vunpack.c.l.b16 %v1276
      %v1565 = vunpack.c.l.b16 %v1277
      %v1566 = vunpack.c.l.b16 %v1278
      %v1567 = vunpack.c.l.b16 %v1279
      %v1568 = vunpack.c.l.b16 %v1280
      %v1569 = vunpack.c.l.b16 %v1281
      %v1570 = vunpack.c.l.b16 %v1282
      %v1571 = vunpack.c.l.b16 %v1283
      %v1572 = vunpack.c.l.b16 %v1284
      %v1573 = vunpack.c.l.b16 %v1285
      %v1574 = vunpack.c.l.b16 %v1286
      %v1575 = vunpack.c.l.b16 %v1287
      %v1576 = vunpack.c.l.b16 %v1288
      %v1577 = vunpack.c.l.b16 %v1289
      %v1578 = vunpack.c.l.b16 %v1290
      %v1579 = vunpack.c.l.b16 %v1291
      %v1580 = vunpack.c.l.b16 %v1292
      %v1581 = vunpack.c.l.b16 %v1293
      %v1582 = vunpack.c.l.b16 %v1294
      %v1583 = vunpack.c.l.b16 %v1295
      %v1584 = vunpack.c.l.b16 %v1296
      %v1585 = vunpack.c.l.b16 %v1297
      %v1586 = vunpack.c.l.b16 %v1298
      %v1587 = vunpack.c.l.b16 %v1299
      %v1588 = vunpack.c.l.b16 %v1300
      %v1589 = vunpack.c.l.b16 %v1301
      %v1590 = vunpack.c.l.b16 %v1302
      %v1591 = vunpack.c.l.b16 %v1303
      %v1592 = vunpack.c.l.b16 %v1304
      %v1593 = vunpack.c.l.b16 %v1305
      %v1594 = vunpack.c.l.b16 %v1306
      %v1595 = vunpack.c.l.b16 %v1307
      %v1596 = vunpack.c.l.b16 %v1308
      %v1597 = vunpack.c.l.b16 %v1309
      %v1598 = vunpack.c.l.b16 %v1310
      %v1599 = vunpack.c.l.b16 %v1311
      %v1600 = vunpack.c.l.b16 %v1312
      %v1601 = vunpack.c.l.b16 %v1313
      %v1602 = vunpack.c.l.b16 %v1314
      %v1603 = vunpack.c.l.b16 %v1315
      %v1604 = vunpack.c.l.b16 %v1316
      %v1605 = vunpack.c.l.b16 %v1317
      %v1606 = vunpack.c.l.b16 %v1318
      %v1607 = vunpack.c.l.b16 %v1319
      %v1608 = vunpack.c.l.b16 %v1320
      %v1609 = vunpack.c.l.b16 %v1321
      %v1610 = vunpack.c.l.b16 %v1322
      %v1611 = vunpack.c.l.b16 %v1323
      %v1612 = vunpack.c.l.b16 %v1324
      %v1613 = vunpack.c.l.b16 %v1325
      %v1614 = vunpack.c.l.b16 %v1326
      %v1615 = vunpack.c.l.b16 %v1327
      %v1616 = vunpack.c.l.b16 %v1328
      %v1617 = vunpack.c.l.b16 %v1329
      %v1618 = vunpack.c.l.b16 %v1330
      %v1619 = vunpack.c.l.b16 %v1331
      %v1620 = vunpack.c.l.b16 %v1332
      %v1621 = vunpack.c.l.b16 %v1333
      %v1622 = vunpack.c.l.b16 %v1334
      %v1623 = vunpack.c.l.b16 %v1335
      %v1624 = vunpack.c.l.b16 %v1336
      %v1625 = vunpack.c.l.b16 %v1337
      %v1626 = vunpack.c.l.b16 %v1338
      %v1627 = vunpack.c.l.b16 %v1339
      %v1628 = vunpack.c.l.b16 %v1340
      %v1629 = vunpack.c.l.b16 %v1341
      %v1630 = vunpack.c.l.b16 %v1342
      %v1631 = vunpack.c.l.b16 %v1343
      %v1632 = vunpack.c.l.b16 %v1344
      %v1633 = vunpack.c.l.b16 %v1345
      %v1634 = vunpack.c.l.b16 %v1346
      %v1635 = vunpack.c.l.b16 %v1347
      %v1636 = vunpack.c.l.b16 %v1348
      %v1637 = vunpack.c.l.b16 %v1349
      %v1638 = vunpack.c.l.b16 %v1350
      %v1639 = vunpack.c.l.b16 %v1351
      %v1640 = vunpack.c.l.b16 %v1352
      %v1641 = vunpack.c.l.b16 %v1353
      %v1642 = vunpack.c.l.b16 %v1354
      %v1643 = vunpack.c.l.b16 %v1355
      %v1644 = vunpack.c.l.b16 %v1356
      %v1645 = vunpack.c.l.b16 %v1357
      %v1646 = vunpack.c.l.b16 %v1358
      %v1647 = vunpack.c.l.b16 %v1359
      %v1648 = vunpack.c.l.b16 %v1360
      %v1649 = vunpack.c.l.b16 %v1361
      %v1650 = vunpack.c.l.b16 %v1362
      %v1651 = vunpack.c.l.b16 %v1363
      %v1652 = vunpack.c.l.b16 %v1364
      %v1653 = vunpack.c.l.b16 %v1365
      %v1654 = vunpack.c.l.b16 %v1366
      %v1655 = vunpack.c.l.b16 %v1367
      %v1656 = vunpack.c.l.b16 %v1368
      %v1657 = vunpack.c.l.b16 %v1369
      %v1658 = vunpack.c.l.b16 %v1370
      %v1659 = vunpack.c.l.b16 %v1371
      %v1660 = vunpack.c.l.b16 %v1372
      %v1661 = vunpack.c.l.b16 %v1373
      %v1662 = vunpack.c.l.b16 %v1374
      %v1663 = vunpack.c.l.b16 %v1375
      %v1664 = vunpack.c.l.b16 %v1376
      %v1665 = vunpack.c.l.b16 %v1377
      %v1666 = vunpack.c.l.b16 %v1378
      %v1667 = vunpack.c.l.b16 %v1379
      %v1668 = vunpack.c.l.b16 %v1380
      %v1669 = vunpack.c.l.b16 %v1381
      %v1670 = vunpack.c.l.b16 %v1382
      %v1671 = vunpack.c.l.b16 %v1383
      %v1672 = vunpack.c.l.b16 %v1384
      %v1673 = vunpack.c.l.b16 %v1385
      %v1674 = vunpack.c.l.b16 %v1386
      %v1675 = vunpack.c.l.b16 %v1387
      %v1676 = vunpack.c.l.b16 %v1388
      %v1677 = vunpack.c.l.b16 %v1389
      %v1678 = vunpack.c.l.b16 %v1390
      %v1679 = vunpack.c.l.b16 %v1391
      %v1680 = vunpack.c.l.b16 %v1392
      %v1681 = vunpack.c.l.b16 %v1393
      %v1682 = vunpack.c.l.b16 %v1394
      %v1683 = vunpack.c.l.b16 %v1395
      %v1684 = vunpack.c.l.b16 %v1396
      %v1685 = vunpack.c.l.b16 %v1397
      %v1686 = vunpack.c.l.b16 %v1398
      %v1687 = vunpack.c.l.b16 %v1399
      %v1688 = vunpack.c.l.b16 %v1400
      %v1689 = vunpack.c.l.b16 %v1401
      %v1690 = vunpack.c.l.b16 %v1402
      %v1691 = vunpack.c.l.b16 %v1403
      %v1692 = vunpack.c.l.b16 %v1404
      %v1693 = vunpack.c.l.b16 %v1405
      %v1694 = vunpack.c.l.b16 %v1406
      %v1695 = vunpack.c.l.b16 %v1407
      %v1696 = vunpack.c.l.b16 %v1408
      %v1697 = vunpack.c.l.b16 %v1409
      %v1698 = vunpack.c.l.b16 %v1410
      %v1699 = vunpack.c.l.b16 %v1411
      %v1700 = vpack.c.b16 %v1557, %v1556
      %v1701 = vpack.c.b16 %v1559, %v1558
      %v1702 = vpack.c.b16 %v1561, %v1560
      %v1703 = vpack.c.b16 %v1563, %v1562
      %v1704 = vpack.c.b16 %v1565, %v1564
      %v1705 = vpack.c.b16 %v1567, %v1566
      %v1706 = vpack.c.b16 %v1569, %v1568
      %v1707 = vpack.c.b16 %v1571, %v1570
      %v1708 = vpack.c.b16 %v1573, %v1572
      %v1709 = vpack.c.b16 %v1575, %v1574
      %v1710 = vpack.c.b16 %v1577, %v1576
      %v1711 = vpack.c.b16 %v1579, %v1578
      %v1712 = vpack.c.b16 %v1581, %v1580
      %v1713 = vpack.c.b16 %v1583, %v1582
      %v1714 = vpack.c.b16 %v1585, %v1584
      %v1715 = vpack.c.b16 %v1587, %v1586
      %v1716 = vpack.c.b16 %v1589, %v1588
      %v1717 = vpack.c.b16 %v1591, %v1590
      %v1718 = vpack.c.b16 %v1593, %v1592
      %v1719 = vpack.c.b16 %v1595, %v1594
      %v1720 = vpack.c.b16 %v1597, %v1596
      %v1721 = vpack.c.b16 %v1599, %v1598
      %v1722 = vpack.c.b16 %v1601, %v1600
      %v1723 = vpack.c.b16 %v1603, %v1602
      %v1724 = vpack.c.b16 %v1605, %v1604
      %v1725 = vpack.c.b16 %v1607, %v1606
      %v1726 = vpack.c.b16 %v1609, %v1608
      %v1727 = vpack.c.b16 %v1611, %v1610
      %v1728 = vpack.c.b16 %v1613, %v1612
      %v1729 = vpack.c.b16 %v1615, %v1614
      %v1730 = vpack.c.b16 %v1617, %v1616
      %v1731 = vpack.c.b16 %v1619, %v1618
      %v1732 = vpack.c.b16 %v1621, %v1620
      %v1733 = vpack.c.b16 %v1623, %v1622
      %v1734 = vpack.c.b16 %v1625, %v1624
      %v1735 = vpack.c.b16 %v1627, %v1626
      %v1736 = vpack.c.b16 %v1629, %v1628
      %v1737 = vpack.c.b16 %v1631, %v1630
      %v1738 = vpack.c.b16 %v1633, %v1632
      %v1739 = vpack.c.b16 %v1635, %v1634
      %v1740 = vpack.c.b16 %v1637, %v1636
      %v1741 = vpack.c.b16 %v1639, %v1638
      %v1742 = vpack.c.b16 %v1641, %v1640
      %v1743 = vpack.c.b16 %v1643, %v1642
      %v1744 = vpack.c.b16 %v1645, %v1644
      %v1745 = vpack.c.b16 %v1647, %v1646
      %v1746 = vpack.c.b16 %v1649, %v1648
      %v1747 = vpack.c.b16 %v1651, %v1650
      %v1748 = vpack.c.b16 %v1653, %v1652
      %v1749 = vpack.c.b16 %v1655, %v1654
      %v1750 = vpack.c.b16 %v1657, %v1656
      %v1751 = vpack.c.b16 %v1659, %v1658
      %v1752 = vpack.c.b16 %v1661, %v1660
      %v1753 = vpack.c.b16 %v1663, %v1662
      %v1754 = vpack.c.b16 %v1665, %v1664
      %v1755 = vpack.c.b16 %v1667, %v1666
      %v1756 = vpack.c.b16 %v1669, %v1668
      %v1757 = vpack.c.b16 %v1671, %v1670
      %v1758 = vpack.c.b16 %v1673, %v1672
      %v1759 = vpack.c.b16 %v1675, %v1674
      %v1760 = vpack.c.b16 %v1677, %v1676
      %v1761 = vpack.c.b16 %v1679, %v1678
      %v1762 = vpack.c.b16 %v1681, %v1680
      %v1763 = vpack.c.b16 %v1683, %v1682
      %v1764 = vpack.c.b16 %v1685, %v1684
      %v1765 = vpack.c.b16 %v1687, %v1686
      %v1766 = vpack.c.b16 %v1689, %v1688
      %v1767 = vpack.c.b16 %v1691, %v1690
      %v1768 = vpack.c.b16 %v1693, %v1692
      %v1769 = vpack.c.b16 %v1695, %v1694
      %v1770 = vpack.c.b16 %v1697, %v1696
      %v1771 = vpack.c.b16 %v1699, %v1698
      %1844 = vmatpush.bf16.msra.mxu0 %v1707
      %1845 = vmatpush.bf16.msra.mxu0 %v1706
      %1846 = vmatpush.bf16.msra.mxu0 %v1705
      %1847 = vmatpush.bf16.msra.mxu0 %v1704
      %1848 = vmatpush.bf16.msra.mxu0 %v1703
      %1849 = vmatpush.bf16.msra.mxu0 %v1702
      %1850 = vmatpush.bf16.msra.mxu0 %v1701
      %1851 = vmatpush.bf16.msra.mxu0 %v1700
      %1852 = vmatmul.bf16.gmra.mxu0 %v1124
      %v1853 = vpop.f32.mrf.mxu0
      %v1854 = vadd.f32 0.0, %v1853
      %v1855 = vpop.f32.mrf.mxu0
      %v1856 = vadd.f32 0.0, %v1855
      %1857 = vmatmul.bf16.gmra.mxu0 %v1133
      %v1858 = vpop.f32.mrf.mxu0
      %v1859 = vadd.f32 0.0, %v1858
      %v1860 = vpop.f32.mrf.mxu0
      %v1861 = vadd.f32 0.0, %v1860
      %1862 = vmatmul.bf16.gmra.mxu0 %v1142
      %v1863 = vpop.f32.mrf.mxu0
      %v1864 = vadd.f32 0.0, %v1863
      %v1865 = vpop.f32.mrf.mxu0
      %v1866 = vadd.f32 0.0, %v1865
      %1867 = vmatmul.bf16.gmra.mxu0 %v1151
      %v1868 = vpop.f32.mrf.mxu0
      %v1869 = vadd.f32 0.0, %v1868
      %v1870 = vpop.f32.mrf.mxu0
      %v1871 = vadd.f32 0.0, %v1870
      %1872 = vmatmul.bf16.gmra.mxu0 %v1160
      %v1873 = vpop.f32.mrf.mxu0
      %v1874 = vadd.f32 0.0, %v1873
      %v1875 = vpop.f32.mrf.mxu0
      %v1876 = vadd.f32 0.0, %v1875
      %1877 = vmatmul.bf16.gmra.mxu0 %v1169
      %v1878 = vpop.f32.mrf.mxu0
      %v1879 = vadd.f32 0.0, %v1878
      %v1880 = vpop.f32.mrf.mxu0
      %v1881 = vadd.f32 0.0, %v1880
      %1882 = vmatmul.bf16.gmra.mxu0 %v1178
      %v1883 = vpop.f32.mrf.mxu0
      %v1884 = vadd.f32 0.0, %v1883
      %v1885 = vpop.f32.mrf.mxu0
      %v1886 = vadd.f32 0.0, %v1885
      %1887 = vmatmul.bf16.gmra.mxu0 %v1187
      %v1888 = vpop.f32.mrf.mxu0
      %v1889 = vadd.f32 0.0, %v1888
      %v1890 = vpop.f32.mrf.mxu0
      %v1891 = vadd.f32 0.0, %v1890
      %1892 = vmatmul.bf16.gmra.mxu0 %v1196
      %v1893 = vpop.f32.mrf.mxu0
      %v1894 = vadd.f32 0.0, %v1893
      %v1895 = vpop.f32.mrf.mxu0
      %v1896 = vadd.f32 0.0, %v1895
      %1897 = vmatmul.bf16.gmra.mxu0 %v1205
      %v1898 = vpop.f32.mrf.mxu0
      %v1899 = vadd.f32 0.0, %v1898
      %v1900 = vpop.f32.mrf.mxu0
      %v1901 = vadd.f32 0.0, %v1900
      %1902 = vmatmul.bf16.gmra.mxu0 %v1214
      %v1903 = vpop.f32.mrf.mxu0
      %v1904 = vadd.f32 0.0, %v1903
      %v1905 = vpop.f32.mrf.mxu0
      %v1906 = vadd.f32 0.0, %v1905
      %1907 = vmatmul.bf16.gmra.mxu0 %v1223
      %v1908 = vpop.f32.mrf.mxu0
      %v1909 = vadd.f32 0.0, %v1908
      %v1910 = vpop.f32.mrf.mxu0
      %v1911 = vadd.f32 0.0, %v1910
      %1912 = vmatmul.bf16.gmra.mxu0 %v1232
      %v1913 = vpop.f32.mrf.mxu0
      %v1914 = vadd.f32 0.0, %v1913
      %v1915 = vpop.f32.mrf.mxu0
      %v1916 = vadd.f32 0.0, %v1915
      %1917 = vmatmul.bf16.gmra.mxu0 %v1241
      %v1918 = vpop.f32.mrf.mxu0
      %v1919 = vadd.f32 0.0, %v1918
      %v1920 = vpop.f32.mrf.mxu0
      %v1921 = vadd.f32 0.0, %v1920
      %1922 = vmatmul.bf16.gmra.mxu0 %v1250
      %v1923 = vpop.f32.mrf.mxu0
      %v1924 = vadd.f32 0.0, %v1923
      %v1925 = vpop.f32.mrf.mxu0
      %v1926 = vadd.f32 0.0, %v1925
      %1927 = vmatmul.bf16.gmra.mxu0 %v1259
      %v1928 = vpop.f32.mrf.mxu0
      %v1929 = vadd.f32 0.0, %v1928
      %v1930 = vpop.f32.mrf.mxu0
      %v1931 = vadd.f32 0.0, %v1930
      %1932 = vdwg.mxu0
      %1933 = vmatpush.bf16.msra.mxu0 %v1715
      %1934 = vmatpush.bf16.msra.mxu0 %v1714
      %1935 = vmatpush.bf16.msra.mxu0 %v1713
      %1936 = vmatpush.bf16.msra.mxu0 %v1712
      %1937 = vmatpush.bf16.msra.mxu0 %v1711
      %1938 = vmatpush.bf16.msra.mxu0 %v1710
      %1939 = vmatpush.bf16.msra.mxu0 %v1709
      %1940 = vmatpush.bf16.msra.mxu0 %v1708
      %1941 = vmatmul.bf16.gmra.mxu0 %v1125
      %v1942 = vpop.f32.mrf.mxu0
      %v1943 = vadd.f32 %v1854, %v1942
      %v1944 = vpop.f32.mrf.mxu0
      %v1945 = vadd.f32 %v1856, %v1944
      %1946 = vmatmul.bf16.gmra.mxu0 %v1134
      %v1947 = vpop.f32.mrf.mxu0
      %v1948 = vadd.f32 %v1859, %v1947
      %v1949 = vpop.f32.mrf.mxu0
      %v1950 = vadd.f32 %v1861, %v1949
      %1951 = vmatmul.bf16.gmra.mxu0 %v1143
      %v1952 = vpop.f32.mrf.mxu0
      %v1953 = vadd.f32 %v1864, %v1952
      %v1954 = vpop.f32.mrf.mxu0
      %v1955 = vadd.f32 %v1866, %v1954
      %1956 = vmatmul.bf16.gmra.mxu0 %v1152
      %v1957 = vpop.f32.mrf.mxu0
      %v1958 = vadd.f32 %v1869, %v1957
      %v1959 = vpop.f32.mrf.mxu0
      %v1960 = vadd.f32 %v1871, %v1959
      %1961 = vmatmul.bf16.gmra.mxu0 %v1161
      %v1962 = vpop.f32.mrf.mxu0
      %v1963 = vadd.f32 %v1874, %v1962
      %v1964 = vpop.f32.mrf.mxu0
      %v1965 = vadd.f32 %v1876, %v1964
      %1966 = vmatmul.bf16.gmra.mxu0 %v1170
      %v1967 = vpop.f32.mrf.mxu0
      %v1968 = vadd.f32 %v1879, %v1967
      %v1969 = vpop.f32.mrf.mxu0
      %v1970 = vadd.f32 %v1881, %v1969
      %1971 = vmatmul.bf16.gmra.mxu0 %v1179
      %v1972 = vpop.f32.mrf.mxu0
      %v1973 = vadd.f32 %v1884, %v1972
      %v1974 = vpop.f32.mrf.mxu0
      %v1975 = vadd.f32 %v1886, %v1974
      %1976 = vmatmul.bf16.gmra.mxu0 %v1188
      %v1977 = vpop.f32.mrf.mxu0
      %v1978 = vadd.f32 %v1889, %v1977
      %v1979 = vpop.f32.mrf.mxu0
      %v1980 = vadd.f32 %v1891, %v1979
      %1981 = vmatmul.bf16.gmra.mxu0 %v1197
      %v1982 = vpop.f32.mrf.mxu0
      %v1983 = vadd.f32 %v1894, %v1982
      %v1984 = vpop.f32.mrf.mxu0
      %v1985 = vadd.f32 %v1896, %v1984
      %1986 = vmatmul.bf16.gmra.mxu0 %v1206
      %v1987 = vpop.f32.mrf.mxu0
      %v1988 = vadd.f32 %v1899, %v1987
      %v1989 = vpop.f32.mrf.mxu0
      %v1990 = vadd.f32 %v1901, %v1989
      %1991 = vmatmul.bf16.gmra.mxu0 %v1215
      %v1992 = vpop.f32.mrf.mxu0
      %v1993 = vadd.f32 %v1904, %v1992
      %v1994 = vpop.f32.mrf.mxu0
      %v1995 = vadd.f32 %v1906, %v1994
      %1996 = vmatmul.bf16.gmra.mxu0 %v1224
      %v1997 = vpop.f32.mrf.mxu0
      %v1998 = vadd.f32 %v1909, %v1997
      %v1999 = vpop.f32.mrf.mxu0
      %v2000 = vadd.f32 %v1911, %v1999
      %2001 = vmatmul.bf16.gmra.mxu0 %v1233
      %v2002 = vpop.f32.mrf.mxu0
      %v2003 = vadd.f32 %v1914, %v2002
      %v2004 = vpop.f32.mrf.mxu0
      %v2005 = vadd.f32 %v1916, %v2004
      %2006 = vmatmul.bf16.gmra.mxu0 %v1242
      %v2007 = vpop.f32.mrf.mxu0
      %v2008 = vadd.f32 %v1919, %v2007
      %v2009 = vpop.f32.mrf.mxu0
      %v2010 = vadd.f32 %v1921, %v2009
      %2011 = vmatmul.bf16.gmra.mxu0 %v1251
      %v2012 = vpop.f32.mrf.mxu0
      %v2013 = vadd.f32 %v1924, %v2012
      %v2014 = vpop.f32.mrf.mxu0
      %v2015 = vadd.f32 %v1926, %v2014
      %2016 = vmatmul.bf16.gmra.mxu0 %v1260
      %v2017 = vpop.f32.mrf.mxu0
      %v2018 = vadd.f32 %v1929, %v2017
      %v2019 = vpop.f32.mrf.mxu0
      %v2020 = vadd.f32 %v1931, %v2019
      %2021 = vdwg.mxu0
      %2022 = vmatpush.bf16.msra.mxu0 %v1723
      %2023 = vmatpush.bf16.msra.mxu0 %v1722
      %2024 = vmatpush.bf16.msra.mxu0 %v1721
      %2025 = vmatpush.bf16.msra.mxu0 %v1720
      %2026 = vmatpush.bf16.msra.mxu0 %v1719
      %2027 = vmatpush.bf16.msra.mxu0 %v1718
      %2028 = vmatpush.bf16.msra.mxu0 %v1717
      %2029 = vmatpush.bf16.msra.mxu0 %v1716
      %2030 = vmatmul.bf16.gmra.mxu0 %v1126
      %v2031 = vpop.f32.mrf.mxu0
      %v2032 = vadd.f32 %v1943, %v2031
      %v2033 = vpop.f32.mrf.mxu0
      %v2034 = vadd.f32 %v1945, %v2033
      %2035 = vmatmul.bf16.gmra.mxu0 %v1135
      %v2036 = vpop.f32.mrf.mxu0
      %v2037 = vadd.f32 %v1948, %v2036
      %v2038 = vpop.f32.mrf.mxu0
      %v2039 = vadd.f32 %v1950, %v2038
      %2040 = vmatmul.bf16.gmra.mxu0 %v1144
      %v2041 = vpop.f32.mrf.mxu0
      %v2042 = vadd.f32 %v1953, %v2041
      %v2043 = vpop.f32.mrf.mxu0
      %v2044 = vadd.f32 %v1955, %v2043
      %2045 = vmatmul.bf16.gmra.mxu0 %v1153
      %v2046 = vpop.f32.mrf.mxu0
      %v2047 = vadd.f32 %v1958, %v2046
      %v2048 = vpop.f32.mrf.mxu0
      %v2049 = vadd.f32 %v1960, %v2048
      %2050 = vmatmul.bf16.gmra.mxu0 %v1162
      %v2051 = vpop.f32.mrf.mxu0
      %v2052 = vadd.f32 %v1963, %v2051
      %v2053 = vpop.f32.mrf.mxu0
      %v2054 = vadd.f32 %v1965, %v2053
      %2055 = vmatmul.bf16.gmra.mxu0 %v1171
      %v2056 = vpop.f32.mrf.mxu0
      %v2057 = vadd.f32 %v1968, %v2056
      %v2058 = vpop.f32.mrf.mxu0
      %v2059 = vadd.f32 %v1970, %v2058
      %2060 = vmatmul.bf16.gmra.mxu0 %v1180
      %v2061 = vpop.f32.mrf.mxu0
      %v2062 = vadd.f32 %v1973, %v2061
      %v2063 = vpop.f32.mrf.mxu0
      %v2064 = vadd.f32 %v1975, %v2063
      %2065 = vmatmul.bf16.gmra.mxu0 %v1189
      %v2066 = vpop.f32.mrf.mxu0
      %v2067 = vadd.f32 %v1978, %v2066
      %v2068 = vpop.f32.mrf.mxu0
      %v2069 = vadd.f32 %v1980, %v2068
      %2070 = vmatmul.bf16.gmra.mxu0 %v1198
      %v2071 = vpop.f32.mrf.mxu0
      %v2072 = vadd.f32 %v1983, %v2071
      %v2073 = vpop.f32.mrf.mxu0
      %v2074 = vadd.f32 %v1985, %v2073
      %2075 = vmatmul.bf16.gmra.mxu0 %v1207
      %v2076 = vpop.f32.mrf.mxu0
      %v2077 = vadd.f32 %v1988, %v2076
      %v2078 = vpop.f32.mrf.mxu0
      %v2079 = vadd.f32 %v1990, %v2078
      %2080 = vmatmul.bf16.gmra.mxu0 %v1216
      %v2081 = vpop.f32.mrf.mxu0
      %v2082 = vadd.f32 %v1993, %v2081
      %v2083 = vpop.f32.mrf.mxu0
      %v2084 = vadd.f32 %v1995, %v2083
      %2085 = vmatmul.bf16.gmra.mxu0 %v1225
      %v2086 = vpop.f32.mrf.mxu0
      %v2087 = vadd.f32 %v1998, %v2086
      %v2088 = vpop.f32.mrf.mxu0
      %v2089 = vadd.f32 %v2000, %v2088
      %2090 = vmatmul.bf16.gmra.mxu0 %v1234
      %v2091 = vpop.f32.mrf.mxu0
      %v2092 = vadd.f32 %v2003, %v2091
      %v2093 = vpop.f32.mrf.mxu0
      %v2094 = vadd.f32 %v2005, %v2093
      %2095 = vmatmul.bf16.gmra.mxu0 %v1243
      %v2096 = vpop.f32.mrf.mxu0
      %v2097 = vadd.f32 %v2008, %v2096
      %v2098 = vpop.f32.mrf.mxu0
      %v2099 = vadd.f32 %v2010, %v2098
      %2100 = vmatmul.bf16.gmra.mxu0 %v1252
      %v2101 = vpop.f32.mrf.mxu0
      %v2102 = vadd.f32 %v2013, %v2101
      %v2103 = vpop.f32.mrf.mxu0
      %v2104 = vadd.f32 %v2015, %v2103
      %2105 = vmatmul.bf16.gmra.mxu0 %v1261
      %v2106 = vpop.f32.mrf.mxu0
      %v2107 = vadd.f32 %v2018, %v2106
      %v2108 = vpop.f32.mrf.mxu0
      %v2109 = vadd.f32 %v2020, %v2108
      %2110 = vdwg.mxu0
      %2111 = vmatpush.bf16.msra.mxu0 %v1731
      %2112 = vmatpush.bf16.msra.mxu0 %v1730
      %2113 = vmatpush.bf16.msra.mxu0 %v1729
      %2114 = vmatpush.bf16.msra.mxu0 %v1728
      %2115 = vmatpush.bf16.msra.mxu0 %v1727
      %2116 = vmatpush.bf16.msra.mxu0 %v1726
      %2117 = vmatpush.bf16.msra.mxu0 %v1725
      %2118 = vmatpush.bf16.msra.mxu0 %v1724
      %2119 = vmatmul.bf16.gmra.mxu0 %v1127
      %v2120 = vpop.f32.mrf.mxu0
      %v2121 = vadd.f32 %v2032, %v2120
      %v2122 = vpop.f32.mrf.mxu0
      %v2123 = vadd.f32 %v2034, %v2122
      %2124 = vmatmul.bf16.gmra.mxu0 %v1136
      %v2125 = vpop.f32.mrf.mxu0
      %v2126 = vadd.f32 %v2037, %v2125
      %v2127 = vpop.f32.mrf.mxu0
      %v2128 = vadd.f32 %v2039, %v2127
      %2129 = vmatmul.bf16.gmra.mxu0 %v1145
      %v2130 = vpop.f32.mrf.mxu0
      %v2131 = vadd.f32 %v2042, %v2130
      %v2132 = vpop.f32.mrf.mxu0
      %v2133 = vadd.f32 %v2044, %v2132
      %2134 = vmatmul.bf16.gmra.mxu0 %v1154
      %v2135 = vpop.f32.mrf.mxu0
      %v2136 = vadd.f32 %v2047, %v2135
      %v2137 = vpop.f32.mrf.mxu0
      %v2138 = vadd.f32 %v2049, %v2137
      %2139 = vmatmul.bf16.gmra.mxu0 %v1163
      %v2140 = vpop.f32.mrf.mxu0
      %v2141 = vadd.f32 %v2052, %v2140
      %v2142 = vpop.f32.mrf.mxu0
      %v2143 = vadd.f32 %v2054, %v2142
      %2144 = vmatmul.bf16.gmra.mxu0 %v1172
      %v2145 = vpop.f32.mrf.mxu0
      %v2146 = vadd.f32 %v2057, %v2145
      %v2147 = vpop.f32.mrf.mxu0
      %v2148 = vadd.f32 %v2059, %v2147
      %2149 = vmatmul.bf16.gmra.mxu0 %v1181
      %v2150 = vpop.f32.mrf.mxu0
      %v2151 = vadd.f32 %v2062, %v2150
      %v2152 = vpop.f32.mrf.mxu0
      %v2153 = vadd.f32 %v2064, %v2152
      %2154 = vmatmul.bf16.gmra.mxu0 %v1190
      %v2155 = vpop.f32.mrf.mxu0
      %v2156 = vadd.f32 %v2067, %v2155
      %v2157 = vpop.f32.mrf.mxu0
      %v2158 = vadd.f32 %v2069, %v2157
      %2159 = vmatmul.bf16.gmra.mxu0 %v1199
      %v2160 = vpop.f32.mrf.mxu0
      %v2161 = vadd.f32 %v2072, %v2160
      %v2162 = vpop.f32.mrf.mxu0
      %v2163 = vadd.f32 %v2074, %v2162
      %2164 = vmatmul.bf16.gmra.mxu0 %v1208
      %v2165 = vpop.f32.mrf.mxu0
      %v2166 = vadd.f32 %v2077, %v2165
      %v2167 = vpop.f32.mrf.mxu0
      %v2168 = vadd.f32 %v2079, %v2167
      %2169 = vmatmul.bf16.gmra.mxu0 %v1217
      %v2170 = vpop.f32.mrf.mxu0
      %v2171 = vadd.f32 %v2082, %v2170
      %v2172 = vpop.f32.mrf.mxu0
      %v2173 = vadd.f32 %v2084, %v2172
      %2174 = vmatmul.bf16.gmra.mxu0 %v1226
      %v2175 = vpop.f32.mrf.mxu0
      %v2176 = vadd.f32 %v2087, %v2175
      %v2177 = vpop.f32.mrf.mxu0
      %v2178 = vadd.f32 %v2089, %v2177
      %2179 = vmatmul.bf16.gmra.mxu0 %v1235
      %v2180 = vpop.f32.mrf.mxu0
      %v2181 = vadd.f32 %v2092, %v2180
      %v2182 = vpop.f32.mrf.mxu0
      %v2183 = vadd.f32 %v2094, %v2182
      %2184 = vmatmul.bf16.gmra.mxu0 %v1244
      %v2185 = vpop.f32.mrf.mxu0
      %v2186 = vadd.f32 %v2097, %v2185
      %v2187 = vpop.f32.mrf.mxu0
      %v2188 = vadd.f32 %v2099, %v2187
      %2189 = vmatmul.bf16.gmra.mxu0 %v1253
      %v2190 = vpop.f32.mrf.mxu0
      %v2191 = vadd.f32 %v2102, %v2190
      %v2192 = vpop.f32.mrf.mxu0
      %v2193 = vadd.f32 %v2104, %v2192
      %2194 = vmatmul.bf16.gmra.mxu0 %v1262
      %v2195 = vpop.f32.mrf.mxu0
      %v2196 = vadd.f32 %v2107, %v2195
      %v2197 = vpop.f32.mrf.mxu0
      %v2198 = vadd.f32 %v2109, %v2197
      %2199 = vdwg.mxu0
      %2200 = vmatpush.bf16.msra.mxu0 %v1739
      %2201 = vmatpush.bf16.msra.mxu0 %v1738
      %2202 = vmatpush.bf16.msra.mxu0 %v1737
      %2203 = vmatpush.bf16.msra.mxu0 %v1736
      %2204 = vmatpush.bf16.msra.mxu0 %v1735
      %2205 = vmatpush.bf16.msra.mxu0 %v1734
      %2206 = vmatpush.bf16.msra.mxu0 %v1733
      %2207 = vmatpush.bf16.msra.mxu0 %v1732
      %2208 = vmatmul.bf16.gmra.mxu0 %v1128
      %v2209 = vpop.f32.mrf.mxu0
      %v2210 = vadd.f32 %v2121, %v2209
      %v2211 = vpop.f32.mrf.mxu0
      %v2212 = vadd.f32 %v2123, %v2211
      %2213 = vmatmul.bf16.gmra.mxu0 %v1137
      %v2214 = vpop.f32.mrf.mxu0
      %v2215 = vadd.f32 %v2126, %v2214
      %v2216 = vpop.f32.mrf.mxu0
      %v2217 = vadd.f32 %v2128, %v2216
      %2218 = vmatmul.bf16.gmra.mxu0 %v1146
      %v2219 = vpop.f32.mrf.mxu0
      %v2220 = vadd.f32 %v2131, %v2219
      %v2221 = vpop.f32.mrf.mxu0
      %v2222 = vadd.f32 %v2133, %v2221
      %2223 = vmatmul.bf16.gmra.mxu0 %v1155
      %v2224 = vpop.f32.mrf.mxu0
      %v2225 = vadd.f32 %v2136, %v2224
      %v2226 = vpop.f32.mrf.mxu0
      %v2227 = vadd.f32 %v2138, %v2226
      %2228 = vmatmul.bf16.gmra.mxu0 %v1164
      %v2229 = vpop.f32.mrf.mxu0
      %v2230 = vadd.f32 %v2141, %v2229
      %v2231 = vpop.f32.mrf.mxu0
      %v2232 = vadd.f32 %v2143, %v2231
      %2233 = vmatmul.bf16.gmra.mxu0 %v1173
      %v2234 = vpop.f32.mrf.mxu0
      %v2235 = vadd.f32 %v2146, %v2234
      %v2236 = vpop.f32.mrf.mxu0
      %v2237 = vadd.f32 %v2148, %v2236
      %2238 = vmatmul.bf16.gmra.mxu0 %v1182
      %v2239 = vpop.f32.mrf.mxu0
      %v2240 = vadd.f32 %v2151, %v2239
      %v2241 = vpop.f32.mrf.mxu0
      %v2242 = vadd.f32 %v2153, %v2241
      %2243 = vmatmul.bf16.gmra.mxu0 %v1191
      %v2244 = vpop.f32.mrf.mxu0
      %v2245 = vadd.f32 %v2156, %v2244
      %v2246 = vpop.f32.mrf.mxu0
      %v2247 = vadd.f32 %v2158, %v2246
      %2248 = vmatmul.bf16.gmra.mxu0 %v1200
      %v2249 = vpop.f32.mrf.mxu0
      %v2250 = vadd.f32 %v2161, %v2249
      %v2251 = vpop.f32.mrf.mxu0
      %v2252 = vadd.f32 %v2163, %v2251
      %2253 = vmatmul.bf16.gmra.mxu0 %v1209
      %v2254 = vpop.f32.mrf.mxu0
      %v2255 = vadd.f32 %v2166, %v2254
      %v2256 = vpop.f32.mrf.mxu0
      %v2257 = vadd.f32 %v2168, %v2256
      %2258 = vmatmul.bf16.gmra.mxu0 %v1218
      %v2259 = vpop.f32.mrf.mxu0
      %v2260 = vadd.f32 %v2171, %v2259
      %v2261 = vpop.f32.mrf.mxu0
      %v2262 = vadd.f32 %v2173, %v2261
      %2263 = vmatmul.bf16.gmra.mxu0 %v1227
      %v2264 = vpop.f32.mrf.mxu0
      %v2265 = vadd.f32 %v2176, %v2264
      %v2266 = vpop.f32.mrf.mxu0
      %v2267 = vadd.f32 %v2178, %v2266
      %2268 = vmatmul.bf16.gmra.mxu0 %v1236
      %v2269 = vpop.f32.mrf.mxu0
      %v2270 = vadd.f32 %v2181, %v2269
      %v2271 = vpop.f32.mrf.mxu0
      %v2272 = vadd.f32 %v2183, %v2271
      %2273 = vmatmul.bf16.gmra.mxu0 %v1245
      %v2274 = vpop.f32.mrf.mxu0
      %v2275 = vadd.f32 %v2186, %v2274
      %v2276 = vpop.f32.mrf.mxu0
      %v2277 = vadd.f32 %v2188, %v2276
      %2278 = vmatmul.bf16.gmra.mxu0 %v1254
      %v2279 = vpop.f32.mrf.mxu0
      %v2280 = vadd.f32 %v2191, %v2279
      %v2281 = vpop.f32.mrf.mxu0
      %v2282 = vadd.f32 %v2193, %v2281
      %2283 = vmatmul.bf16.gmra.mxu0 %v1263
      %v2284 = vpop.f32.mrf.mxu0
      %v2285 = vadd.f32 %v2196, %v2284
      %v2286 = vpop.f32.mrf.mxu0
      %v2287 = vadd.f32 %v2198, %v2286
      %2288 = vdwg.mxu0
      %2289 = vmatpush.bf16.msra.mxu0 %v1747
      %2290 = vmatpush.bf16.msra.mxu0 %v1746
      %2291 = vmatpush.bf16.msra.mxu0 %v1745
      %2292 = vmatpush.bf16.msra.mxu0 %v1744
      %2293 = vmatpush.bf16.msra.mxu0 %v1743
      %2294 = vmatpush.bf16.msra.mxu0 %v1742
      %2295 = vmatpush.bf16.msra.mxu0 %v1741
      %2296 = vmatpush.bf16.msra.mxu0 %v1740
      %2297 = vmatmul.bf16.gmra.mxu0 %v1129
      %v2298 = vpop.f32.mrf.mxu0
      %v2299 = vadd.f32 %v2210, %v2298
      %v2300 = vpop.f32.mrf.mxu0
      %v2301 = vadd.f32 %v2212, %v2300
      %2302 = vmatmul.bf16.gmra.mxu0 %v1138
      %v2303 = vpop.f32.mrf.mxu0
      %v2304 = vadd.f32 %v2215, %v2303
      %v2305 = vpop.f32.mrf.mxu0
      %v2306 = vadd.f32 %v2217, %v2305
      %2307 = vmatmul.bf16.gmra.mxu0 %v1147
      %v2308 = vpop.f32.mrf.mxu0
      %v2309 = vadd.f32 %v2220, %v2308
      %v2310 = vpop.f32.mrf.mxu0
      %v2311 = vadd.f32 %v2222, %v2310
      %2312 = vmatmul.bf16.gmra.mxu0 %v1156
      %v2313 = vpop.f32.mrf.mxu0
      %v2314 = vadd.f32 %v2225, %v2313
      %v2315 = vpop.f32.mrf.mxu0
      %v2316 = vadd.f32 %v2227, %v2315
      %2317 = vmatmul.bf16.gmra.mxu0 %v1165
      %v2318 = vpop.f32.mrf.mxu0
      %v2319 = vadd.f32 %v2230, %v2318
      %v2320 = vpop.f32.mrf.mxu0
      %v2321 = vadd.f32 %v2232, %v2320
      %2322 = vmatmul.bf16.gmra.mxu0 %v1174
      %v2323 = vpop.f32.mrf.mxu0
      %v2324 = vadd.f32 %v2235, %v2323
      %v2325 = vpop.f32.mrf.mxu0
      %v2326 = vadd.f32 %v2237, %v2325
      %2327 = vmatmul.bf16.gmra.mxu0 %v1183
      %v2328 = vpop.f32.mrf.mxu0
      %v2329 = vadd.f32 %v2240, %v2328
      %v2330 = vpop.f32.mrf.mxu0
      %v2331 = vadd.f32 %v2242, %v2330
      %2332 = vmatmul.bf16.gmra.mxu0 %v1192
      %v2333 = vpop.f32.mrf.mxu0
      %v2334 = vadd.f32 %v2245, %v2333
      %v2335 = vpop.f32.mrf.mxu0
      %v2336 = vadd.f32 %v2247, %v2335
      %2337 = vmatmul.bf16.gmra.mxu0 %v1201
      %v2338 = vpop.f32.mrf.mxu0
      %v2339 = vadd.f32 %v2250, %v2338
      %v2340 = vpop.f32.mrf.mxu0
      %v2341 = vadd.f32 %v2252, %v2340
      %2342 = vmatmul.bf16.gmra.mxu0 %v1210
      %v2343 = vpop.f32.mrf.mxu0
      %v2344 = vadd.f32 %v2255, %v2343
      %v2345 = vpop.f32.mrf.mxu0
      %v2346 = vadd.f32 %v2257, %v2345
      %2347 = vmatmul.bf16.gmra.mxu0 %v1219
      %v2348 = vpop.f32.mrf.mxu0
      %v2349 = vadd.f32 %v2260, %v2348
      %v2350 = vpop.f32.mrf.mxu0
      %v2351 = vadd.f32 %v2262, %v2350
      %2352 = vmatmul.bf16.gmra.mxu0 %v1228
      %v2353 = vpop.f32.mrf.mxu0
      %v2354 = vadd.f32 %v2265, %v2353
      %v2355 = vpop.f32.mrf.mxu0
      %v2356 = vadd.f32 %v2267, %v2355
      %2357 = vmatmul.bf16.gmra.mxu0 %v1237
      %v2358 = vpop.f32.mrf.mxu0
      %v2359 = vadd.f32 %v2270, %v2358
      %v2360 = vpop.f32.mrf.mxu0
      %v2361 = vadd.f32 %v2272, %v2360
      %2362 = vmatmul.bf16.gmra.mxu0 %v1246
      %v2363 = vpop.f32.mrf.mxu0
      %v2364 = vadd.f32 %v2275, %v2363
      %v2365 = vpop.f32.mrf.mxu0
      %v2366 = vadd.f32 %v2277, %v2365
      %2367 = vmatmul.bf16.gmra.mxu0 %v1255
      %v2368 = vpop.f32.mrf.mxu0
      %v2369 = vadd.f32 %v2280, %v2368
      %v2370 = vpop.f32.mrf.mxu0
      %v2371 = vadd.f32 %v2282, %v2370
      %2372 = vmatmul.bf16.gmra.mxu0 %v1264
      %v2373 = vpop.f32.mrf.mxu0
      %v2374 = vadd.f32 %v2285, %v2373
      %v2375 = vpop.f32.mrf.mxu0
      %v2376 = vadd.f32 %v2287, %v2375
      %2377 = vdwg.mxu0
      %2378 = vmatpush.bf16.msra.mxu0 %v1755
      %2379 = vmatpush.bf16.msra.mxu0 %v1754
      %2380 = vmatpush.bf16.msra.mxu0 %v1753
      %2381 = vmatpush.bf16.msra.mxu0 %v1752
      %2382 = vmatpush.bf16.msra.mxu0 %v1751
      %2383 = vmatpush.bf16.msra.mxu0 %v1750
      %2384 = vmatpush.bf16.msra.mxu0 %v1749
      %2385 = vmatpush.bf16.msra.mxu0 %v1748
      %2386 = vmatmul.bf16.gmra.mxu0 %v1130
      %v2387 = vpop.f32.mrf.mxu0
      %v2388 = vadd.f32 %v2299, %v2387
      %v2389 = vpop.f32.mrf.mxu0
      %v2390 = vadd.f32 %v2301, %v2389
      %2391 = vmatmul.bf16.gmra.mxu0 %v1139
      %v2392 = vpop.f32.mrf.mxu0
      %v2393 = vadd.f32 %v2304, %v2392
      %v2394 = vpop.f32.mrf.mxu0
      %v2395 = vadd.f32 %v2306, %v2394
      %2396 = vmatmul.bf16.gmra.mxu0 %v1148
      %v2397 = vpop.f32.mrf.mxu0
      %v2398 = vadd.f32 %v2309, %v2397
      %v2399 = vpop.f32.mrf.mxu0
      %v2400 = vadd.f32 %v2311, %v2399
      %2401 = vmatmul.bf16.gmra.mxu0 %v1157
      %v2402 = vpop.f32.mrf.mxu0
      %v2403 = vadd.f32 %v2314, %v2402
      %v2404 = vpop.f32.mrf.mxu0
      %v2405 = vadd.f32 %v2316, %v2404
      %2406 = vmatmul.bf16.gmra.mxu0 %v1166
      %v2407 = vpop.f32.mrf.mxu0
      %v2408 = vadd.f32 %v2319, %v2407
      %v2409 = vpop.f32.mrf.mxu0
      %v2410 = vadd.f32 %v2321, %v2409
      %2411 = vmatmul.bf16.gmra.mxu0 %v1175
      %v2412 = vpop.f32.mrf.mxu0
      %v2413 = vadd.f32 %v2324, %v2412
      %v2414 = vpop.f32.mrf.mxu0
      %v2415 = vadd.f32 %v2326, %v2414
      %2416 = vmatmul.bf16.gmra.mxu0 %v1184
      %v2417 = vpop.f32.mrf.mxu0
      %v2418 = vadd.f32 %v2329, %v2417
      %v2419 = vpop.f32.mrf.mxu0
      %v2420 = vadd.f32 %v2331, %v2419
      %2421 = vmatmul.bf16.gmra.mxu0 %v1193
      %v2422 = vpop.f32.mrf.mxu0
      %v2423 = vadd.f32 %v2334, %v2422
      %v2424 = vpop.f32.mrf.mxu0
      %v2425 = vadd.f32 %v2336, %v2424
      %2426 = vmatmul.bf16.gmra.mxu0 %v1202
      %v2427 = vpop.f32.mrf.mxu0
      %v2428 = vadd.f32 %v2339, %v2427
      %v2429 = vpop.f32.mrf.mxu0
      %v2430 = vadd.f32 %v2341, %v2429
      %2431 = vmatmul.bf16.gmra.mxu0 %v1211
      %v2432 = vpop.f32.mrf.mxu0
      %v2433 = vadd.f32 %v2344, %v2432
      %v2434 = vpop.f32.mrf.mxu0
      %v2435 = vadd.f32 %v2346, %v2434
      %2436 = vmatmul.bf16.gmra.mxu0 %v1220
      %v2437 = vpop.f32.mrf.mxu0
      %v2438 = vadd.f32 %v2349, %v2437
      %v2439 = vpop.f32.mrf.mxu0
      %v2440 = vadd.f32 %v2351, %v2439
      %2441 = vmatmul.bf16.gmra.mxu0 %v1229
      %v2442 = vpop.f32.mrf.mxu0
      %v2443 = vadd.f32 %v2354, %v2442
      %v2444 = vpop.f32.mrf.mxu0
      %v2445 = vadd.f32 %v2356, %v2444
      %2446 = vmatmul.bf16.gmra.mxu0 %v1238
      %v2447 = vpop.f32.mrf.mxu0
      %v2448 = vadd.f32 %v2359, %v2447
      %v2449 = vpop.f32.mrf.mxu0
      %v2450 = vadd.f32 %v2361, %v2449
      %2451 = vmatmul.bf16.gmra.mxu0 %v1247
      %v2452 = vpop.f32.mrf.mxu0
      %v2453 = vadd.f32 %v2364, %v2452
      %v2454 = vpop.f32.mrf.mxu0
      %v2455 = vadd.f32 %v2366, %v2454
      %2456 = vmatmul.bf16.gmra.mxu0 %v1256
      %v2457 = vpop.f32.mrf.mxu0
      %v2458 = vadd.f32 %v2369, %v2457
      %v2459 = vpop.f32.mrf.mxu0
      %v2460 = vadd.f32 %v2371, %v2459
      %2461 = vmatmul.bf16.gmra.mxu0 %v1265
      %v2462 = vpop.f32.mrf.mxu0
      %v2463 = vadd.f32 %v2374, %v2462
      %v2464 = vpop.f32.mrf.mxu0
      %v2465 = vadd.f32 %v2376, %v2464
      %2466 = vdwg.mxu0
      %2467 = vmatpush.bf16.msra.mxu0 %v1763
      %2468 = vmatpush.bf16.msra.mxu0 %v1762
      %2469 = vmatpush.bf16.msra.mxu0 %v1761
      %2470 = vmatpush.bf16.msra.mxu0 %v1760
      %2471 = vmatpush.bf16.msra.mxu0 %v1759
      %2472 = vmatpush.bf16.msra.mxu0 %v1758
      %2473 = vmatpush.bf16.msra.mxu0 %v1757
      %2474 = vmatpush.bf16.msra.mxu0 %v1756
      %2475 = vmatmul.bf16.gmra.mxu0 %v1131
      %v2476 = vpop.f32.mrf.mxu0
      %v2477 = vadd.f32 %v2388, %v2476
      %v2478 = vpop.f32.mrf.mxu0
      %v2479 = vadd.f32 %v2390, %v2478
      %2480 = vmatmul.bf16.gmra.mxu0 %v1140
      %v2481 = vpop.f32.mrf.mxu0
      %v2482 = vadd.f32 %v2393, %v2481
      %v2483 = vpop.f32.mrf.mxu0
      %v2484 = vadd.f32 %v2395, %v2483
      %2485 = vmatmul.bf16.gmra.mxu0 %v1149
      %v2486 = vpop.f32.mrf.mxu0
      %v2487 = vadd.f32 %v2398, %v2486
      %v2488 = vpop.f32.mrf.mxu0
      %v2489 = vadd.f32 %v2400, %v2488
      %2490 = vmatmul.bf16.gmra.mxu0 %v1158
      %v2491 = vpop.f32.mrf.mxu0
      %v2492 = vadd.f32 %v2403, %v2491
      %v2493 = vpop.f32.mrf.mxu0
      %v2494 = vadd.f32 %v2405, %v2493
      %2495 = vmatmul.bf16.gmra.mxu0 %v1167
      %v2496 = vpop.f32.mrf.mxu0
      %v2497 = vadd.f32 %v2408, %v2496
      %v2498 = vpop.f32.mrf.mxu0
      %v2499 = vadd.f32 %v2410, %v2498
      %2500 = vmatmul.bf16.gmra.mxu0 %v1176
      %v2501 = vpop.f32.mrf.mxu0
      %v2502 = vadd.f32 %v2413, %v2501
      %v2503 = vpop.f32.mrf.mxu0
      %v2504 = vadd.f32 %v2415, %v2503
      %2505 = vmatmul.bf16.gmra.mxu0 %v1185
      %v2506 = vpop.f32.mrf.mxu0
      %v2507 = vadd.f32 %v2418, %v2506
      %v2508 = vpop.f32.mrf.mxu0
      %v2509 = vadd.f32 %v2420, %v2508
      %2510 = vmatmul.bf16.gmra.mxu0 %v1194
      %v2511 = vpop.f32.mrf.mxu0
      %v2512 = vadd.f32 %v2423, %v2511
      %v2513 = vpop.f32.mrf.mxu0
      %v2514 = vadd.f32 %v2425, %v2513
      %2515 = vmatmul.bf16.gmra.mxu0 %v1203
      %v2516 = vpop.f32.mrf.mxu0
      %v2517 = vadd.f32 %v2428, %v2516
      %v2518 = vpop.f32.mrf.mxu0
      %v2519 = vadd.f32 %v2430, %v2518
      %2520 = vmatmul.bf16.gmra.mxu0 %v1212
      %v2521 = vpop.f32.mrf.mxu0
      %v2522 = vadd.f32 %v2433, %v2521
      %v2523 = vpop.f32.mrf.mxu0
      %v2524 = vadd.f32 %v2435, %v2523
      %2525 = vmatmul.bf16.gmra.mxu0 %v1221
      %v2526 = vpop.f32.mrf.mxu0
      %v2527 = vadd.f32 %v2438, %v2526
      %v2528 = vpop.f32.mrf.mxu0
      %v2529 = vadd.f32 %v2440, %v2528
      %2530 = vmatmul.bf16.gmra.mxu0 %v1230
      %v2531 = vpop.f32.mrf.mxu0
      %v2532 = vadd.f32 %v2443, %v2531
      %v2533 = vpop.f32.mrf.mxu0
      %v2534 = vadd.f32 %v2445, %v2533
      %2535 = vmatmul.bf16.gmra.mxu0 %v1239
      %v2536 = vpop.f32.mrf.mxu0
      %v2537 = vadd.f32 %v2448, %v2536
      %v2538 = vpop.f32.mrf.mxu0
      %v2539 = vadd.f32 %v2450, %v2538
      %2540 = vmatmul.bf16.gmra.mxu0 %v1248
      %v2541 = vpop.f32.mrf.mxu0
      %v2542 = vadd.f32 %v2453, %v2541
      %v2543 = vpop.f32.mrf.mxu0
      %v2544 = vadd.f32 %v2455, %v2543
      %2545 = vmatmul.bf16.gmra.mxu0 %v1257
      %v2546 = vpop.f32.mrf.mxu0
      %v2547 = vadd.f32 %v2458, %v2546
      %v2548 = vpop.f32.mrf.mxu0
      %v2549 = vadd.f32 %v2460, %v2548
      %2550 = vmatmul.bf16.gmra.mxu0 %v1266
      %v2551 = vpop.f32.mrf.mxu0
      %v2552 = vadd.f32 %v2463, %v2551
      %v2553 = vpop.f32.mrf.mxu0
      %v2554 = vadd.f32 %v2465, %v2553
      %2555 = vdwg.mxu0
      %2556 = vmatpush.bf16.msra.mxu0 %v1771
      %2557 = vmatpush.bf16.msra.mxu0 %v1770
      %2558 = vmatpush.bf16.msra.mxu0 %v1769
      %2559 = vmatpush.bf16.msra.mxu0 %v1768
      %2560 = vmatpush.bf16.msra.mxu0 %v1767
      %2561 = vmatpush.bf16.msra.mxu0 %v1766
      %2562 = vmatpush.bf16.msra.mxu0 %v1765
      %2563 = vmatpush.bf16.msra.mxu0 %v1764
      %2564 = vmatmul.bf16.gmra.mxu0 %v1132
      %v2565 = vpop.f32.mrf.mxu0
      %v2566 = vadd.f32 %v2477, %v2565
      %v2567 = vpop.f32.mrf.mxu0
      %v2568 = vadd.f32 %v2479, %v2567
      %2569 = vmatmul.bf16.gmra.mxu0 %v1141
      %v2570 = vpop.f32.mrf.mxu0
      %v2571 = vadd.f32 %v2482, %v2570
      %v2572 = vpop.f32.mrf.mxu0
      %v2573 = vadd.f32 %v2484, %v2572
      %2574 = vmatmul.bf16.gmra.mxu0 %v1150
      %v2575 = vpop.f32.mrf.mxu0
      %v2576 = vadd.f32 %v2487, %v2575
      %v2577 = vpop.f32.mrf.mxu0
      %v2578 = vadd.f32 %v2489, %v2577
      %2579 = vmatmul.bf16.gmra.mxu0 %v1159
      %v2580 = vpop.f32.mrf.mxu0
      %v2581 = vadd.f32 %v2492, %v2580
      %v2582 = vpop.f32.mrf.mxu0
      %v2583 = vadd.f32 %v2494, %v2582
      %2584 = vmatmul.bf16.gmra.mxu0 %v1168
      %v2585 = vpop.f32.mrf.mxu0
      %v2586 = vadd.f32 %v2497, %v2585
      %v2587 = vpop.f32.mrf.mxu0
      %v2588 = vadd.f32 %v2499, %v2587
      %2589 = vmatmul.bf16.gmra.mxu0 %v1177
      %v2590 = vpop.f32.mrf.mxu0
      %v2591 = vadd.f32 %v2502, %v2590
      %v2592 = vpop.f32.mrf.mxu0
      %v2593 = vadd.f32 %v2504, %v2592
      %2594 = vmatmul.bf16.gmra.mxu0 %v1186
      %v2595 = vpop.f32.mrf.mxu0
      %v2596 = vadd.f32 %v2507, %v2595
      %v2597 = vpop.f32.mrf.mxu0
      %v2598 = vadd.f32 %v2509, %v2597
      %2599 = vmatmul.bf16.gmra.mxu0 %v1195
      %v2600 = vpop.f32.mrf.mxu0
      %v2601 = vadd.f32 %v2512, %v2600
      %v2602 = vpop.f32.mrf.mxu0
      %v2603 = vadd.f32 %v2514, %v2602
      %2604 = vmatmul.bf16.gmra.mxu0 %v1204
      %v2605 = vpop.f32.mrf.mxu0
      %v2606 = vadd.f32 %v2517, %v2605
      %v2607 = vpop.f32.mrf.mxu0
      %v2608 = vadd.f32 %v2519, %v2607
      %2609 = vmatmul.bf16.gmra.mxu0 %v1213
      %v2610 = vpop.f32.mrf.mxu0
      %v2611 = vadd.f32 %v2522, %v2610
      %v2612 = vpop.f32.mrf.mxu0
      %v2613 = vadd.f32 %v2524, %v2612
      %2614 = vmatmul.bf16.gmra.mxu0 %v1222
      %v2615 = vpop.f32.mrf.mxu0
      %v2616 = vadd.f32 %v2527, %v2615
      %v2617 = vpop.f32.mrf.mxu0
      %v2618 = vadd.f32 %v2529, %v2617
      %2619 = vmatmul.bf16.gmra.mxu0 %v1231
      %v2620 = vpop.f32.mrf.mxu0
      %v2621 = vadd.f32 %v2532, %v2620
      %v2622 = vpop.f32.mrf.mxu0
      %v2623 = vadd.f32 %v2534, %v2622
      %2624 = vmatmul.bf16.gmra.mxu0 %v1240
      %v2625 = vpop.f32.mrf.mxu0
      %v2626 = vadd.f32 %v2537, %v2625
      %v2627 = vpop.f32.mrf.mxu0
      %v2628 = vadd.f32 %v2539, %v2627
      %2629 = vmatmul.bf16.gmra.mxu0 %v1249
      %v2630 = vpop.f32.mrf.mxu0
      %v2631 = vadd.f32 %v2542, %v2630
      %v2632 = vpop.f32.mrf.mxu0
      %v2633 = vadd.f32 %v2544, %v2632
      %2634 = vmatmul.bf16.gmra.mxu0 %v1258
      %v2635 = vpop.f32.mrf.mxu0
      %v2636 = vadd.f32 %v2547, %v2635
      %v2637 = vpop.f32.mrf.mxu0
      %v2638 = vadd.f32 %v2549, %v2637
      %2639 = vmatmul.bf16.gmra.mxu0 %v1267
      %v2640 = vpop.f32.mrf.mxu0
      %v2641 = vadd.f32 %v2552, %v2640
      %v2642 = vpop.f32.mrf.mxu0
      %v2643 = vadd.f32 %v2554, %v2642
      %2644 = vdwg.mxu0
      %v2645 = vld [vmem:[%s346] sm:$0x1]
      %v2647 = vperm.slane %v2645, 0
      %v2649 = vmul.f32 %v2566, %v2647
      %v2650 = vmul.f32 %v2568, %v2647
      %v2651 = vmul.f32 %v2571, %v2647
      %v2652 = vmul.f32 %v2573, %v2647
      %v2653 = vmul.f32 %v2576, %v2647
      %v2654 = vmul.f32 %v2578, %v2647
      %v2655 = vmul.f32 %v2581, %v2647
      %v2656 = vmul.f32 %v2583, %v2647
      %v2657 = vmul.f32 %v2586, %v2647
      %v2658 = vmul.f32 %v2588, %v2647
      %v2659 = vmul.f32 %v2591, %v2647
      %v2660 = vmul.f32 %v2593, %v2647
      %v2661 = vmul.f32 %v2596, %v2647
      %v2662 = vmul.f32 %v2598, %v2647
      %v2663 = vmul.f32 %v2601, %v2647
      %v2664 = vmul.f32 %v2603, %v2647
      %v2665 = vmul.f32 %v2606, %v2647
      %v2666 = vmul.f32 %v2608, %v2647
      %v2667 = vmul.f32 %v2611, %v2647
      %v2668 = vmul.f32 %v2613, %v2647
      %v2669 = vmul.f32 %v2616, %v2647
      %v2670 = vmul.f32 %v2618, %v2647
      %v2671 = vmul.f32 %v2621, %v2647
      %v2672 = vmul.f32 %v2623, %v2647
      %v2673 = vmul.f32 %v2626, %v2647
      %v2674 = vmul.f32 %v2628, %v2647
      %v2675 = vmul.f32 %v2631, %v2647
      %v2676 = vmul.f32 %v2633, %v2647
      %v2677 = vmul.f32 %v2636, %v2647
      %v2678 = vmul.f32 %v2638, %v2647
      %v2679 = vmul.f32 %v2641, %v2647
      %v2680 = vmul.f32 %v2643, %v2647
      %v2681 = vld [vmem:[%s352] sm:$0x1]
      %v2683 = vperm.slane %v2681, 0
      %v2685 = vadd.f32 %v2649, %v2683
      %v2686 = vadd.f32 %v2650, %v2683
      %v2687 = vadd.f32 %v2651, %v2683
      %v2688 = vadd.f32 %v2652, %v2683
      %v2689 = vadd.f32 %v2653, %v2683
      %v2690 = vadd.f32 %v2654, %v2683
      %v2691 = vadd.f32 %v2655, %v2683
      %v2692 = vadd.f32 %v2656, %v2683
      %v2693 = vadd.f32 %v2657, %v2683
      %v2694 = vadd.f32 %v2658, %v2683
      %v2695 = vadd.f32 %v2659, %v2683
      %v2696 = vadd.f32 %v2660, %v2683
      %v2697 = vadd.f32 %v2661, %v2683
      %v2698 = vadd.f32 %v2662, %v2683
      %v2699 = vadd.f32 %v2663, %v2683
      %v2700 = vadd.f32 %v2664, %v2683
      %v2701 = vadd.f32 %v2665, %v2683
      %v2702 = vadd.f32 %v2666, %v2683
      %v2703 = vadd.f32 %v2667, %v2683
      %v2704 = vadd.f32 %v2668, %v2683
      %v2705 = vadd.f32 %v2669, %v2683
      %v2706 = vadd.f32 %v2670, %v2683
      %v2707 = vadd.f32 %v2671, %v2683
      %v2708 = vadd.f32 %v2672, %v2683
      %v2709 = vadd.f32 %v2673, %v2683
      %v2710 = vadd.f32 %v2674, %v2683
      %v2711 = vadd.f32 %v2675, %v2683
      %v2712 = vadd.f32 %v2676, %v2683
      %v2713 = vadd.f32 %v2677, %v2683
      %v2714 = vadd.f32 %v2678, %v2683
      %v2715 = vadd.f32 %v2679, %v2683
      %v2716 = vadd.f32 %v2680, %v2683
      %vm2717 = vcmp.ge.f32.partialorder %v2685, 0.0
      %vm2718 = vcmp.ge.f32.partialorder %v2686, 0.0
      %vm2719 = vcmp.ge.f32.partialorder %v2687, 0.0
      %vm2720 = vcmp.ge.f32.partialorder %v2688, 0.0
      %vm2721 = vcmp.ge.f32.partialorder %v2689, 0.0
      %vm2722 = vcmp.ge.f32.partialorder %v2690, 0.0
      %vm2723 = vcmp.ge.f32.partialorder %v2691, 0.0
      %vm2724 = vcmp.ge.f32.partialorder %v2692, 0.0
      %vm2725 = vcmp.ge.f32.partialorder %v2693, 0.0
      %vm2726 = vcmp.ge.f32.partialorder %v2694, 0.0
      %vm2727 = vcmp.ge.f32.partialorder %v2695, 0.0
      %vm2728 = vcmp.ge.f32.partialorder %v2696, 0.0
      %vm2729 = vcmp.ge.f32.partialorder %v2697, 0.0
      %vm2730 = vcmp.ge.f32.partialorder %v2698, 0.0
      %vm2731 = vcmp.ge.f32.partialorder %v2699, 0.0
      %vm2732 = vcmp.ge.f32.partialorder %v2700, 0.0
      %vm2733 = vcmp.ge.f32.partialorder %v2701, 0.0
      %vm2734 = vcmp.ge.f32.partialorder %v2702, 0.0
      %vm2735 = vcmp.ge.f32.partialorder %v2703, 0.0
      %vm2736 = vcmp.ge.f32.partialorder %v2704, 0.0
      %vm2737 = vcmp.ge.f32.partialorder %v2705, 0.0
      %vm2738 = vcmp.ge.f32.partialorder %v2706, 0.0
      %vm2739 = vcmp.ge.f32.partialorder %v2707, 0.0
      %vm2740 = vcmp.ge.f32.partialorder %v2708, 0.0
      %vm2741 = vcmp.ge.f32.partialorder %v2709, 0.0
      %vm2742 = vcmp.ge.f32.partialorder %v2710, 0.0
      %vm2743 = vcmp.ge.f32.partialorder %v2711, 0.0
      %vm2744 = vcmp.ge.f32.partialorder %v2712, 0.0
      %vm2745 = vcmp.ge.f32.partialorder %v2713, 0.0
      %vm2746 = vcmp.ge.f32.partialorder %v2714, 0.0
      %vm2747 = vcmp.ge.f32.partialorder %v2715, 0.0
      %vm2748 = vcmp.ge.f32.partialorder %v2716, 0.0
      %v2749 = vmul.f32 %v2685, 0.01
      %v2750 = vmul.f32 %v2686, 0.01
      %v2751 = vmul.f32 %v2687, 0.01
      %v2752 = vmul.f32 %v2688, 0.01
      %v2753 = vmul.f32 %v2689, 0.01
      %v2754 = vmul.f32 %v2690, 0.01
      %v2755 = vmul.f32 %v2691, 0.01
      %v2756 = vmul.f32 %v2692, 0.01
      %v2757 = vmul.f32 %v2693, 0.01
      %v2758 = vmul.f32 %v2694, 0.01
      %v2759 = vmul.f32 %v2695, 0.01
      %v2760 = vmul.f32 %v2696, 0.01
      %v2761 = vmul.f32 %v2697, 0.01
      %v2762 = vmul.f32 %v2698, 0.01
      %v2763 = vmul.f32 %v2699, 0.01
      %v2764 = vmul.f32 %v2700, 0.01
      %v2765 = vmul.f32 %v2701, 0.01
      %v2766 = vmul.f32 %v2702, 0.01
      %v2767 = vmul.f32 %v2703, 0.01
      %v2768 = vmul.f32 %v2704, 0.01
      %v2769 = vmul.f32 %v2705, 0.01
      %v2770 = vmul.f32 %v2706, 0.01
      %v2771 = vmul.f32 %v2707, 0.01
      %v2772 = vmul.f32 %v2708, 0.01
      %v2773 = vmul.f32 %v2709, 0.01
      %v2774 = vmul.f32 %v2710, 0.01
      %v2775 = vmul.f32 %v2711, 0.01
      %v2776 = vmul.f32 %v2712, 0.01
      %v2777 = vmul.f32 %v2713, 0.01
      %v2778 = vmul.f32 %v2714, 0.01
      %v2779 = vmul.f32 %v2715, 0.01
      %v2780 = vmul.f32 %v2716, 0.01
      %v2781 = vsel %vm2717, %v2685, %v2749
      %v2782 = vsel %vm2718, %v2686, %v2750
      %v2783 = vsel %vm2719, %v2687, %v2751
      %v2784 = vsel %vm2720, %v2688, %v2752
      %v2785 = vsel %vm2721, %v2689, %v2753
      %v2786 = vsel %vm2722, %v2690, %v2754
      %v2787 = vsel %vm2723, %v2691, %v2755
      %v2788 = vsel %vm2724, %v2692, %v2756
      %v2789 = vsel %vm2725, %v2693, %v2757
      %v2790 = vsel %vm2726, %v2694, %v2758
      %v2791 = vsel %vm2727, %v2695, %v2759
      %v2792 = vsel %vm2728, %v2696, %v2760
      %v2793 = vsel %vm2729, %v2697, %v2761
      %v2794 = vsel %vm2730, %v2698, %v2762
      %v2795 = vsel %vm2731, %v2699, %v2763
      %v2796 = vsel %vm2732, %v2700, %v2764
      %v2797 = vsel %vm2733, %v2701, %v2765
      %v2798 = vsel %vm2734, %v2702, %v2766
      %v2799 = vsel %vm2735, %v2703, %v2767
      %v2800 = vsel %vm2736, %v2704, %v2768
      %v2801 = vsel %vm2737, %v2705, %v2769
      %v2802 = vsel %vm2738, %v2706, %v2770
      %v2803 = vsel %vm2739, %v2707, %v2771
      %v2804 = vsel %vm2740, %v2708, %v2772
      %v2805 = vsel %vm2741, %v2709, %v2773
      %v2806 = vsel %vm2742, %v2710, %v2774
      %v2807 = vsel %vm2743, %v2711, %v2775
      %v2808 = vsel %vm2744, %v2712, %v2776
      %v2809 = vsel %vm2745, %v2713, %v2777
      %v2810 = vsel %vm2746, %v2714, %v2778
      %v2811 = vsel %vm2747, %v2715, %v2779
      %v2812 = vsel %vm2748, %v2716, %v2780
      %2813 = vst [vmem:[%s364] sm:$0xff] %v2781
      %2814 = vst [vmem:[%s364 + $0x8] sm:$0xff] %v2782
      %2815 = vst [vmem:[%s364 + $0x10] sm:$0xff] %v2783
      %2816 = vst [vmem:[%s364 + $0x18] sm:$0xff] %v2784
      %2817 = vst [vmem:[%s364 + $0x20] sm:$0xff] %v2785
      %2818 = vst [vmem:[%s364 + $0x28] sm:$0xff] %v2786
      %2819 = vst [vmem:[%s364 + $0x30] sm:$0xff] %v2787
      %2820 = vst [vmem:[%s364 + $0x38] sm:$0xff] %v2788
      %2821 = vst [vmem:[%s364 + $0x40] sm:$0xff] %v2789
      %2822 = vst [vmem:[%s364 + $0x48] sm:$0xff] %v2790
      %2823 = vst [vmem:[%s364 + $0x50] sm:$0xff] %v2791
      %2824 = vst [vmem:[%s364 + $0x58] sm:$0xff] %v2792
      %2825 = vst [vmem:[%s364 + $0x60] sm:$0xff] %v2793
      %2826 = vst [vmem:[%s364 + $0x68] sm:$0xff] %v2794
      %2827 = vst [vmem:[%s364 + $0x70] sm:$0xff] %v2795
      %2828 = vst [vmem:[%s364 + $0x78] sm:$0xff] %v2796
      %2829 = vst [vmem:[%s364 + $0x80] sm:$0xff] %v2797
      %2830 = vst [vmem:[%s364 + $0x88] sm:$0xff] %v2798
      %2831 = vst [vmem:[%s364 + $0x90] sm:$0xff] %v2799
      %2832 = vst [vmem:[%s364 + $0x98] sm:$0xff] %v2800
      %2833 = vst [vmem:[%s364 + $0xa0] sm:$0xff] %v2801
      %2834 = vst [vmem:[%s364 + $0xa8] sm:$0xff] %v2802
      %2835 = vst [vmem:[%s364 + $0xb0] sm:$0xff] %v2803
      %2836 = vst [vmem:[%s364 + $0xb8] sm:$0xff] %v2804
      %2837 = vst [vmem:[%s364 + $0xc0] sm:$0xff] %v2805
      %2838 = vst [vmem:[%s364 + $0xc8] sm:$0xff] %v2806
      %2839 = vst [vmem:[%s364 + $0xd0] sm:$0xff] %v2807
      %2840 = vst [vmem:[%s364 + $0xd8] sm:$0xff] %v2808
      %2841 = vst [vmem:[%s364 + $0xe0] sm:$0xff] %v2809
      %2842 = vst [vmem:[%s364 + $0xe8] sm:$0xff] %v2810
      %2843 = vst [vmem:[%s364 + $0xf0] sm:$0xff] %v2811
      %2844 = vst [vmem:[%s364 + $0xf8] sm:$0xff] %v2812
      %s2845 = smul.u32 32, %s22
      %p2846 = scmp.lt.s32.totalorder %s21, 1
      %s2847 = scalar_select %p2846, %s21, 1
      %p2848 = scmp.lt.s32.totalorder %s2845, 31
      %s2849 = scalar_select %p2848, %s2845, 31
      %p2850 = scmp.lt.s32.totalorder %s23, 0
      %s2851 = scalar_select %p2850, %s23, 0
      %s2852 = sadd.s32 %s2851, %s2849
      %s2853 = smul.addr %s2847, 32
      %s2854 = sadd.s32 %s2852, %s2853
      %s2855 = smul.addr %s2854, 8
      %s2856 = scalar_lea.vmem %s5, %s2855
      // Predicated region
      $region41: #{downblock_forward.7} parent=39 // pred_check
        %p2857 = pneg %p193
      $region42: #{downblock_forward.7} parent=39 // pred_check_branch
        %2859 = sbr.rel (%p2857) target = $region44
      $region43: #{downblock_forward.7} parent=39 // pred_region
        %s2860 = smul.u32 32, %s22
      $region44: #{downblock_forward.7} parent=39 // pred_fallthru
        _
    $region40: #{downblock_forward.7} parent=5 // pred_fallthru
      _
    %p2861 = scmp.le.s32.totalorder 2, %s11
    // Predicated region
    $region45: #{downblock_forward.7} parent=5 // pred_check
      %p2862 = pneg %p2861
    $region46: #{downblock_forward.7} parent=5 // pred_check_branch
      %2864 = sbr.rel (%p2862) target = $region48
    $region47: #{downblock_forward.7} parent=5 // pred_region
      %s2865 = ssub.s32 %s11, 2
      // Predicated region
      $region49: #{downblock_forward.7} parent=47 // pred_check
        %p2866 = pneg %p199
      $region50: #{downblock_forward.7} parent=47 // pred_check_branch
        %2868 = sbr.rel (%p2866) target = $region52
      $region51: #{downblock_forward.7} parent=47 // pred_region
        %s2869 = smul.u32 32, %s25
        %p2870 = scmp.lt.s32.totalorder %s24, 1
        %s2871 = scalar_select %p2870, %s24, 1
        %p2872 = scmp.lt.s32.totalorder %s2869, 31
        %s2873 = scalar_select %p2872, %s2869, 31
        %p2874 = scmp.lt.s32.totalorder %s26, 0
        %s2875 = scalar_select %p2874, %s26, 0
        %s2876 = sadd.s32 %s2875, %s2873
        %s2877 = smul.addr %s2871, 32
        %s2878 = sadd.s32 %s2876, %s2877
        %s2879 = smul.addr %s2878, 8
        %s2880 = scalar_lea.vmem %s5, %s2879
      $region52: #{downblock_forward.7} parent=47 // pred_fallthru
        _
    $region48: #{downblock_forward.7} parent=5 // pred_fallthru
      _
  $region6: #{downblock_forward.7} parent=0 // loop_footer
    %s15 = sadd.s32 1, %s11
  $region7: #{downblock_forward.7} parent=0 // loop_footer_branch
    %10 = sbr.rel target = $region3
  $region8: #{downblock_forward.7} parent=0 // loop_exit
    _

</llo_original>
